<compile_context>
chip_gen: v7x
topology: tpu7x:2x2x1
jax: 0.10.0
libtpu: 0.0.40
codegen_flags: <defaults>
</compile_context>

<pallas_src>
import functools

import jax
import jax.numpy as jnp
from jax.experimental import pallas as pl
from jax.experimental.pallas import tpu as pltpu


# ------------------------------ VMEM budget --------------------------------


def _vmem_budget_bytes():
    """~85% of physical VMEM per TensorCore (headroom for compiler scratch).

    v5e/v6e (128 MiB) -> ~109 MiB, v7x (64 MiB) -> ~54 MiB.  Falls back to a
    conservative 64 MiB * 0.85 if the query is unavailable.
    """
    cap = 64 * 1024 * 1024
    try:
        info = pltpu.get_tpu_info()
        for attr in ("vmem_capacity_bytes", "vmem_size_bytes", "vmem_bytes"):
            v = getattr(info, attr, None)
            if v:
                cap = int(v)
                break
    except Exception:
        pass
    return int(cap * 0.85)


# ----------------------------- kernel helpers -------------------------------

_LN_EPS = 1e-6  # torch.nn.LayerNorm(eps=1e-06) in the reference module.


def _shared_ln_stats(x):
    """Biased mean/var normalization shared by both LayerNorms (same input x)."""
    mu = jnp.mean(x, axis=-1, keepdims=True)
    xc = x - mu
    var = jnp.mean(xc * xc, axis=-1, keepdims=True)
    return xc * jax.lax.rsqrt(var + _LN_EPS)


def _layer_math(x, c_prev, h_prev, ln, w, u, b, hproj, f1, f2, d_model, res_conn):
    """One LSTMLayer forward (eval mode).  All matmuls bf16-in / f32-acc."""
    D = d_model
    xn = _shared_ln_stats(x)                       # [B, D] f32
    x_norm1 = xn * ln[0:1, :] + ln[1:2, :]
    x_norm2 = xn * ln[2:3, :] + ln[3:4, :]

    lin = (jnp.dot(x_norm1.astype(jnp.bfloat16), w,
                   preferred_element_type=jnp.float32)
           + jnp.dot(h_prev.astype(jnp.bfloat16), u,
                     preferred_element_type=jnp.float32)
           + b)                                    # [B, 4D] f32

    c_tilde = jnp.tanh(lin[:, 3 * D:])
    gates = jax.nn.sigmoid(lin[:, :3 * D])
    i_gate = gates[:, :D]
    f_gate = gates[:, D:2 * D]
    o_gate = gates[:, 2 * D:]

    c_next = f_gate * c_prev + i_gate * c_tilde
    # TODO(synk): dropout (training=True path) not implemented; eval path only.
    h_next = o_gate * jnp.tanh(c_next)

    hidden = jnp.maximum(
        jnp.dot(x_norm2.astype(jnp.bfloat16), f1,
                preferred_element_type=jnp.float32), 0.0)
    y = jnp.dot(hidden.astype(jnp.bfloat16), f2,
                preferred_element_type=jnp.float32)
    y = y + jnp.dot(h_next.astype(jnp.bfloat16), hproj,
                    preferred_element_type=jnp.float32)
    if res_conn:
        y = y + x
    return c_next, h_next, y


# ------------------------- RESIDENT (no-grid) kernel ------------------------


def resident_lstm_kernel(
    x_emb_ref, c_prev_ref, h_prev_ref,
    w_ref, u_ref, b_ref, hproj_ref, f1_ref, f2_ref, ln_ref,
    c_out_ref, h_out_ref, y_out_ref,
    *, n_layers, d_model, res_conn,
):
    def layer_body(m, x):
        c_next, h_next, y = _layer_math(
            x, c_prev_ref[m], h_prev_ref[m], ln_ref[m],
            w_ref[m], u_ref[m], b_ref[m],
            hproj_ref[m], f1_ref[m], f2_ref[m],
            d_model, res_conn)
        c_out_ref[m] = c_next
        h_out_ref[m] = h_next
        return y

    x0 = x_emb_ref[...]
    y_final = jax.lax.fori_loop(0, n_layers, layer_body, x0, unroll=True)
    y_out_ref[...] = y_final      # written exactly once


def _make_resident_call(L, B, D, res_conn, cost, budget, resident_bytes):
    kern = functools.partial(resident_lstm_kernel,
                             n_layers=L, d_model=D, res_conn=res_conn)
    vmem_limit = int(min(budget, max(4 * resident_bytes + (16 << 20), 32 << 20)))
    vspec = pl.BlockSpec(memory_space=pltpu.MemorySpace.VMEM)
    return pl.pallas_call(
        kern,
        out_shape=(
            jax.ShapeDtypeStruct((L, B, D), jnp.float32),
            jax.ShapeDtypeStruct((L, B, D), jnp.float32),
            jax.ShapeDtypeStruct((B, D), jnp.float32),
        ),
        in_specs=[vspec] * 10,
        out_specs=(vspec, vspec, vspec),
        # In-place recurrent state update: c_prev -> c_next, h_prev -> h_next.
        input_output_aliases={1: 0, 2: 1},
        compiler_params=pltpu.CompilerParams(vmem_limit_bytes=vmem_limit),
        cost_estimate=cost,
    )


# ------------------------- PIPELINED (grid=(L,)) kernel ---------------------


def pipelined_lstm_kernel(
    x_emb_ref, c_prev_ref, h_prev_ref,
    w_ref, u_ref, b_ref, hproj_ref, f1_ref, f2_ref, ln_ref,
    c_out_ref, h_out_ref, y_out_ref,
    x_carry,
    *, d_model, res_conn,
):
    layer = pl.program_id(0)

    # Layer 0 consumes the token embedding; later layers consume the carried
    # activation produced by the previous grid iteration (scratch persists).
    @pl.when(layer == 0)
    def _():
        x_carry[...] = x_emb_ref[...]

    x = x_carry[...]
    c_next, h_next, y = _layer_math(
        x, c_prev_ref[0], h_prev_ref[0], ln_ref[0],
        w_ref[0], u_ref[0], b_ref[0],
        hproj_ref[0], f1_ref[0], f2_ref[0],
        d_model, res_conn)

    c_out_ref[0] = c_next
    h_out_ref[0] = h_next
    x_carry[...] = y              # feed next layer

    @pl.when(layer == pl.num_programs(0) - 1)
    def _():
        y_out_ref[...] = y        # final network output, written once


def _make_pipelined_call(L, B, D, res_conn, cost, budget, per_layer_bytes,
                         act_bytes):
    kern = functools.partial(pipelined_lstm_kernel, d_model=D, res_conn=res_conn)

    double_buf_bytes = 2 * per_layer_bytes + act_bytes + 4 * B * D * 4 + (8 << 20)
    single_buffer_weights = double_buf_bytes > budget
    # TODO(synk): for very large D additionally tile the 4*D output dim of
    # W/U/ffwd_1 (and ffwd_2's K) with an extra grid axis instead of dropping
    # to single-buffered weights.
    vmem_limit = int(min(budget, max(double_buf_bytes, 32 << 20)))

    def layer_block(tail):
        return pl.BlockSpec((1,) + tail, lambda l: (l,) + (0,) * len(tail))

    def weight_block(tail):
        if single_buffer_weights:
            return pl.BlockSpec((1,) + tail, lambda l: (l,) + (0,) * len(tail),
                                pipeline_mode=pl.Buffered(1))
        return layer_block(tail)

    in_specs = [
        pl.BlockSpec((B, D), lambda l: (0, 0)),     # x_embed (resident)
        layer_block((B, D)),                        # c_prev
        layer_block((B, D)),                        # h_prev
        weight_block((D, 4 * D)),                   # W    (bf16)
        weight_block((D, 4 * D)),                   # U    (bf16)
        layer_block((1, 4 * D)),                    # b    (f32)
        weight_block((D, D)),                       # h_proj (bf16)
        weight_block((D, 4 * D)),                   # ffwd_1 (bf16)
        weight_block((4 * D, D)),                   # ffwd_2 (bf16)
        layer_block((4, D)),                        # packed LN params (f32)
    ]
    out_specs = (
        layer_block((B, D)),                        # c_next
        layer_block((B, D)),                        # h_next
        pl.BlockSpec((B, D), lambda l: (0, 0)),     # final layer output
    )
    out_shape = (
        jax.ShapeDtypeStruct((L, B, D), jnp.float32),
        jax.ShapeDtypeStruct((L, B, D), jnp.float32),
        jax.ShapeDtypeStruct((B, D), jnp.float32),
    )

    return pl.pallas_call(
        kern,
        out_shape=out_shape,
        grid_spec=pltpu.PrefetchScalarGridSpec(
            num_scalar_prefetch=0,
            grid=(L,),
            in_specs=in_specs,
            out_specs=out_specs,
            scratch_shapes=[pltpu.VMEM((B, D), jnp.float32)],
        ),
        input_output_aliases={1: 0, 2: 1},
        compiler_params=pltpu.CompilerParams(
            dimension_semantics=("arbitrary",),     # serial layer recurrence
            vmem_limit_bytes=vmem_limit,
        ),
        cost_estimate=cost,
    )


# ------------------------------- dispatcher ---------------------------------


def make_network_call(n_layers, batch, d_model, res_conn=False):
    L, B, D = n_layers, batch, d_model
    if D % 128 != 0:
        raise ValueError(
            "d_model must be a multiple of 128 (lane-aligned gate slices and "
            "weight block shapes); got %d" % D)

    budget = _vmem_budget_bytes()

    per_layer_w_bytes = 17 * D * D * 2              # W,U,f1,f2 (4D^2 ea) + hproj, bf16
    per_layer_small_bytes = (4 * D + 4 * D) * 4     # b + packed LN rows, f32
    per_layer_state_bytes = 4 * B * D * 4           # c/h in + out, f32
    act_bytes = 2 * B * D * 4                       # x_embed + y

    per_layer_bytes = (per_layer_w_bytes + per_layer_small_bytes
                       + per_layer_state_bytes)
    resident_bytes = L * per_layer_bytes + act_bytes

    # Roofline-style accounting for the scheduler (decode step is HBM-bound).
    cost = pl.CostEstimate(
        flops=int(L * 34 * B * D * D),
        transcendentals=int(L * 6 * B * D),
        bytes_accessed=int(resident_bytes),
    )

    if resident_bytes <= budget // 3:
        return _make_resident_call(L, B, D, res_conn, cost, budget,
                                   resident_bytes)
    return _make_pipelined_call(L, B, D, res_conn, cost, budget,
                                per_layer_bytes, act_bytes)


# ------------------------- parameter construction ---------------------------


def init_network_params(key, n_layers, d_model, vocab_size):
    """f32 parameters, stacked over layers (torch-equivalent layout, y = x @ W)."""
    D = d_model
    keys = jax.random.split(key, 6)
    s = 0.1

    def nrm(k, shape):
        return jax.random.normal(k, shape, jnp.float32) * s

    return {
        "embed": jax.random.normal(keys[0], (vocab_size, D), jnp.float32),
        "W": nrm(keys[1], (n_layers, D, 4 * D)),
        "U": nrm(keys[2], (n_layers, D, 4 * D)),
        "b": jnp.zeros((n_layers, 1, 4 * D), jnp.float32),   # torch inits b to zeros
        "h_proj": nrm(keys[3], (n_layers, D, D)),
        "ffwd_1": nrm(keys[4], (n_layers, D, 4 * D)),
        "ffwd_2": nrm(keys[5], (n_layers, 4 * D, D)),
        "ln1_w": jnp.ones((n_layers, D), jnp.float32),
        "ln1_b": jnp.zeros((n_layers, D), jnp.float32),
        "ln2_w": jnp.ones((n_layers, D), jnp.float32),
        "ln2_b": jnp.zeros((n_layers, D), jnp.float32),
    }


def pack_params(raw):
    """Kernel-ready params: bf16 matmul weights + packed [L, 4, D] LN affine."""
    ln = jnp.stack([raw["ln1_w"], raw["ln1_b"], raw["ln2_w"], raw["ln2_b"]],
                   axis=1)                                   # [L, 4, D] f32
    return {
        "embed": raw["embed"],
        "w": raw["W"].astype(jnp.bfloat16),
        "u": raw["U"].astype(jnp.bfloat16),
        "b": raw["b"],
        "h_proj": raw["h_proj"].astype(jnp.bfloat16),
        "ffwd_1": raw["ffwd_1"].astype(jnp.bfloat16),
        "ffwd_2": raw["ffwd_2"].astype(jnp.bfloat16),
        "ln": ln,
    }


# ------------------------------ network glue --------------------------------


def lstm_network_forward(params, x_tokens, res_conn=False,
                         c_prev=None, h_prev=None):
    L, D = params["w"].shape[0], params["w"].shape[1]
    B = x_tokens.shape[0]

    if c_prev is None:
        c_prev = jnp.zeros((L, B, D), jnp.float32)
    if h_prev is None:
        h_prev = jnp.zeros((L, B, D), jnp.float32)

    # TODO(synk): emb_dropout (training=True path) not implemented; eval path.
    x_embed = jnp.take(params["embed"], x_tokens, axis=0)    # [B, D]

    call = make_network_call(L, B, D, res_conn=res_conn)
    c_next, h_next, lstm_out = call(
        x_embed, c_prev, h_prev,
        params["w"], params["u"], params["b"],
        params["h_proj"], params["ffwd_1"], params["ffwd_2"],
        params["ln"],
    )
    return c_next, h_next, lstm_out


# --------------------------- pure-JAX reference -----------------------------
# Matches the kernel math (bf16 dot inputs, f32 accumulation, eps=1e-6).


def _bdot(a, w):
    return jnp.dot(a.astype(jnp.bfloat16), w, preferred_element_type=jnp.float32)


def _ref_layernorm(x, w, b, eps=_LN_EPS):
    mu = jnp.mean(x, axis=-1, keepdims=True)
    xc = x - mu
    var = jnp.mean(xc * xc, axis=-1, keepdims=True)
    return xc * jax.lax.rsqrt(var + eps) * w + b


def _ref_network(params, x_tokens, n_layers, d_model, res_conn=False):
    D = d_model
    B = x_tokens.shape[0]
    c_prev = jnp.zeros((n_layers, B, D), jnp.float32)
    h_prev = jnp.zeros((n_layers, B, D), jnp.float32)
    x = jnp.take(params["embed"], x_tokens, axis=0)
    cs, hs = [], []
    for m in range(n_layers):
        ln = params["ln"][m]
        x_norm = _ref_layernorm(x, ln[0], ln[1])
        lin = (_bdot(x_norm, params["w"][m]) + _bdot(h_prev[m], params["u"][m])
               + params["b"][m])
        c_tilde = jnp.tanh(lin[:, 3 * D:])
        g = jax.nn.sigmoid(lin[:, :3 * D])
        i_g, f_g, o_g = g[:, :D], g[:, D:2 * D], g[:, 2 * D:]
        c_next = f_g * c_prev[m] + i_g * c_tilde
        h_next = o_g * jnp.tanh(c_next)
        x_norm2 = _ref_layernorm(x, ln[2], ln[3])
        y = _bdot(jnp.maximum(_bdot(x_norm2, params["ffwd_1"][m]), 0.0),
                  params["ffwd_2"][m])
        y = y + _bdot(h_next, params["h_proj"][m])
        if res_conn:
            y = y + x
        cs.append(c_next[None])
        hs.append(h_next[None])
        x = y
    return jnp.concatenate(cs, 0), jnp.concatenate(hs, 0), x


# ---------------------------------- main -------------------------------------

if __name__ == "__main__":
    n_layers = 3
    d_model = 128        # multiple of 128 -> lane-aligned gate slices
    vocab_size = 64
    max_seq_length = 8   # unused by this single-decode-step forward
    batch = 8            # sublane-aligned
    res_conn = False

    key = jax.random.PRNGKey(0)
    pkey, xkey = jax.random.split(key)
    raw_params = init_network_params(pkey, n_layers, d_model, vocab_size)
    params = pack_params(raw_params)
    x_tokens = jax.random.randint(xkey, (batch,), 0, vocab_size, dtype=jnp.int32)

    c_next, h_next, lstm_out = lstm_network_forward(
        params, x_tokens, res_conn=res_conn)
    jax.block_until_ready((c_next, h_next, lstm_out))

    c_ref, h_ref, out_ref = _ref_network(
        params, x_tokens, n_layers, d_model, res_conn=res_conn)

    assert c_next.shape == (n_layers, batch, d_model)
    assert h_next.shape == (n_layers, batch, d_model)
    assert lstm_out.shape == (batch, d_model)
    assert jnp.allclose(c_next, c_ref, atol=1e-3, rtol=1e-3)
    assert jnp.allclose(h_next, h_ref, atol=1e-3, rtol=1e-3)
    assert jnp.allclose(lstm_out, out_ref, atol=1e-3, rtol=1e-3)

    print("KERNEL_OK")
</pallas_src>

<mosaic_0001>
module attributes {stable_mosaic.version = 11 : i64} {
  func.func @resident_lstm_kernel(%arg0: memref<8x128xf32, #tpu.memory_space<vmem>>, %arg1: memref<3x8x128xf32, #tpu.memory_space<vmem>>, %arg2: memref<3x8x128xf32, #tpu.memory_space<vmem>>, %arg3: memref<3x128x512xbf16, #tpu.memory_space<vmem>>, %arg4: memref<3x128x512xbf16, #tpu.memory_space<vmem>>, %arg5: memref<3x1x512xf32, #tpu.memory_space<vmem>>, %arg6: memref<3x128x128xbf16, #tpu.memory_space<vmem>>, %arg7: memref<3x128x512xbf16, #tpu.memory_space<vmem>>, %arg8: memref<3x512x128xbf16, #tpu.memory_space<vmem>>, %arg9: memref<3x4x128xf32, #tpu.memory_space<vmem>>, %arg10: memref<3x8x128xf32, #tpu.memory_space<vmem>>, %arg11: memref<3x8x128xf32, #tpu.memory_space<vmem>>, %arg12: memref<8x128xf32, #tpu.memory_space<vmem>>) attributes {dimension_semantics = [], scalar_prefetch = 0 : i64, scratch_operands = 0 : i64, tpu.core_type = #tpu.core_type<tc>} {
    %c0 = arith.constant 0 : index
    %c0_0 = arith.constant 0 : index
    %0 = vector.load %arg0[%c0, %c0_0] : memref<8x128xf32, #tpu.memory_space<vmem>>, vector<8x128xf32>
    %c0_i32 = arith.constant 0 : i32
    %1 = arith.index_cast %c0_i32 : i32 to index
    %c0_1 = arith.constant 0 : index
    %c0_2 = arith.constant 0 : index
    %2 = vector.load %arg1[%1, %c0_1, %c0_2] : memref<3x8x128xf32, #tpu.memory_space<vmem>>, vector<1x8x128xf32>
    %3 = vector.shape_cast %2 : vector<1x8x128xf32> to vector<8x128xf32>
    %4 = arith.index_cast %c0_i32 : i32 to index
    %c0_3 = arith.constant 0 : index
    %c0_4 = arith.constant 0 : index
    %5 = vector.load %arg2[%4, %c0_3, %c0_4] : memref<3x8x128xf32, #tpu.memory_space<vmem>>, vector<1x8x128xf32>
    %6 = vector.shape_cast %5 : vector<1x8x128xf32> to vector<8x128xf32>
    %7 = arith.index_cast %c0_i32 : i32 to index
    %c0_5 = arith.constant 0 : index
    %c0_6 = arith.constant 0 : index
    %8 = vector.load %arg9[%7, %c0_5, %c0_6] : memref<3x4x128xf32, #tpu.memory_space<vmem>>, vector<1x4x128xf32>
    %9 = vector.shape_cast %8 : vector<1x4x128xf32> to vector<4x128xf32>
    %10 = arith.index_cast %c0_i32 : i32 to index
    %c0_7 = arith.constant 0 : index
    %c0_8 = arith.constant 0 : index
    %11 = vector.load %arg3[%10, %c0_7, %c0_8] : memref<3x128x512xbf16, #tpu.memory_space<vmem>>, vector<1x128x512xbf16>
    %12 = vector.shape_cast %11 : vector<1x128x512xbf16> to vector<128x512xbf16>
    %13 = arith.index_cast %c0_i32 : i32 to index
    %c0_9 = arith.constant 0 : index
    %c0_10 = arith.constant 0 : index
    %14 = vector.load %arg4[%13, %c0_9, %c0_10] : memref<3x128x512xbf16, #tpu.memory_space<vmem>>, vector<1x128x512xbf16>
    %15 = vector.shape_cast %14 : vector<1x128x512xbf16> to vector<128x512xbf16>
    %16 = arith.index_cast %c0_i32 : i32 to index
    %c0_11 = arith.constant 0 : index
    %c0_12 = arith.constant 0 : index
    %17 = vector.load %arg5[%16, %c0_11, %c0_12] : memref<3x1x512xf32, #tpu.memory_space<vmem>>, vector<1x1x512xf32>
    %18 = vector.shape_cast %17 : vector<1x1x512xf32> to vector<1x512xf32>
    %19 = arith.index_cast %c0_i32 : i32 to index
    %c0_13 = arith.constant 0 : index
    %c0_14 = arith.constant 0 : index
    %20 = vector.load %arg6[%19, %c0_13, %c0_14] : memref<3x128x128xbf16, #tpu.memory_space<vmem>>, vector<1x128x128xbf16>
    %21 = vector.shape_cast %20 : vector<1x128x128xbf16> to vector<128x128xbf16>
    %22 = arith.index_cast %c0_i32 : i32 to index
    %c0_15 = arith.constant 0 : index
    %c0_16 = arith.constant 0 : index
    %23 = vector.load %arg7[%22, %c0_15, %c0_16] : memref<3x128x512xbf16, #tpu.memory_space<vmem>>, vector<1x128x512xbf16>
    %24 = vector.shape_cast %23 : vector<1x128x512xbf16> to vector<128x512xbf16>
    %25 = arith.index_cast %c0_i32 : i32 to index
    %c0_17 = arith.constant 0 : index
    %c0_18 = arith.constant 0 : index
    %26 = vector.load %arg8[%25, %c0_17, %c0_18] : memref<3x512x128xbf16, #tpu.memory_space<vmem>>, vector<1x512x128xbf16>
    %27 = vector.shape_cast %26 : vector<1x512x128xbf16> to vector<512x128xbf16>
    %cst = arith.constant dense<0.000000e+00> : vector<8xf32>
    %28 = vector.multi_reduction <add>, %0, %cst [1] : vector<8x128xf32> to vector<8xf32>
    %29 = vector.shape_cast %28 : vector<8xf32> to vector<8x1xf32>
    %cst_19 = arith.constant 1.280000e+02 : f32
    %30 = vector.broadcast %cst_19 : f32 to vector<8x1xf32>
    %31 = arith.divf %29, %30 : vector<8x1xf32>
    %32 = vector.broadcast %31 : vector<8x1xf32> to vector<8x128xf32>
    %33 = arith.subf %0, %32 : vector<8x128xf32>
    %34 = arith.mulf %33, %33 : vector<8x128xf32>
    %cst_20 = arith.constant dense<0.000000e+00> : vector<8xf32>
    %35 = vector.multi_reduction <add>, %34, %cst_20 [1] : vector<8x128xf32> to vector<8xf32>
    %36 = vector.shape_cast %35 : vector<8xf32> to vector<8x1xf32>
    %cst_21 = arith.constant 1.280000e+02 : f32
    %37 = vector.broadcast %cst_21 : f32 to vector<8x1xf32>
    %38 = arith.divf %36, %37 : vector<8x1xf32>
    %cst_22 = arith.constant 9.99999997E-7 : f32
    %39 = vector.broadcast %cst_22 : f32 to vector<8x1xf32>
    %40 = arith.addf %38, %39 : vector<8x1xf32>
    %41 = math.rsqrt %40 : vector<8x1xf32>
    %42 = vector.broadcast %41 : vector<8x1xf32> to vector<8x128xf32>
    %43 = arith.mulf %33, %42 : vector<8x128xf32>
    %44 = vector.extract_strided_slice %9 {offsets = [0, 0], sizes = [1, 128], strides = [1, 1]} : vector<4x128xf32> to vector<1x128xf32>
    %45 = vector.broadcast %44 : vector<1x128xf32> to vector<8x128xf32>
    %46 = arith.mulf %43, %45 : vector<8x128xf32>
    %47 = vector.extract_strided_slice %9 {offsets = [1, 0], sizes = [1, 128], strides = [1, 1]} : vector<4x128xf32> to vector<1x128xf32>
    %48 = vector.broadcast %47 : vector<1x128xf32> to vector<8x128xf32>
    %49 = arith.addf %46, %48 : vector<8x128xf32>
    %50 = vector.extract_strided_slice %9 {offsets = [2, 0], sizes = [1, 128], strides = [1, 1]} : vector<4x128xf32> to vector<1x128xf32>
    %51 = vector.broadcast %50 : vector<1x128xf32> to vector<8x128xf32>
    %52 = arith.mulf %43, %51 : vector<8x128xf32>
    %53 = vector.extract_strided_slice %9 {offsets = [3, 0], sizes = [1, 128], strides = [1, 1]} : vector<4x128xf32> to vector<1x128xf32>
    %54 = vector.broadcast %53 : vector<1x128xf32> to vector<8x128xf32>
    %55 = arith.addf %52, %54 : vector<8x128xf32>
    %56 = arith.truncf %49 : vector<8x128xf32> to vector<8x128xbf16>
    %cst_23 = arith.constant dense<0.000000e+00> : vector<8x512xf32>
    %57 = tpu.matmul %56, %12, %cst_23 {dimension_numbers = #tpu.dot_dimension_numbers<[1], [0], [0], [1], [0, 0, 1, 1], [], []>} : vector<8x128xbf16>, vector<128x512xbf16>, vector<8x512xf32> -> vector<8x512xf32>
    %58 = arith.truncf %6 : vector<8x128xf32> to vector<8x128xbf16>
    %cst_24 = arith.constant dense<0.000000e+00> : vector<8x512xf32>
    %59 = tpu.matmul %58, %15, %cst_24 {dimension_numbers = #tpu.dot_dimension_numbers<[1], [0], [0], [1], [0, 0, 1, 1], [], []>} : vector<8x128xbf16>, vector<128x512xbf16>, vector<8x512xf32> -> vector<8x512xf32>
    %60 = arith.addf %57, %59 : vector<8x512xf32>
    %61 = vector.broadcast %18 : vector<1x512xf32> to vector<8x512xf32>
    %62 = arith.addf %60, %61 : vector<8x512xf32>
    %63 = vector.extract_strided_slice %62 {offsets = [0, 384], sizes = [8, 128], strides = [1, 1]} : vector<8x512xf32> to vector<8x128xf32>
    %64 = math.tanh %63 : vector<8x128xf32>
    %65 = vector.extract_strided_slice %62 {offsets = [0, 0], sizes = [8, 384], strides = [1, 1]} : vector<8x512xf32> to vector<8x384xf32>
    %66 = arith.negf %65 : vector<8x384xf32>
    %67 = math.exp %66 : vector<8x384xf32>
    %cst_25 = arith.constant 1.000000e+00 : f32
    %68 = vector.broadcast %cst_25 : f32 to vector<8x384xf32>
    %69 = arith.addf %68, %67 : vector<8x384xf32>
    %70 = arith.divf %68, %69 : vector<8x384xf32>
    %71 = vector.extract_strided_slice %70 {offsets = [0, 0], sizes = [8, 128], strides = [1, 1]} : vector<8x384xf32> to vector<8x128xf32>
    %72 = vector.extract_strided_slice %70 {offsets = [0, 128], sizes = [8, 128], strides = [1, 1]} : vector<8x384xf32> to vector<8x128xf32>
    %73 = vector.extract_strided_slice %70 {offsets = [0, 256], sizes = [8, 128], strides = [1, 1]} : vector<8x384xf32> to vector<8x128xf32>
    %74 = arith.mulf %72, %3 : vector<8x128xf32>
    %75 = arith.mulf %71, %64 : vector<8x128xf32>
    %76 = arith.addf %74, %75 : vector<8x128xf32>
    %77 = math.tanh %76 : vector<8x128xf32>
    %78 = arith.mulf %73, %77 : vector<8x128xf32>
    %79 = arith.truncf %55 : vector<8x128xf32> to vector<8x128xbf16>
    %cst_26 = arith.constant dense<0.000000e+00> : vector<8x512xf32>
    %80 = tpu.matmul %79, %24, %cst_26 {dimension_numbers = #tpu.dot_dimension_numbers<[1], [0], [0], [1], [0, 0, 1, 1], [], []>} : vector<8x128xbf16>, vector<128x512xbf16>, vector<8x512xf32> -> vector<8x512xf32>
    %cst_27 = arith.constant 0.000000e+00 : f32
    %81 = vector.broadcast %cst_27 : f32 to vector<8x512xf32>
    %82 = arith.maximumf %80, %81 : vector<8x512xf32>
    %83 = arith.truncf %82 : vector<8x512xf32> to vector<8x512xbf16>
    %cst_28 = arith.constant dense<0.000000e+00> : vector<8x128xf32>
    %84 = tpu.matmul %83, %27, %cst_28 {dimension_numbers = #tpu.dot_dimension_numbers<[1], [0], [0], [1], [0, 0, 1, 1], [], []>} : vector<8x512xbf16>, vector<512x128xbf16>, vector<8x128xf32> -> vector<8x128xf32>
    %85 = arith.truncf %78 : vector<8x128xf32> to vector<8x128xbf16>
    %cst_29 = arith.constant dense<0.000000e+00> : vector<8x128xf32>
    %86 = tpu.matmul %85, %21, %cst_29 {dimension_numbers = #tpu.dot_dimension_numbers<[1], [0], [0], [1], [0, 0, 1, 1], [], []>} : vector<8x128xbf16>, vector<128x128xbf16>, vector<8x128xf32> -> vector<8x128xf32>
    %87 = arith.addf %84, %86 : vector<8x128xf32>
    %88 = arith.index_cast %c0_i32 : i32 to index
    %c0_30 = arith.constant 0 : index
    %c0_31 = arith.constant 0 : index
    %89 = vector.load %arg10[%88, %c0_30, %c0_31] : memref<3x8x128xf32, #tpu.memory_space<vmem>>, vector<1x8x128xf32>
    %90 = vector.shape_cast %89 : vector<1x8x128xf32> to vector<8x128xf32>
    %91 = vector.shape_cast %76 : vector<8x128xf32> to vector<1x8x128xf32>
    tpu.vector_store %arg10[%88, %c0_30, %c0_31], %91 {strides = array<i32>} : memref<3x8x128xf32, #tpu.memory_space<vmem>>, vector<1x8x128xf32>,
    %92 = arith.index_cast %c0_i32 : i32 to index
    %c0_32 = arith.constant 0 : index
    %c0_33 = arith.constant 0 : index
    %93 = vector.load %arg11[%92, %c0_32, %c0_33] : memref<3x8x128xf32, #tpu.memory_space<vmem>>, vector<1x8x128xf32>
    %94 = vector.shape_cast %93 : vector<1x8x128xf32> to vector<8x128xf32>
    %95 = vector.shape_cast %78 : vector<8x128xf32> to vector<1x8x128xf32>
    tpu.vector_store %arg11[%92, %c0_32, %c0_33], %95 {strides = array<i32>} : memref<3x8x128xf32, #tpu.memory_space<vmem>>, vector<1x8x128xf32>,
    %c1_i32 = arith.constant 1 : i32
    %96 = arith.index_cast %c1_i32 : i32 to index
    %c0_34 = arith.constant 0 : index
    %c0_35 = arith.constant 0 : index
    %97 = vector.load %arg1[%96, %c0_34, %c0_35] : memref<3x8x128xf32, #tpu.memory_space<vmem>>, vector<1x8x128xf32>
    %98 = vector.shape_cast %97 : vector<1x8x128xf32> to vector<8x128xf32>
    %99 = arith.index_cast %c1_i32 : i32 to index
    %c0_36 = arith.constant 0 : index
    %c0_37 = arith.constant 0 : index
    %100 = vector.load %arg2[%99, %c0_36, %c0_37] : memref<3x8x128xf32, #tpu.memory_space<vmem>>, vector<1x8x128xf32>
    %101 = vector.shape_cast %100 : vector<1x8x128xf32> to vector<8x128xf32>
    %102 = arith.index_cast %c1_i32 : i32 to index
    %c0_38 = arith.constant 0 : index
    %c0_39 = arith.constant 0 : index
    %103 = vector.load %arg9[%102, %c0_38, %c0_39] : memref<3x4x128xf32, #tpu.memory_space<vmem>>, vector<1x4x128xf32>
    %104 = vector.shape_cast %103 : vector<1x4x128xf32> to vector<4x128xf32>
    %105 = arith.index_cast %c1_i32 : i32 to index
    %c0_40 = arith.constant 0 : index
    %c0_41 = arith.constant 0 : index
    %106 = vector.load %arg3[%105, %c0_40, %c0_41] : memref<3x128x512xbf16, #tpu.memory_space<vmem>>, vector<1x128x512xbf16>
    %107 = vector.shape_cast %106 : vector<1x128x512xbf16> to vector<128x512xbf16>
    %108 = arith.index_cast %c1_i32 : i32 to index
    %c0_42 = arith.constant 0 : index
    %c0_43 = arith.constant 0 : index
    %109 = vector.load %arg4[%108, %c0_42, %c0_43] : memref<3x128x512xbf16, #tpu.memory_space<vmem>>, vector<1x128x512xbf16>
    %110 = vector.shape_cast %109 : vector<1x128x512xbf16> to vector<128x512xbf16>
    %111 = arith.index_cast %c1_i32 : i32 to index
    %c0_44 = arith.constant 0 : index
    %c0_45 = arith.constant 0 : index
    %112 = vector.load %arg5[%111, %c0_44, %c0_45] : memref<3x1x512xf32, #tpu.memory_space<vmem>>, vector<1x1x512xf32>
    %113 = vector.shape_cast %112 : vector<1x1x512xf32> to vector<1x512xf32>
    %114 = arith.index_cast %c1_i32 : i32 to index
    %c0_46 = arith.constant 0 : index
    %c0_47 = arith.constant 0 : index
    %115 = vector.load %arg6[%114, %c0_46, %c0_47] : memref<3x128x128xbf16, #tpu.memory_space<vmem>>, vector<1x128x128xbf16>
    %116 = vector.shape_cast %115 : vector<1x128x128xbf16> to vector<128x128xbf16>
    %117 = arith.index_cast %c1_i32 : i32 to index
    %c0_48 = arith.constant 0 : index
    %c0_49 = arith.constant 0 : index
    %118 = vector.load %arg7[%117, %c0_48, %c0_49] : memref<3x128x512xbf16, #tpu.memory_space<vmem>>, vector<1x128x512xbf16>
    %119 = vector.shape_cast %118 : vector<1x128x512xbf16> to vector<128x512xbf16>
    %120 = arith.index_cast %c1_i32 : i32 to index
    %c0_50 = arith.constant 0 : index
    %c0_51 = arith.constant 0 : index
    %121 = vector.load %arg8[%120, %c0_50, %c0_51] : memref<3x512x128xbf16, #tpu.memory_space<vmem>>, vector<1x512x128xbf16>
    %122 = vector.shape_cast %121 : vector<1x512x128xbf16> to vector<512x128xbf16>
    %cst_52 = arith.constant dense<0.000000e+00> : vector<8xf32>
    %123 = vector.multi_reduction <add>, %87, %cst_52 [1] : vector<8x128xf32> to vector<8xf32>
    %124 = vector.shape_cast %123 : vector<8xf32> to vector<8x1xf32>
    %cst_53 = arith.constant 1.280000e+02 : f32
    %125 = vector.broadcast %cst_53 : f32 to vector<8x1xf32>
    %126 = arith.divf %124, %125 : vector<8x1xf32>
    %127 = vector.broadcast %126 : vector<8x1xf32> to vector<8x128xf32>
    %128 = arith.subf %87, %127 : vector<8x128xf32>
    %129 = arith.mulf %128, %128 : vector<8x128xf32>
    %cst_54 = arith.constant dense<0.000000e+00> : vector<8xf32>
    %130 = vector.multi_reduction <add>, %129, %cst_54 [1] : vector<8x128xf32> to vector<8xf32>
    %131 = vector.shape_cast %130 : vector<8xf32> to vector<8x1xf32>
    %cst_55 = arith.constant 1.280000e+02 : f32
    %132 = vector.broadcast %cst_55 : f32 to vector<8x1xf32>
    %133 = arith.divf %131, %132 : vector<8x1xf32>
    %cst_56 = arith.constant 9.99999997E-7 : f32
    %134 = vector.broadcast %cst_56 : f32 to vector<8x1xf32>
    %135 = arith.addf %133, %134 : vector<8x1xf32>
    %136 = math.rsqrt %135 : vector<8x1xf32>
    %137 = vector.broadcast %136 : vector<8x1xf32> to vector<8x128xf32>
    %138 = arith.mulf %128, %137 : vector<8x128xf32>
    %139 = vector.extract_strided_slice %104 {offsets = [0, 0], sizes = [1, 128], strides = [1, 1]} : vector<4x128xf32> to vector<1x128xf32>
    %140 = vector.broadcast %139 : vector<1x128xf32> to vector<8x128xf32>
    %141 = arith.mulf %138, %140 : vector<8x128xf32>
    %142 = vector.extract_strided_slice %104 {offsets = [1, 0], sizes = [1, 128], strides = [1, 1]} : vector<4x128xf32> to vector<1x128xf32>
    %143 = vector.broadcast %142 : vector<1x128xf32> to vector<8x128xf32>
    %144 = arith.addf %141, %143 : vector<8x128xf32>
    %145 = vector.extract_strided_slice %104 {offsets = [2, 0], sizes = [1, 128], strides = [1, 1]} : vector<4x128xf32> to vector<1x128xf32>
    %146 = vector.broadcast %145 : vector<1x128xf32> to vector<8x128xf32>
    %147 = arith.mulf %138, %146 : vector<8x128xf32>
    %148 = vector.extract_strided_slice %104 {offsets = [3, 0], sizes = [1, 128], strides = [1, 1]} : vector<4x128xf32> to vector<1x128xf32>
    %149 = vector.broadcast %148 : vector<1x128xf32> to vector<8x128xf32>
    %150 = arith.addf %147, %149 : vector<8x128xf32>
    %151 = arith.truncf %144 : vector<8x128xf32> to vector<8x128xbf16>
    %cst_57 = arith.constant dense<0.000000e+00> : vector<8x512xf32>
    %152 = tpu.matmul %151, %107, %cst_57 {dimension_numbers = #tpu.dot_dimension_numbers<[1], [0], [0], [1], [0, 0, 1, 1], [], []>} : vector<8x128xbf16>, vector<128x512xbf16>, vector<8x512xf32> -> vector<8x512xf32>
    %153 = arith.truncf %101 : vector<8x128xf32> to vector<8x128xbf16>
    %cst_58 = arith.constant dense<0.000000e+00> : vector<8x512xf32>
    %154 = tpu.matmul %153, %110, %cst_58 {dimension_numbers = #tpu.dot_dimension_numbers<[1], [0], [0], [1], [0, 0, 1, 1], [], []>} : vector<8x128xbf16>, vector<128x512xbf16>, vector<8x512xf32> -> vector<8x512xf32>
    %155 = arith.addf %152, %154 : vector<8x512xf32>
    %156 = vector.broadcast %113 : vector<1x512xf32> to vector<8x512xf32>
    %157 = arith.addf %155, %156 : vector<8x512xf32>
    %158 = vector.extract_strided_slice %157 {offsets = [0, 384], sizes = [8, 128], strides = [1, 1]} : vector<8x512xf32> to vector<8x128xf32>
    %159 = math.tanh %158 : vector<8x128xf32>
    %160 = vector.extract_strided_slice %157 {offsets = [0, 0], sizes = [8, 384], strides = [1, 1]} : vector<8x512xf32> to vector<8x384xf32>
    %161 = arith.negf %160 : vector<8x384xf32>
    %162 = math.exp %161 : vector<8x384xf32>
    %cst_59 = arith.constant 1.000000e+00 : f32
    %163 = vector.broadcast %cst_59 : f32 to vector<8x384xf32>
    %164 = arith.addf %163, %162 : vector<8x384xf32>
    %165 = arith.divf %163, %164 : vector<8x384xf32>
    %166 = vector.extract_strided_slice %165 {offsets = [0, 0], sizes = [8, 128], strides = [1, 1]} : vector<8x384xf32> to vector<8x128xf32>
    %167 = vector.extract_strided_slice %165 {offsets = [0, 128], sizes = [8, 128], strides = [1, 1]} : vector<8x384xf32> to vector<8x128xf32>
    %168 = vector.extract_strided_slice %165 {offsets = [0, 256], sizes = [8, 128], strides = [1, 1]} : vector<8x384xf32> to vector<8x128xf32>
    %169 = arith.mulf %167, %98 : vector<8x128xf32>
    %170 = arith.mulf %166, %159 : vector<8x128xf32>
    %171 = arith.addf %169, %170 : vector<8x128xf32>
    %172 = math.tanh %171 : vector<8x128xf32>
    %173 = arith.mulf %168, %172 : vector<8x128xf32>
    %174 = arith.truncf %150 : vector<8x128xf32> to vector<8x128xbf16>
    %cst_60 = arith.constant dense<0.000000e+00> : vector<8x512xf32>
    %175 = tpu.matmul %174, %119, %cst_60 {dimension_numbers = #tpu.dot_dimension_numbers<[1], [0], [0], [1], [0, 0, 1, 1], [], []>} : vector<8x128xbf16>, vector<128x512xbf16>, vector<8x512xf32> -> vector<8x512xf32>
    %cst_61 = arith.constant 0.000000e+00 : f32
    %176 = vector.broadcast %cst_61 : f32 to vector<8x512xf32>
    %177 = arith.maximumf %175, %176 : vector<8x512xf32>
    %178 = arith.truncf %177 : vector<8x512xf32> to vector<8x512xbf16>
    %cst_62 = arith.constant dense<0.000000e+00> : vector<8x128xf32>
    %179 = tpu.matmul %178, %122, %cst_62 {dimension_numbers = #tpu.dot_dimension_numbers<[1], [0], [0], [1], [0, 0, 1, 1], [], []>} : vector<8x512xbf16>, vector<512x128xbf16>, vector<8x128xf32> -> vector<8x128xf32>
    %180 = arith.truncf %173 : vector<8x128xf32> to vector<8x128xbf16>
    %cst_63 = arith.constant dense<0.000000e+00> : vector<8x128xf32>
    %181 = tpu.matmul %180, %116, %cst_63 {dimension_numbers = #tpu.dot_dimension_numbers<[1], [0], [0], [1], [0, 0, 1, 1], [], []>} : vector<8x128xbf16>, vector<128x128xbf16>, vector<8x128xf32> -> vector<8x128xf32>
    %182 = arith.addf %179, %181 : vector<8x128xf32>
    %183 = arith.index_cast %c1_i32 : i32 to index
    %c0_64 = arith.constant 0 : index
    %c0_65 = arith.constant 0 : index
    %184 = vector.load %arg10[%183, %c0_64, %c0_65] : memref<3x8x128xf32, #tpu.memory_space<vmem>>, vector<1x8x128xf32>
    %185 = vector.shape_cast %184 : vector<1x8x128xf32> to vector<8x128xf32>
    %186 = vector.shape_cast %171 : vector<8x128xf32> to vector<1x8x128xf32>
    tpu.vector_store %arg10[%183, %c0_64, %c0_65], %186 {strides = array<i32>} : memref<3x8x128xf32, #tpu.memory_space<vmem>>, vector<1x8x128xf32>,
    %187 = arith.index_cast %c1_i32 : i32 to index
    %c0_66 = arith.constant 0 : index
    %c0_67 = arith.constant 0 : index
    %188 = vector.load %arg11[%187, %c0_66, %c0_67] : memref<3x8x128xf32, #tpu.memory_space<vmem>>, vector<1x8x128xf32>
    %189 = vector.shape_cast %188 : vector<1x8x128xf32> to vector<8x128xf32>
    %190 = vector.shape_cast %173 : vector<8x128xf32> to vector<1x8x128xf32>
    tpu.vector_store %arg11[%187, %c0_66, %c0_67], %190 {strides = array<i32>} : memref<3x8x128xf32, #tpu.memory_space<vmem>>, vector<1x8x128xf32>,
    %c2_i32 = arith.constant 2 : i32
    %191 = arith.index_cast %c2_i32 : i32 to index
    %c0_68 = arith.constant 0 : index
    %c0_69 = arith.constant 0 : index
    %192 = vector.load %arg1[%191, %c0_68, %c0_69] : memref<3x8x128xf32, #tpu.memory_space<vmem>>, vector<1x8x128xf32>
    %193 = vector.shape_cast %192 : vector<1x8x128xf32> to vector<8x128xf32>
    %194 = arith.index_cast %c2_i32 : i32 to index
    %c0_70 = arith.constant 0 : index
    %c0_71 = arith.constant 0 : index
    %195 = vector.load %arg2[%194, %c0_70, %c0_71] : memref<3x8x128xf32, #tpu.memory_space<vmem>>, vector<1x8x128xf32>
    %196 = vector.shape_cast %195 : vector<1x8x128xf32> to vector<8x128xf32>
    %197 = arith.index_cast %c2_i32 : i32 to index
    %c0_72 = arith.constant 0 : index
    %c0_73 = arith.constant 0 : index
    %198 = vector.load %arg9[%197, %c0_72, %c0_73] : memref<3x4x128xf32, #tpu.memory_space<vmem>>, vector<1x4x128xf32>
    %199 = vector.shape_cast %198 : vector<1x4x128xf32> to vector<4x128xf32>
    %200 = arith.index_cast %c2_i32 : i32 to index
    %c0_74 = arith.constant 0 : index
    %c0_75 = arith.constant 0 : index
    %201 = vector.load %arg3[%200, %c0_74, %c0_75] : memref<3x128x512xbf16, #tpu.memory_space<vmem>>, vector<1x128x512xbf16>
    %202 = vector.shape_cast %201 : vector<1x128x512xbf16> to vector<128x512xbf16>
    %203 = arith.index_cast %c2_i32 : i32 to index
    %c0_76 = arith.constant 0 : index
    %c0_77 = arith.constant 0 : index
    %204 = vector.load %arg4[%203, %c0_76, %c0_77] : memref<3x128x512xbf16, #tpu.memory_space<vmem>>, vector<1x128x512xbf16>
    %205 = vector.shape_cast %204 : vector<1x128x512xbf16> to vector<128x512xbf16>
    %206 = arith.index_cast %c2_i32 : i32 to index
    %c0_78 = arith.constant 0 : index
    %c0_79 = arith.constant 0 : index
    %207 = vector.load %arg5[%206, %c0_78, %c0_79] : memref<3x1x512xf32, #tpu.memory_space<vmem>>, vector<1x1x512xf32>
    %208 = vector.shape_cast %207 : vector<1x1x512xf32> to vector<1x512xf32>
    %209 = arith.index_cast %c2_i32 : i32 to index
    %c0_80 = arith.constant 0 : index
    %c0_81 = arith.constant 0 : index
    %210 = vector.load %arg6[%209, %c0_80, %c0_81] : memref<3x128x128xbf16, #tpu.memory_space<vmem>>, vector<1x128x128xbf16>
    %211 = vector.shape_cast %210 : vector<1x128x128xbf16> to vector<128x128xbf16>
    %212 = arith.index_cast %c2_i32 : i32 to index
    %c0_82 = arith.constant 0 : index
    %c0_83 = arith.constant 0 : index
    %213 = vector.load %arg7[%212, %c0_82, %c0_83] : memref<3x128x512xbf16, #tpu.memory_space<vmem>>, vector<1x128x512xbf16>
    %214 = vector.shape_cast %213 : vector<1x128x512xbf16> to vector<128x512xbf16>
    %215 = arith.index_cast %c2_i32 : i32 to index
    %c0_84 = arith.constant 0 : index
    %c0_85 = arith.constant 0 : index
    %216 = vector.load %arg8[%215, %c0_84, %c0_85] : memref<3x512x128xbf16, #tpu.memory_space<vmem>>, vector<1x512x128xbf16>
    %217 = vector.shape_cast %216 : vector<1x512x128xbf16> to vector<512x128xbf16>
    %cst_86 = arith.constant dense<0.000000e+00> : vector<8xf32>
    %218 = vector.multi_reduction <add>, %182, %cst_86 [1] : vector<8x128xf32> to vector<8xf32>
    %219 = vector.shape_cast %218 : vector<8xf32> to vector<8x1xf32>
    %cst_87 = arith.constant 1.280000e+02 : f32
    %220 = vector.broadcast %cst_87 : f32 to vector<8x1xf32>
    %221 = arith.divf %219, %220 : vector<8x1xf32>
    %222 = vector.broadcast %221 : vector<8x1xf32> to vector<8x128xf32>
    %223 = arith.subf %182, %222 : vector<8x128xf32>
    %224 = arith.mulf %223, %223 : vector<8x128xf32>
    %cst_88 = arith.constant dense<0.000000e+00> : vector<8xf32>
    %225 = vector.multi_reduction <add>, %224, %cst_88 [1] : vector<8x128xf32> to vector<8xf32>
    %226 = vector.shape_cast %225 : vector<8xf32> to vector<8x1xf32>
    %cst_89 = arith.constant 1.280000e+02 : f32
    %227 = vector.broadcast %cst_89 : f32 to vector<8x1xf32>
    %228 = arith.divf %226, %227 : vector<8x1xf32>
    %cst_90 = arith.constant 9.99999997E-7 : f32
    %229 = vector.broadcast %cst_90 : f32 to vector<8x1xf32>
    %230 = arith.addf %228, %229 : vector<8x1xf32>
    %231 = math.rsqrt %230 : vector<8x1xf32>
    %232 = vector.broadcast %231 : vector<8x1xf32> to vector<8x128xf32>
    %233 = arith.mulf %223, %232 : vector<8x128xf32>
    %234 = vector.extract_strided_slice %199 {offsets = [0, 0], sizes = [1, 128], strides = [1, 1]} : vector<4x128xf32> to vector<1x128xf32>
    %235 = vector.broadcast %234 : vector<1x128xf32> to vector<8x128xf32>
    %236 = arith.mulf %233, %235 : vector<8x128xf32>
    %237 = vector.extract_strided_slice %199 {offsets = [1, 0], sizes = [1, 128], strides = [1, 1]} : vector<4x128xf32> to vector<1x128xf32>
    %238 = vector.broadcast %237 : vector<1x128xf32> to vector<8x128xf32>
    %239 = arith.addf %236, %238 : vector<8x128xf32>
    %240 = vector.extract_strided_slice %199 {offsets = [2, 0], sizes = [1, 128], strides = [1, 1]} : vector<4x128xf32> to vector<1x128xf32>
    %241 = vector.broadcast %240 : vector<1x128xf32> to vector<8x128xf32>
    %242 = arith.mulf %233, %241 : vector<8x128xf32>
    %243 = vector.extract_strided_slice %199 {offsets = [3, 0], sizes = [1, 128], strides = [1, 1]} : vector<4x128xf32> to vector<1x128xf32>
    %244 = vector.broadcast %243 : vector<1x128xf32> to vector<8x128xf32>
    %245 = arith.addf %242, %244 : vector<8x128xf32>
    %246 = arith.truncf %239 : vector<8x128xf32> to vector<8x128xbf16>
    %cst_91 = arith.constant dense<0.000000e+00> : vector<8x512xf32>
    %247 = tpu.matmul %246, %202, %cst_91 {dimension_numbers = #tpu.dot_dimension_numbers<[1], [0], [0], [1], [0, 0, 1, 1], [], []>} : vector<8x128xbf16>, vector<128x512xbf16>, vector<8x512xf32> -> vector<8x512xf32>
    %248 = arith.truncf %196 : vector<8x128xf32> to vector<8x128xbf16>
    %cst_92 = arith.constant dense<0.000000e+00> : vector<8x512xf32>
    %249 = tpu.matmul %248, %205, %cst_92 {dimension_numbers = #tpu.dot_dimension_numbers<[1], [0], [0], [1], [0, 0, 1, 1], [], []>} : vector<8x128xbf16>, vector<128x512xbf16>, vector<8x512xf32> -> vector<8x512xf32>
    %250 = arith.addf %247, %249 : vector<8x512xf32>
    %251 = vector.broadcast %208 : vector<1x512xf32> to vector<8x512xf32>
    %252 = arith.addf %250, %251 : vector<8x512xf32>
    %253 = vector.extract_strided_slice %252 {offsets = [0, 384], sizes = [8, 128], strides = [1, 1]} : vector<8x512xf32> to vector<8x128xf32>
    %254 = math.tanh %253 : vector<8x128xf32>
    %255 = vector.extract_strided_slice %252 {offsets = [0, 0], sizes = [8, 384], strides = [1, 1]} : vector<8x512xf32> to vector<8x384xf32>
    %256 = arith.negf %255 : vector<8x384xf32>
    %257 = math.exp %256 : vector<8x384xf32>
    %cst_93 = arith.constant 1.000000e+00 : f32
    %258 = vector.broadcast %cst_93 : f32 to vector<8x384xf32>
    %259 = arith.addf %258, %257 : vector<8x384xf32>
    %260 = arith.divf %258, %259 : vector<8x384xf32>
    %261 = vector.extract_strided_slice %260 {offsets = [0, 0], sizes = [8, 128], strides = [1, 1]} : vector<8x384xf32> to vector<8x128xf32>
    %262 = vector.extract_strided_slice %260 {offsets = [0, 128], sizes = [8, 128], strides = [1, 1]} : vector<8x384xf32> to vector<8x128xf32>
    %263 = vector.extract_strided_slice %260 {offsets = [0, 256], sizes = [8, 128], strides = [1, 1]} : vector<8x384xf32> to vector<8x128xf32>
    %264 = arith.mulf %262, %193 : vector<8x128xf32>
    %265 = arith.mulf %261, %254 : vector<8x128xf32>
    %266 = arith.addf %264, %265 : vector<8x128xf32>
    %267 = math.tanh %266 : vector<8x128xf32>
    %268 = arith.mulf %263, %267 : vector<8x128xf32>
    %269 = arith.truncf %245 : vector<8x128xf32> to vector<8x128xbf16>
    %cst_94 = arith.constant dense<0.000000e+00> : vector<8x512xf32>
    %270 = tpu.matmul %269, %214, %cst_94 {dimension_numbers = #tpu.dot_dimension_numbers<[1], [0], [0], [1], [0, 0, 1, 1], [], []>} : vector<8x128xbf16>, vector<128x512xbf16>, vector<8x512xf32> -> vector<8x512xf32>
    %cst_95 = arith.constant 0.000000e+00 : f32
    %271 = vector.broadcast %cst_95 : f32 to vector<8x512xf32>
    %272 = arith.maximumf %270, %271 : vector<8x512xf32>
    %273 = arith.truncf %272 : vector<8x512xf32> to vector<8x512xbf16>
    %cst_96 = arith.constant dense<0.000000e+00> : vector<8x128xf32>
    %274 = tpu.matmul %273, %217, %cst_96 {dimension_numbers = #tpu.dot_dimension_numbers<[1], [0], [0], [1], [0, 0, 1, 1], [], []>} : vector<8x512xbf16>, vector<512x128xbf16>, vector<8x128xf32> -> vector<8x128xf32>
    %275 = arith.truncf %268 : vector<8x128xf32> to vector<8x128xbf16>
    %cst_97 = arith.constant dense<0.000000e+00> : vector<8x128xf32>
    %276 = tpu.matmul %275, %211, %cst_97 {dimension_numbers = #tpu.dot_dimension_numbers<[1], [0], [0], [1], [0, 0, 1, 1], [], []>} : vector<8x128xbf16>, vector<128x128xbf16>, vector<8x128xf32> -> vector<8x128xf32>
    %277 = arith.addf %274, %276 : vector<8x128xf32>
    %278 = arith.index_cast %c2_i32 : i32 to index
    %c0_98 = arith.constant 0 : index
    %c0_99 = arith.constant 0 : index
    %279 = vector.load %arg10[%278, %c0_98, %c0_99] : memref<3x8x128xf32, #tpu.memory_space<vmem>>, vector<1x8x128xf32>
    %280 = vector.shape_cast %279 : vector<1x8x128xf32> to vector<8x128xf32>
    %281 = vector.shape_cast %266 : vector<8x128xf32> to vector<1x8x128xf32>
    tpu.vector_store %arg10[%278, %c0_98, %c0_99], %281 {strides = array<i32>} : memref<3x8x128xf32, #tpu.memory_space<vmem>>, vector<1x8x128xf32>,
    %282 = arith.index_cast %c2_i32 : i32 to index
    %c0_100 = arith.constant 0 : index
    %c0_101 = arith.constant 0 : index
    %283 = vector.load %arg11[%282, %c0_100, %c0_101] : memref<3x8x128xf32, #tpu.memory_space<vmem>>, vector<1x8x128xf32>
    %284 = vector.shape_cast %283 : vector<1x8x128xf32> to vector<8x128xf32>
    %285 = vector.shape_cast %268 : vector<8x128xf32> to vector<1x8x128xf32>
    tpu.vector_store %arg11[%282, %c0_100, %c0_101], %285 {strides = array<i32>} : memref<3x8x128xf32, #tpu.memory_space<vmem>>, vector<1x8x128xf32>,
    %c3_i32 = arith.constant 3 : i32
    %c0_102 = arith.constant 0 : index
    %c0_103 = arith.constant 0 : index
    %286 = vector.load %arg12[%c0_102, %c0_103] : memref<8x128xf32, #tpu.memory_space<vmem>>, vector<8x128xf32>
    tpu.vector_store %arg12[%c0_102, %c0_103], %277 {strides = array<i32>} : memref<8x128xf32, #tpu.memory_space<vmem>>, vector<8x128xf32>,
    return
  }
}

</mosaic_0001>

<llo_original>
// kernel: tpu_custom_call.1
$region0: #{tpu_custom_call.1}
  #allocation0 [shape = 'u32[]', space=smem, size = 0x4, offset = 0x4, fixed_abs, tag = 'smem constant byte address 0x4 - core index']
  #allocation1 [shape = 'u32[144,128]{1,0:T(1,128)}', space=vmem, size = 0x12000, scoped, tag = 'internal scratch']
  %s0 = inlined_call_operand.vmem [shape: f32[8,128], index: 0, kind: input, shape index: {}]
  %s1 = inlined_call_operand.hbm [shape: f32[3,8,128], index: 1, kind: input, shape index: {}, may-alias: {1,10}]
  %s2 = inlined_call_operand.hbm [shape: f32[3,8,128], index: 2, kind: input, shape index: {}, may-alias: {2,11}]
  %s3 = inlined_call_operand.hbm [shape: bf16[3,128,512], index: 3, kind: input, shape index: {}]
  %s4 = inlined_call_operand.hbm [shape: bf16[3,128,512], index: 4, kind: input, shape index: {}]
  %s5 = inlined_call_operand.vmem [shape: f32[3,1,512], index: 5, kind: input, shape index: {}]
  %s6 = inlined_call_operand.hbm [shape: bf16[3,128,128], index: 6, kind: input, shape index: {}]
  %s7 = inlined_call_operand.hbm [shape: bf16[3,128,512], index: 7, kind: input, shape index: {}]
  %s8 = inlined_call_operand.hbm [shape: bf16[3,512,128], index: 8, kind: input, shape index: {}]
  %s9 = inlined_call_operand.vmem [shape: f32[3,4,128], index: 9, kind: input, shape index: {}]
  %s10 = inlined_call_operand.hbm [shape: f32[3,8,128], index: 10, kind: output, shape index: {0}, may-alias: {1,10}]
  %s11 = inlined_call_operand.hbm [shape: f32[3,8,128], index: 11, kind: output, shape index: {1}, may-alias: {2,11}]
  %s12 = inlined_call_operand.hbm [shape: f32[8,128], index: 12, kind: output, shape index: {2}]
  %13 = xla_tuple %s10, %s11, %s12
  %s14 = sld [smem:[#allocation0]]
  $region94: #{tpu_custom_call.1} parent=0
    _
  %s16 = ssub.s32 1, %s14
  %s17 = scalar_select 0, %s16, %s14
  $region1: #{tpu_custom_call.1} parent=0
    #allocation2 [shape = 'u8[12288]{0}', space=vmem, size = 0x3000, scoped, tag = 'input window, operand 1, single buffered']
    #allocation3 [shape = 's32[1]{0}', space=sflag, size = 0x4, scoped, tag = 'scoped memory for tpu_custom_call.1']
    #allocation4 [shape = 's32[1]{0}', space=sflag, size = 0x4, scoped, tag = 'scoped memory for tpu_custom_call.1']
    #allocation5 [shape = 'u8[12288]{0}', space=vmem, size = 0x3000, scoped, tag = 'input window, operand 2, single buffered']
    #allocation6 [shape = 's32[1]{0}', space=sflag, size = 0x4, scoped, tag = 'scoped memory for tpu_custom_call.1']
    #allocation7 [shape = 'u8[393216]{0}', space=vmem, size = 0x60000, scoped, tag = 'input window, operand 3, single buffered']
    #allocation8 [shape = 'u8[393216]{0}', space=vmem, size = 0x60000, scoped, tag = 'input window, operand 4, single buffered']
    #allocation9 [shape = 's32[1]{0}', space=sflag, size = 0x4, scoped, tag = 'scoped memory for tpu_custom_call.1']
    #allocation10 [shape = 'u8[98304]{0}', space=vmem, size = 0x18000, scoped, tag = 'input window, operand 6, single buffered']
    #allocation11 [shape = 'u8[393216]{0}', space=vmem, size = 0x60000, scoped, tag = 'input window, operand 7, single buffered']
    #allocation12 [shape = 's32[1]{0}', space=sflag, size = 0x4, scoped, tag = 'scoped memory for tpu_custom_call.1']
    #allocation13 [shape = 'u8[393216]{0}', space=vmem, size = 0x60000, scoped, tag = 'input window, operand 8, single buffered']
    #allocation14 [shape = 'u8[12288]{0}', space=vmem, size = 0x3000, scoped, tag = 'output window, operand 0, single buffered']
    #allocation15 [shape = 'u8[12288]{0}', space=vmem, size = 0x3000, scoped, tag = 'output window, operand 1, single buffered']
    #allocation16 [shape = 's32[1]{0}', space=sflag, size = 0x4, scoped, tag = 'scoped memory for tpu_custom_call.1']
    #allocation17 [shape = 'u8[4096]{0}', space=vmem, size = 0x1000, scoped, tag = 'output window, operand 2, single buffered']
    %18 = vsyncpa [#allocation3], 0
    %19 = vsyncpa [#allocation6], 0
    %20 = vsyncpa [#allocation9], 0
    %21 = vsyncpa [#allocation12], 0
    %22 = vsyncpa [#allocation4], 0
    %23 = vsyncpa [#allocation16], 0
    // Predicated region
    $region2: #{tpu_custom_call.1} parent=1 // pred_check
      _
    $region3: #{tpu_custom_call.1} parent=1 // pred_check_branch
      %25 = sbr.rel (0) target = $region5
    $region4: #{tpu_custom_call.1} parent=1 // pred_region
      _
    $region5: #{tpu_custom_call.1} parent=1 // pred_fallthru
      _
    // Predicated region
    $region6: #{tpu_custom_call.1} parent=1 // pred_check
      _
    $region7: #{tpu_custom_call.1} parent=1 // pred_check_branch
      %27 = sbr.rel (0) target = $region9
    $region8: #{tpu_custom_call.1} parent=1 // pred_region
      %s29 = ssub.s32 384, 384
      %30 = vsyncadd [#allocation3], %s29
      %s31 = sshll.u32 [#allocation2], 4
      %s32 = int_to_ptr.vmem [resolvable:$true] %s31
      %37 = dma.hbm_to_vmem [thread:$0]  %s1, 384, %s32, [#allocation3], 128, 128, 8
    $region9: #{tpu_custom_call.1} parent=1 // pred_fallthru
      _
    // Predicated region
    $region10: #{tpu_custom_call.1} parent=1 // pred_check
      _
    $region11: #{tpu_custom_call.1} parent=1 // pred_check_branch
      %39 = sbr.rel (0) target = $region13
    $region12: #{tpu_custom_call.1} parent=1 // pred_region
      %s41 = ssub.s32 384, 384
      %42 = vsyncadd [#allocation6], %s41
      %s43 = sshll.u32 [#allocation5], 4
      %s44 = int_to_ptr.vmem [resolvable:$true] %s43
      %49 = dma.hbm_to_vmem [thread:$0]  %s2, 384, %s44, [#allocation6], 128, 128, 8
    $region13: #{tpu_custom_call.1} parent=1 // pred_fallthru
      _
    // Predicated region
    $region14: #{tpu_custom_call.1} parent=1 // pred_check
      _
    $region15: #{tpu_custom_call.1} parent=1 // pred_check_branch
      %51 = sbr.rel (0) target = $region17
    $region16: #{tpu_custom_call.1} parent=1 // pred_region
      %s53 = ssub.s32 12288, 12288
      %54 = vsyncadd [#allocation6], %s53
      %s55 = sshll.u32 [#allocation7], 4
      %s56 = int_to_ptr.vmem [resolvable:$true] %s55
      %61 = dma.hbm_to_vmem [thread:$0]  %s3, 12288, %s56, [#allocation6], 256, 256, 16
    $region17: #{tpu_custom_call.1} parent=1 // pred_fallthru
      _
    // Predicated region
    $region18: #{tpu_custom_call.1} parent=1 // pred_check
      _
    $region19: #{tpu_custom_call.1} parent=1 // pred_check_branch
      %63 = sbr.rel (0) target = $region21
    $region20: #{tpu_custom_call.1} parent=1 // pred_region
      %s65 = ssub.s32 12288, 12288
      %66 = vsyncadd [#allocation9], %s65
      %s67 = sshll.u32 [#allocation8], 4
      %s68 = int_to_ptr.vmem [resolvable:$true] %s67
      %73 = dma.hbm_to_vmem [thread:$0]  %s4, 12288, %s68, [#allocation9], 256, 256, 16
    $region21: #{tpu_custom_call.1} parent=1 // pred_fallthru
      _
    // Predicated region
    $region22: #{tpu_custom_call.1} parent=1 // pred_check
      _
    $region23: #{tpu_custom_call.1} parent=1 // pred_check_branch
      %75 = sbr.rel (0) target = $region25
    $region24: #{tpu_custom_call.1} parent=1 // pred_region
      _
    $region25: #{tpu_custom_call.1} parent=1 // pred_fallthru
      _
    // Predicated region
    $region26: #{tpu_custom_call.1} parent=1 // pred_check
      _
    $region27: #{tpu_custom_call.1} parent=1 // pred_check_branch
      %77 = sbr.rel (0) target = $region29
    $region28: #{tpu_custom_call.1} parent=1 // pred_region
      %s79 = ssub.s32 3072, 3072
      %80 = vsyncadd [#allocation9], %s79
      %s81 = sshll.u32 [#allocation10], 4
      %s82 = int_to_ptr.vmem [resolvable:$true] %s81
      %87 = dma.hbm_to_vmem [thread:$0]  %s6, 3072, %s82, [#allocation9], 64, 64, 4
    $region29: #{tpu_custom_call.1} parent=1 // pred_fallthru
      _
    // Predicated region
    $region30: #{tpu_custom_call.1} parent=1 // pred_check
      _
    $region31: #{tpu_custom_call.1} parent=1 // pred_check_branch
      %89 = sbr.rel (0) target = $region33
    $region32: #{tpu_custom_call.1} parent=1 // pred_region
      %s91 = ssub.s32 12288, 12288
      %92 = vsyncadd [#allocation12], %s91
      %s93 = sshll.u32 [#allocation11], 4
      %s94 = int_to_ptr.vmem [resolvable:$true] %s93
      %99 = dma.hbm_to_vmem [thread:$0]  %s7, 12288, %s94, [#allocation12], 256, 256, 16
    $region33: #{tpu_custom_call.1} parent=1 // pred_fallthru
      _
    // Predicated region
    $region34: #{tpu_custom_call.1} parent=1 // pred_check
      _
    $region35: #{tpu_custom_call.1} parent=1 // pred_check_branch
      %101 = sbr.rel (0) target = $region37
    $region36: #{tpu_custom_call.1} parent=1 // pred_region
      %s103 = ssub.s32 12288, 12288
      %104 = vsyncadd [#allocation12], %s103
      %s105 = sshll.u32 [#allocation13], 4
      %s106 = int_to_ptr.vmem [resolvable:$true] %s105
      %111 = dma.hbm_to_vmem [thread:$0]  %s8, 12288, %s106, [#allocation12], 64, 64, 4
    $region37: #{tpu_custom_call.1} parent=1 // pred_fallthru
      _
    // Predicated region
    $region38: #{tpu_custom_call.1} parent=1 // pred_check
      _
    $region39: #{tpu_custom_call.1} parent=1 // pred_check_branch
      %113 = sbr.rel (0) target = $region41
    $region40: #{tpu_custom_call.1} parent=1 // pred_region
      _
    $region41: #{tpu_custom_call.1} parent=1 // pred_fallthru
      _
    // Predicated region
    $region42: #{tpu_custom_call.1} parent=1 // pred_check
      _
    $region43: #{tpu_custom_call.1} parent=1 // pred_check_branch
      %115 = sbr.rel (0) target = $region45
    $region44: #{tpu_custom_call.1} parent=1 // pred_region
      %116 = dma.done [#allocation3], 384
    $region45: #{tpu_custom_call.1} parent=1 // pred_fallthru
      _
    // Predicated region
    $region46: #{tpu_custom_call.1} parent=1 // pred_check
      _
    $region47: #{tpu_custom_call.1} parent=1 // pred_check_branch
      %118 = sbr.rel (0) target = $region49
    $region48: #{tpu_custom_call.1} parent=1 // pred_region
      %119 = dma.done [#allocation6], 384
    $region49: #{tpu_custom_call.1} parent=1 // pred_fallthru
      _
    // Predicated region
    $region50: #{tpu_custom_call.1} parent=1 // pred_check
      _
    $region51: #{tpu_custom_call.1} parent=1 // pred_check_branch
      %121 = sbr.rel (0) target = $region53
    $region52: #{tpu_custom_call.1} parent=1 // pred_region
      %122 = dma.done [#allocation6], 12288
    $region53: #{tpu_custom_call.1} parent=1 // pred_fallthru
      _
    // Predicated region
    $region54: #{tpu_custom_call.1} parent=1 // pred_check
      _
    $region55: #{tpu_custom_call.1} parent=1 // pred_check_branch
      %124 = sbr.rel (0) target = $region57
    $region56: #{tpu_custom_call.1} parent=1 // pred_region
      %125 = dma.done [#allocation9], 12288
    $region57: #{tpu_custom_call.1} parent=1 // pred_fallthru
      _
    // Predicated region
    $region58: #{tpu_custom_call.1} parent=1 // pred_check
      _
    $region59: #{tpu_custom_call.1} parent=1 // pred_check_branch
      %127 = sbr.rel (0) target = $region61
    $region60: #{tpu_custom_call.1} parent=1 // pred_region
      %128 = dma.done [#allocation9], 3072
    $region61: #{tpu_custom_call.1} parent=1 // pred_fallthru
      _
    // Predicated region
    $region62: #{tpu_custom_call.1} parent=1 // pred_check
      _
    $region63: #{tpu_custom_call.1} parent=1 // pred_check_branch
      %130 = sbr.rel (0) target = $region65
    $region64: #{tpu_custom_call.1} parent=1 // pred_region
      %131 = dma.done [#allocation12], 12288
    $region65: #{tpu_custom_call.1} parent=1 // pred_fallthru
      _
    // Predicated region
    $region66: #{tpu_custom_call.1} parent=1 // pred_check
      _
    $region67: #{tpu_custom_call.1} parent=1 // pred_check_branch
      %133 = sbr.rel (0) target = $region69
    $region68: #{tpu_custom_call.1} parent=1 // pred_region
      %134 = dma.done [#allocation12], 12288
    $region69: #{tpu_custom_call.1} parent=1 // pred_fallthru
      _
    %v136 = vld [vmem:[%s0] sm:$0xff]
    %v137 = vld [vmem:[#allocation2] sm:$0xff]
    %v138 = vld [vmem:[#allocation5] sm:$0xff]
    %v139 = vld [vmem:[%s9] sm:$0xf]
    %v140 = vld [vmem:[#allocation7] sm:$0xff]
    %v141 = vld [vmem:[#allocation7 + $0x8] sm:$0xff]
    %v142 = vld [vmem:[#allocation7 + $0x10] sm:$0xff]
    %v143 = vld [vmem:[#allocation7 + $0x18] sm:$0xff]
    %v144 = vld [vmem:[#allocation7 + $0x20] sm:$0xff]
    %v145 = vld [vmem:[#allocation7 + $0x28] sm:$0xff]
    %v146 = vld [vmem:[#allocation7 + $0x30] sm:$0xff]
    %v147 = vld [vmem:[#allocation7 + $0x38] sm:$0xff]
    %v148 = vld [vmem:[#allocation7 + $0x40] sm:$0xff]
    %v149 = vld [vmem:[#allocation7 + $0x48] sm:$0xff]
    %v150 = vld [vmem:[#allocation7 + $0x50] sm:$0xff]
    %v151 = vld [vmem:[#allocation7 + $0x58] sm:$0xff]
    %v152 = vld [vmem:[#allocation7 + $0x60] sm:$0xff]
    %v153 = vld [vmem:[#allocation7 + $0x68] sm:$0xff]
    %v154 = vld [vmem:[#allocation7 + $0x70] sm:$0xff]
    %v155 = vld [vmem:[#allocation7 + $0x78] sm:$0xff]
    %v156 = vld [vmem:[#allocation7 + $0x80] sm:$0xff]
    %v157 = vld [vmem:[#allocation7 + $0x88] sm:$0xff]
    %v158 = vld [vmem:[#allocation7 + $0x90] sm:$0xff]
    %v159 = vld [vmem:[#allocation7 + $0x98] sm:$0xff]
    %v160 = vld [vmem:[#allocation7 + $0xa0] sm:$0xff]
    %v161 = vld [vmem:[#allocation7 + $0xa8] sm:$0xff]
    %v162 = vld [vmem:[#allocation7 + $0xb0] sm:$0xff]
    %v163 = vld [vmem:[#allocation7 + $0xb8] sm:$0xff]
    %v164 = vld [vmem:[#allocation7 + $0xc0] sm:$0xff]
    %v165 = vld [vmem:[#allocation7 + $0xc8] sm:$0xff]
    %v166 = vld [vmem:[#allocation7 + $0xd0] sm:$0xff]
    %v167 = vld [vmem:[#allocation7 + $0xd8] sm:$0xff]
    %v168 = vld [vmem:[#allocation7 + $0xe0] sm:$0xff]
    %v169 = vld [vmem:[#allocation7 + $0xe8] sm:$0xff]
    %v170 = vld [vmem:[#allocation7 + $0xf0] sm:$0xff]
    %v171 = vld [vmem:[#allocation7 + $0xf8] sm:$0xff]
    %v172 = vld [vmem:[#allocation8] sm:$0xff]
    %v173 = vld [vmem:[#allocation8 + $0x8] sm:$0xff]
    %v174 = vld [vmem:[#allocation8 + $0x10] sm:$0xff]
    %v175 = vld [vmem:[#allocation8 + $0x18] sm:$0xff]
    %v176 = vld [vmem:[#allocation8 + $0x20] sm:$0xff]
    %v177 = vld [vmem:[#allocation8 + $0x28] sm:$0xff]
    %v178 = vld [vmem:[#allocation8 + $0x30] sm:$0xff]
    %v179 = vld [vmem:[#allocation8 + $0x38] sm:$0xff]
    %v180 = vld [vmem:[#allocation8 + $0x40] sm:$0xff]
    %v181 = vld [vmem:[#allocation8 + $0x48] sm:$0xff]
    %v182 = vld [vmem:[#allocation8 + $0x50] sm:$0xff]
    %v183 = vld [vmem:[#allocation8 + $0x58] sm:$0xff]
    %v184 = vld [vmem:[#allocation8 + $0x60] sm:$0xff]
    %v185 = vld [vmem:[#allocation8 + $0x68] sm:$0xff]
    %v186 = vld [vmem:[#allocation8 + $0x70] sm:$0xff]
    %v187 = vld [vmem:[#allocation8 + $0x78] sm:$0xff]
    %v188 = vld [vmem:[#allocation8 + $0x80] sm:$0xff]
    %v189 = vld [vmem:[#allocation8 + $0x88] sm:$0xff]
    %v190 = vld [vmem:[#allocation8 + $0x90] sm:$0xff]
    %v191 = vld [vmem:[#allocation8 + $0x98] sm:$0xff]
    %v192 = vld [vmem:[#allocation8 + $0xa0] sm:$0xff]
    %v193 = vld [vmem:[#allocation8 + $0xa8] sm:$0xff]
    %v194 = vld [vmem:[#allocation8 + $0xb0] sm:$0xff]
    %v195 = vld [vmem:[#allocation8 + $0xb8] sm:$0xff]
    %v196 = vld [vmem:[#allocation8 + $0xc0] sm:$0xff]
    %v197 = vld [vmem:[#allocation8 + $0xc8] sm:$0xff]
    %v198 = vld [vmem:[#allocation8 + $0xd0] sm:$0xff]
    %v199 = vld [vmem:[#allocation8 + $0xd8] sm:$0xff]
    %v200 = vld [vmem:[#allocation8 + $0xe0] sm:$0xff]
    %v201 = vld [vmem:[#allocation8 + $0xe8] sm:$0xff]
    %v202 = vld [vmem:[#allocation8 + $0xf0] sm:$0xff]
    %v203 = vld [vmem:[#allocation8 + $0xf8] sm:$0xff]
    %v204 = vld [vmem:[%s5] sm:$0xf]
    %v205 = vld [vmem:[#allocation10] sm:$0xf]
    %v206 = vld [vmem:[#allocation10 + $0x4] sm:$0xf]
    %v207 = vld [vmem:[#allocation10 + $0x8] sm:$0xf]
    %v208 = vld [vmem:[#allocation10 + $0xc] sm:$0xf]
    %v209 = vld [vmem:[#allocation10 + $0x10] sm:$0xf]
    %v210 = vld [vmem:[#allocation10 + $0x14] sm:$0xf]
    %v211 = vld [vmem:[#allocation10 + $0x18] sm:$0xf]
    %v212 = vld [vmem:[#allocation10 + $0x1c] sm:$0xf]
    %v213 = vld [vmem:[#allocation10 + $0x20] sm:$0xf]
    %v214 = vld [vmem:[#allocation10 + $0x24] sm:$0xf]
    %v215 = vld [vmem:[#allocation10 + $0x28] sm:$0xf]
    %v216 = vld [vmem:[#allocation10 + $0x2c] sm:$0xf]
    %v217 = vld [vmem:[#allocation10 + $0x30] sm:$0xf]
    %v218 = vld [vmem:[#allocation10 + $0x34] sm:$0xf]
    %v219 = vld [vmem:[#allocation10 + $0x38] sm:$0xf]
    %v220 = vld [vmem:[#allocation10 + $0x3c] sm:$0xf]
    %v221 = vld [vmem:[#allocation11] sm:$0xff]
    %v222 = vld [vmem:[#allocation11 + $0x8] sm:$0xff]
    %v223 = vld [vmem:[#allocation11 + $0x10] sm:$0xff]
    %v224 = vld [vmem:[#allocation11 + $0x18] sm:$0xff]
    %v225 = vld [vmem:[#allocation11 + $0x20] sm:$0xff]
    %v226 = vld [vmem:[#allocation11 + $0x28] sm:$0xff]
    %v227 = vld [vmem:[#allocation11 + $0x30] sm:$0xff]
    %v228 = vld [vmem:[#allocation11 + $0x38] sm:$0xff]
    %v229 = vld [vmem:[#allocation11 + $0x40] sm:$0xff]
    %v230 = vld [vmem:[#allocation11 + $0x48] sm:$0xff]
    %v231 = vld [vmem:[#allocation11 + $0x50] sm:$0xff]
    %v232 = vld [vmem:[#allocation11 + $0x58] sm:$0xff]
    %v233 = vld [vmem:[#allocation11 + $0x60] sm:$0xff]
    %v234 = vld [vmem:[#allocation11 + $0x68] sm:$0xff]
    %v235 = vld [vmem:[#allocation11 + $0x70] sm:$0xff]
    %v236 = vld [vmem:[#allocation11 + $0x78] sm:$0xff]
    %v237 = vld [vmem:[#allocation11 + $0x80] sm:$0xff]
    %v238 = vld [vmem:[#allocation11 + $0x88] sm:$0xff]
    %v239 = vld [vmem:[#allocation11 + $0x90] sm:$0xff]
    %v240 = vld [vmem:[#allocation11 + $0x98] sm:$0xff]
    %v241 = vld [vmem:[#allocation11 + $0xa0] sm:$0xff]
    %v242 = vld [vmem:[#allocation11 + $0xa8] sm:$0xff]
    %v243 = vld [vmem:[#allocation11 + $0xb0] sm:$0xff]
    %v244 = vld [vmem:[#allocation11 + $0xb8] sm:$0xff]
    %v245 = vld [vmem:[#allocation11 + $0xc0] sm:$0xff]
    %v246 = vld [vmem:[#allocation11 + $0xc8] sm:$0xff]
    %v247 = vld [vmem:[#allocation11 + $0xd0] sm:$0xff]
    %v248 = vld [vmem:[#allocation11 + $0xd8] sm:$0xff]
    %v249 = vld [vmem:[#allocation11 + $0xe0] sm:$0xff]
    %v250 = vld [vmem:[#allocation11 + $0xe8] sm:$0xff]
    %v251 = vld [vmem:[#allocation11 + $0xf0] sm:$0xff]
    %v252 = vld [vmem:[#allocation11 + $0xf8] sm:$0xff]
    %v253 = vld [vmem:[#allocation13] sm:$0xf]
    %v254 = vld [vmem:[#allocation13 + $0x4] sm:$0xf]
    %v255 = vld [vmem:[#allocation13 + $0x8] sm:$0xf]
    %v256 = vld [vmem:[#allocation13 + $0xc] sm:$0xf]
    %v257 = vld [vmem:[#allocation13 + $0x10] sm:$0xf]
    %v258 = vld [vmem:[#allocation13 + $0x14] sm:$0xf]
    %v259 = vld [vmem:[#allocation13 + $0x18] sm:$0xf]
    %v260 = vld [vmem:[#allocation13 + $0x1c] sm:$0xf]
    %v261 = vld [vmem:[#allocation13 + $0x20] sm:$0xf]
    %v262 = vld [vmem:[#allocation13 + $0x24] sm:$0xf]
    %v263 = vld [vmem:[#allocation13 + $0x28] sm:$0xf]
    %v264 = vld [vmem:[#allocation13 + $0x2c] sm:$0xf]
    %v265 = vld [vmem:[#allocation13 + $0x30] sm:$0xf]
    %v266 = vld [vmem:[#allocation13 + $0x34] sm:$0xf]
    %v267 = vld [vmem:[#allocation13 + $0x38] sm:$0xf]
    %v268 = vld [vmem:[#allocation13 + $0x3c] sm:$0xf]
    %v269 = vld [vmem:[#allocation13 + $0x40] sm:$0xf]
    %v270 = vld [vmem:[#allocation13 + $0x44] sm:$0xf]
    %v271 = vld [vmem:[#allocation13 + $0x48] sm:$0xf]
    %v272 = vld [vmem:[#allocation13 + $0x4c] sm:$0xf]
    %v273 = vld [vmem:[#allocation13 + $0x50] sm:$0xf]
    %v274 = vld [vmem:[#allocation13 + $0x54] sm:$0xf]
    %v275 = vld [vmem:[#allocation13 + $0x58] sm:$0xf]
    %v276 = vld [vmem:[#allocation13 + $0x5c] sm:$0xf]
    %v277 = vld [vmem:[#allocation13 + $0x60] sm:$0xf]
    %v278 = vld [vmem:[#allocation13 + $0x64] sm:$0xf]
    %v279 = vld [vmem:[#allocation13 + $0x68] sm:$0xf]
    %v280 = vld [vmem:[#allocation13 + $0x6c] sm:$0xf]
    %v281 = vld [vmem:[#allocation13 + $0x70] sm:$0xf]
    %v282 = vld [vmem:[#allocation13 + $0x74] sm:$0xf]
    %v283 = vld [vmem:[#allocation13 + $0x78] sm:$0xf]
    %v284 = vld [vmem:[#allocation13 + $0x7c] sm:$0xf]
    %v285 = vld [vmem:[#allocation13 + $0x80] sm:$0xf]
    %v286 = vld [vmem:[#allocation13 + $0x84] sm:$0xf]
    %v287 = vld [vmem:[#allocation13 + $0x88] sm:$0xf]
    %v288 = vld [vmem:[#allocation13 + $0x8c] sm:$0xf]
    %v289 = vld [vmem:[#allocation13 + $0x90] sm:$0xf]
    %v290 = vld [vmem:[#allocation13 + $0x94] sm:$0xf]
    %v291 = vld [vmem:[#allocation13 + $0x98] sm:$0xf]
    %v292 = vld [vmem:[#allocation13 + $0x9c] sm:$0xf]
    %v293 = vld [vmem:[#allocation13 + $0xa0] sm:$0xf]
    %v294 = vld [vmem:[#allocation13 + $0xa4] sm:$0xf]
    %v295 = vld [vmem:[#allocation13 + $0xa8] sm:$0xf]
    %v296 = vld [vmem:[#allocation13 + $0xac] sm:$0xf]
    %v297 = vld [vmem:[#allocation13 + $0xb0] sm:$0xf]
    %v298 = vld [vmem:[#allocation13 + $0xb4] sm:$0xf]
    %v299 = vld [vmem:[#allocation13 + $0xb8] sm:$0xf]
    %v300 = vld [vmem:[#allocation13 + $0xbc] sm:$0xf]
    %v301 = vld [vmem:[#allocation13 + $0xc0] sm:$0xf]
    %v302 = vld [vmem:[#allocation13 + $0xc4] sm:$0xf]
    %v303 = vld [vmem:[#allocation13 + $0xc8] sm:$0xf]
    %v304 = vld [vmem:[#allocation13 + $0xcc] sm:$0xf]
    %v305 = vld [vmem:[#allocation13 + $0xd0] sm:$0xf]
    %v306 = vld [vmem:[#allocation13 + $0xd4] sm:$0xf]
    %v307 = vld [vmem:[#allocation13 + $0xd8] sm:$0xf]
    %v308 = vld [vmem:[#allocation13 + $0xdc] sm:$0xf]
    %v309 = vld [vmem:[#allocation13 + $0xe0] sm:$0xf]
    %v310 = vld [vmem:[#allocation13 + $0xe4] sm:$0xf]
    %v311 = vld [vmem:[#allocation13 + $0xe8] sm:$0xf]
    %v312 = vld [vmem:[#allocation13 + $0xec] sm:$0xf]
    %v313 = vld [vmem:[#allocation13 + $0xf0] sm:$0xf]
    %v314 = vld [vmem:[#allocation13 + $0xf4] sm:$0xf]
    %v315 = vld [vmem:[#allocation13 + $0xf8] sm:$0xf]
    %v316 = vld [vmem:[#allocation13 + $0xfc] sm:$0xf]
    %317 = vadd.xlane.f32.xlu0 %v136
    %v318 = vpop.xlane.xlu0 %317
    %v319 = vrcp.pop 128.0
    %v320 = vmul.f32 %v318, %v319
    %v321 = vsub.f32 %v136, %v320
    %v322 = vmul.f32 %v321, %v321
    %323 = vadd.xlane.f32.xlu0 %v322
    %v324 = vpop.xlane.xlu0 %323
    %v325 = vmul.f32 %v324, %v319
    %v326 = vadd.f32 %v325, 1e-06
    %v327 = vrsqrt.pop %v326
    %v328 = vmul.f32 %v321, %v327
    %v329 = vlaneseq
    %v330 = vshrl.u32 %v329, 7
    %v331 = vsub.s32 0, %v330
    %v332 = vrot.slane %v139, %v331
    %v333 = vmul.f32 %v328, %v332
    %v334 = vlaneseq
    %v335 = vshrl.u32 %v334, 7
    %v336 = vsub.s32 1, %v335
    %v337 = vrot.slane %v139, %v336
    %v338 = vadd.f32 %v333, %v337
    %v339 = vlaneseq
    %v340 = vshrl.u32 %v339, 7
    %v341 = vsub.s32 2, %v340
    %v342 = vrot.slane %v139, %v341
    %v343 = vmul.f32 %v328, %v342
    %v344 = vlaneseq
    %v345 = vshrl.u32 %v344, 7
    %v346 = vsub.s32 3, %v345
    %v347 = vrot.slane %v139, %v346
    %v348 = vadd.f32 %v343, %v347
    %v349 = vpack.c.bf16 %v338, %v338
    %v350 = vpack.c.bf16 %v138, %v138
    %v383 = vunpack.c.l.b16 %v172
    %v384 = vunpack.c.h.b16 %v172
    %v385 = vunpack.c.l.b16 %v173
    %v386 = vunpack.c.h.b16 %v173
    %v387 = vunpack.c.l.b16 %v174
    %v388 = vunpack.c.h.b16 %v174
    %v389 = vunpack.c.l.b16 %v175
    %v390 = vunpack.c.h.b16 %v175
    %v391 = vunpack.c.l.b16 %v176
    %v392 = vunpack.c.h.b16 %v176
    %v393 = vunpack.c.l.b16 %v177
    %v394 = vunpack.c.h.b16 %v177
    %v395 = vunpack.c.l.b16 %v178
    %v396 = vunpack.c.h.b16 %v178
    %v397 = vunpack.c.l.b16 %v179
    %v398 = vunpack.c.h.b16 %v179
    %v399 = vunpack.c.l.b16 %v180
    %v400 = vunpack.c.h.b16 %v180
    %v401 = vunpack.c.l.b16 %v181
    %v402 = vunpack.c.h.b16 %v181
    %v403 = vunpack.c.l.b16 %v182
    %v404 = vunpack.c.h.b16 %v182
    %v405 = vunpack.c.l.b16 %v183
    %v406 = vunpack.c.h.b16 %v183
    %v407 = vunpack.c.l.b16 %v184
    %v408 = vunpack.c.h.b16 %v184
    %v409 = vunpack.c.l.b16 %v185
    %v410 = vunpack.c.h.b16 %v185
    %v411 = vunpack.c.l.b16 %v186
    %v412 = vunpack.c.h.b16 %v186
    %v413 = vunpack.c.l.b16 %v187
    %v414 = vunpack.c.h.b16 %v187
    %v415 = vunpack.c.l.b16 %v188
    %v416 = vunpack.c.h.b16 %v188
    %v417 = vunpack.c.l.b16 %v189
    %v418 = vunpack.c.h.b16 %v189
    %v419 = vunpack.c.l.b16 %v190
    %v420 = vunpack.c.h.b16 %v190
    %v421 = vunpack.c.l.b16 %v191
    %v422 = vunpack.c.h.b16 %v191
    %v423 = vunpack.c.l.b16 %v192
    %v424 = vunpack.c.h.b16 %v192
    %v425 = vunpack.c.l.b16 %v193
    %v426 = vunpack.c.h.b16 %v193
    %v427 = vunpack.c.l.b16 %v194
    %v428 = vunpack.c.h.b16 %v194
    %v429 = vunpack.c.l.b16 %v195
    %v430 = vunpack.c.h.b16 %v195
    %v431 = vunpack.c.l.b16 %v196
    %v432 = vunpack.c.h.b16 %v196
    %v433 = vunpack.c.l.b16 %v197
    %v434 = vunpack.c.h.b16 %v197
    %v435 = vunpack.c.l.b16 %v198
    %v436 = vunpack.c.h.b16 %v198
    %v437 = vunpack.c.l.b16 %v199
    %v438 = vunpack.c.h.b16 %v199
    %v439 = vunpack.c.l.b16 %v200
    %v440 = vunpack.c.h.b16 %v200
    %v441 = vunpack.c.l.b16 %v201
    %v442 = vunpack.c.h.b16 %v201
    %v443 = vunpack.c.l.b16 %v202
    %v444 = vunpack.c.h.b16 %v202
    %v445 = vunpack.c.l.b16 %v203
    %v446 = vunpack.c.h.b16 %v203
    %v447 = vpack.c.b16 %v387, %v383
    %v448 = vpack.c.b16 %v388, %v384
    %v449 = vpack.c.b16 %v389, %v385
    %v450 = vpack.c.b16 %v390, %v386
    %v451 = vpack.c.b16 %v395, %v391
    %v452 = vpack.c.b16 %v396, %v392
    %v453 = vpack.c.b16 %v397, %v393
    %v454 = vpack.c.b16 %v398, %v394
    %v455 = vpack.c.b16 %v403, %v399
    %v456 = vpack.c.b16 %v404, %v400
    %v457 = vpack.c.b16 %v405, %v401
    %v458 = vpack.c.b16 %v406, %v402
    %v459 = vpack.c.b16 %v411, %v407
    %v460 = vpack.c.b16 %v412, %v408
    %v461 = vpack.c.b16 %v413, %v409
    %v462 = vpack.c.b16 %v414, %v410
    %v463 = vpack.c.b16 %v419, %v415
    %v464 = vpack.c.b16 %v420, %v416
    %v465 = vpack.c.b16 %v421, %v417
    %v466 = vpack.c.b16 %v422, %v418
    %v467 = vpack.c.b16 %v427, %v423
    %v468 = vpack.c.b16 %v428, %v424
    %v469 = vpack.c.b16 %v429, %v425
    %v470 = vpack.c.b16 %v430, %v426
    %v471 = vpack.c.b16 %v435, %v431
    %v472 = vpack.c.b16 %v436, %v432
    %v473 = vpack.c.b16 %v437, %v433
    %v474 = vpack.c.b16 %v438, %v434
    %v475 = vpack.c.b16 %v443, %v439
    %v476 = vpack.c.b16 %v444, %v440
    %v477 = vpack.c.b16 %v445, %v441
    %v478 = vpack.c.b16 %v446, %v442
    %511 = vmatprep.subr.bf16.mxu0 %v448
    %512 = vmatpush1.bf16.msra.mxu0 %v447
    %513 = vmatprep.subr.bf16.mxu0 %v452
    %514 = vmatpush1.bf16.msra.mxu0 %v451
    %515 = vmatprep.subr.bf16.mxu0 %v456
    %516 = vmatpush1.bf16.msra.mxu0 %v455
    %517 = vmatprep.subr.bf16.mxu0 %v460
    %518 = vmatpush1.bf16.msra.mxu0 %v459
    %519 = vmatprep.subr.bf16.mxu0 %v464
    %520 = vmatpush1.bf16.msra.mxu0 %v463
    %521 = vmatprep.subr.bf16.mxu0 %v468
    %522 = vmatpush1.bf16.msra.mxu0 %v467
    %523 = vmatprep.subr.bf16.mxu0 %v472
    %524 = vmatpush1.bf16.msra.mxu0 %v471
    %525 = vmatprep.subr.bf16.mxu0 %v476
    %526 = vmatpush1.bf16.msra.mxu0 %v475
    %527 = vmatprep.subr.bf16.mxu0 0
    %528 = vmatpush1.bf16.msra.mxu0 0
    %529 = vmatprep.subr.bf16.mxu0 0
    %530 = vmatpush1.bf16.msra.mxu0 0
    %531 = vmatprep.subr.bf16.mxu0 0
    %532 = vmatpush1.bf16.msra.mxu0 0
    %533 = vmatprep.subr.bf16.mxu0 0
    %534 = vmatpush1.bf16.msra.mxu0 0
    %535 = vmatprep.subr.bf16.mxu0 0
    %536 = vmatpush1.bf16.msra.mxu0 0
    %537 = vmatprep.subr.bf16.mxu0 0
    %538 = vmatpush1.bf16.msra.mxu0 0
    %539 = vmatprep.subr.bf16.mxu0 0
    %540 = vmatpush1.bf16.msra.mxu0 0
    %541 = vmatprep.subr.bf16.mxu0 0
    %542 = vmatpush1.bf16.msra.mxu0 0
    %543 = vmatprep.mubr.bf16.mxu0 0
    %544 = vmatmul.mubr.bf16.gmra.mrb[0].mxu0 %v350
    %v545 = vpop.f32.mrb[0].mxu0
    %v546 = vadd.f32 0.0, %v545
    %v547 = vpop.f32.mrb[0].mxu0
    %v548 = vadd.f32 0.0, %v547
    %v549 = vpop.f32.mrb[0].mxu0
    %v550 = vpop.f32.mrb[0].mxu0
    %551 = vdwg.mxu0
    %552 = vmatprep.subr.bf16.mxu0 %v450
    %553 = vmatpush1.bf16.msra.mxu0 %v449
    %554 = vmatprep.subr.bf16.mxu0 %v454
    %555 = vmatpush1.bf16.msra.mxu0 %v453
    %556 = vmatprep.subr.bf16.mxu0 %v458
    %557 = vmatpush1.bf16.msra.mxu0 %v457
    %558 = vmatprep.subr.bf16.mxu0 %v462
    %559 = vmatpush1.bf16.msra.mxu0 %v461
    %560 = vmatprep.subr.bf16.mxu0 %v466
    %561 = vmatpush1.bf16.msra.mxu0 %v465
    %562 = vmatprep.subr.bf16.mxu0 %v470
    %563 = vmatpush1.bf16.msra.mxu0 %v469
    %564 = vmatprep.subr.bf16.mxu0 %v474
    %565 = vmatpush1.bf16.msra.mxu0 %v473
    %566 = vmatprep.subr.bf16.mxu0 %v478
    %567 = vmatpush1.bf16.msra.mxu0 %v477
    %568 = vmatprep.subr.bf16.mxu0 0
    %569 = vmatpush1.bf16.msra.mxu0 0
    %570 = vmatprep.subr.bf16.mxu0 0
    %571 = vmatpush1.bf16.msra.mxu0 0
    %572 = vmatprep.subr.bf16.mxu0 0
    %573 = vmatpush1.bf16.msra.mxu0 0
    %574 = vmatprep.subr.bf16.mxu0 0
    %575 = vmatpush1.bf16.msra.mxu0 0
    %576 = vmatprep.subr.bf16.mxu0 0
    %577 = vmatpush1.bf16.msra.mxu0 0
    %578 = vmatprep.subr.bf16.mxu0 0
    %579 = vmatpush1.bf16.msra.mxu0 0
    %580 = vmatprep.subr.bf16.mxu0 0
    %581 = vmatpush1.bf16.msra.mxu0 0
    %582 = vmatprep.subr.bf16.mxu0 0
    %583 = vmatpush1.bf16.msra.mxu0 0
    %584 = vmatprep.mubr.bf16.mxu0 0
    %585 = vmatmul.mubr.bf16.gmra.mrb[0].mxu0 %v350
    %v586 = vpop.f32.mrb[0].mxu0
    %v587 = vadd.f32 0.0, %v586
    %v588 = vpop.f32.mrb[0].mxu0
    %v589 = vadd.f32 0.0, %v588
    %v590 = vpop.f32.mrb[0].mxu0
    %v591 = vpop.f32.mrb[0].mxu0
    %592 = vdwg.mxu0
    %v625 = vunpack.c.l.b16 %v140
    %v626 = vunpack.c.h.b16 %v140
    %v627 = vunpack.c.l.b16 %v141
    %v628 = vunpack.c.h.b16 %v141
    %v629 = vunpack.c.l.b16 %v142
    %v630 = vunpack.c.h.b16 %v142
    %v631 = vunpack.c.l.b16 %v143
    %v632 = vunpack.c.h.b16 %v143
    %v633 = vunpack.c.l.b16 %v144
    %v634 = vunpack.c.h.b16 %v144
    %v635 = vunpack.c.l.b16 %v145
    %v636 = vunpack.c.h.b16 %v145
    %v637 = vunpack.c.l.b16 %v146
    %v638 = vunpack.c.h.b16 %v146
    %v639 = vunpack.c.l.b16 %v147
    %v640 = vunpack.c.h.b16 %v147
    %v641 = vunpack.c.l.b16 %v148
    %v642 = vunpack.c.h.b16 %v148
    %v643 = vunpack.c.l.b16 %v149
    %v644 = vunpack.c.h.b16 %v149
    %v645 = vunpack.c.l.b16 %v150
    %v646 = vunpack.c.h.b16 %v150
    %v647 = vunpack.c.l.b16 %v151
    %v648 = vunpack.c.h.b16 %v151
    %v649 = vunpack.c.l.b16 %v152
    %v650 = vunpack.c.h.b16 %v152
    %v651 = vunpack.c.l.b16 %v153
    %v652 = vunpack.c.h.b16 %v153
    %v653 = vunpack.c.l.b16 %v154
    %v654 = vunpack.c.h.b16 %v154
    %v655 = vunpack.c.l.b16 %v155
    %v656 = vunpack.c.h.b16 %v155
    %v657 = vunpack.c.l.b16 %v156
    %v658 = vunpack.c.h.b16 %v156
    %v659 = vunpack.c.l.b16 %v157
    %v660 = vunpack.c.h.b16 %v157
    %v661 = vunpack.c.l.b16 %v158
    %v662 = vunpack.c.h.b16 %v158
    %v663 = vunpack.c.l.b16 %v159
    %v664 = vunpack.c.h.b16 %v159
    %v665 = vunpack.c.l.b16 %v160
    %v666 = vunpack.c.h.b16 %v160
    %v667 = vunpack.c.l.b16 %v161
    %v668 = vunpack.c.h.b16 %v161
    %v669 = vunpack.c.l.b16 %v162
    %v670 = vunpack.c.h.b16 %v162
    %v671 = vunpack.c.l.b16 %v163
    %v672 = vunpack.c.h.b16 %v163
    %v673 = vunpack.c.l.b16 %v164
    %v674 = vunpack.c.h.b16 %v164
    %v675 = vunpack.c.l.b16 %v165
    %v676 = vunpack.c.h.b16 %v165
    %v677 = vunpack.c.l.b16 %v166
    %v678 = vunpack.c.h.b16 %v166
    %v679 = vunpack.c.l.b16 %v167
    %v680 = vunpack.c.h.b16 %v167
    %v681 = vunpack.c.l.b16 %v168
    %v682 = vunpack.c.h.b16 %v168
    %v683 = vunpack.c.l.b16 %v169
    %v684 = vunpack.c.h.b16 %v169
    %v685 = vunpack.c.l.b16 %v170
    %v686 = vunpack.c.h.b16 %v170
    %v687 = vunpack.c.l.b16 %v171
    %v688 = vunpack.c.h.b16 %v171
    %v689 = vpack.c.b16 %v629, %v625
    %v690 = vpack.c.b16 %v630, %v626
    %v691 = vpack.c.b16 %v631, %v627
    %v692 = vpack.c.b16 %v632, %v628
    %v693 = vpack.c.b16 %v637, %v633
    %v694 = vpack.c.b16 %v638, %v634
    %v695 = vpack.c.b16 %v639, %v635
    %v696 = vpack.c.b16 %v640, %v636
    %v697 = vpack.c.b16 %v645, %v641
    %v698 = vpack.c.b16 %v646, %v642
    %v699 = vpack.c.b16 %v647, %v643
    %v700 = vpack.c.b16 %v648, %v644
    %v701 = vpack.c.b16 %v653, %v649
    %v702 = vpack.c.b16 %v654, %v650
    %v703 = vpack.c.b16 %v655, %v651
    %v704 = vpack.c.b16 %v656, %v652
    %v705 = vpack.c.b16 %v661, %v657
    %v706 = vpack.c.b16 %v662, %v658
    %v707 = vpack.c.b16 %v663, %v659
    %v708 = vpack.c.b16 %v664, %v660
    %v709 = vpack.c.b16 %v669, %v665
    %v710 = vpack.c.b16 %v670, %v666
    %v711 = vpack.c.b16 %v671, %v667
    %v712 = vpack.c.b16 %v672, %v668
    %v713 = vpack.c.b16 %v677, %v673
    %v714 = vpack.c.b16 %v678, %v674
    %v715 = vpack.c.b16 %v679, %v675
    %v716 = vpack.c.b16 %v680, %v676
    %v717 = vpack.c.b16 %v685, %v681
    %v718 = vpack.c.b16 %v686, %v682
    %v719 = vpack.c.b16 %v687, %v683
    %v720 = vpack.c.b16 %v688, %v684
    %753 = vmatprep.subr.bf16.mxu0 %v690
    %754 = vmatpush1.bf16.msra.mxu0 %v689
    %755 = vmatprep.subr.bf16.mxu0 %v694
    %756 = vmatpush1.bf16.msra.mxu0 %v693
    %757 = vmatprep.subr.bf16.mxu0 %v698
    %758 = vmatpush1.bf16.msra.mxu0 %v697
    %759 = vmatprep.subr.bf16.mxu0 %v702
    %760 = vmatpush1.bf16.msra.mxu0 %v701
    %761 = vmatprep.subr.bf16.mxu0 %v706
    %762 = vmatpush1.bf16.msra.mxu0 %v705
    %763 = vmatprep.subr.bf16.mxu0 %v710
    %764 = vmatpush1.bf16.msra.mxu0 %v709
    %765 = vmatprep.subr.bf16.mxu0 %v714
    %766 = vmatpush1.bf16.msra.mxu0 %v713
    %767 = vmatprep.subr.bf16.mxu0 %v718
    %768 = vmatpush1.bf16.msra.mxu0 %v717
    %769 = vmatprep.subr.bf16.mxu0 0
    %770 = vmatpush1.bf16.msra.mxu0 0
    %771 = vmatprep.subr.bf16.mxu0 0
    %772 = vmatpush1.bf16.msra.mxu0 0
    %773 = vmatprep.subr.bf16.mxu0 0
    %774 = vmatpush1.bf16.msra.mxu0 0
    %775 = vmatprep.subr.bf16.mxu0 0
    %776 = vmatpush1.bf16.msra.mxu0 0
    %777 = vmatprep.subr.bf16.mxu0 0
    %778 = vmatpush1.bf16.msra.mxu0 0
    %779 = vmatprep.subr.bf16.mxu0 0
    %780 = vmatpush1.bf16.msra.mxu0 0
    %781 = vmatprep.subr.bf16.mxu0 0
    %782 = vmatpush1.bf16.msra.mxu0 0
    %783 = vmatprep.subr.bf16.mxu0 0
    %784 = vmatpush1.bf16.msra.mxu0 0
    %785 = vmatprep.mubr.bf16.mxu0 0
    %786 = vmatmul.mubr.bf16.gmra.mrb[0].mxu0 %v349
    %v787 = vpop.f32.mrb[0].mxu0
    %v788 = vadd.f32 %v546, %v787
    %v789 = vpop.f32.mrb[0].mxu0
    %v790 = vadd.f32 %v548, %v789
    %v791 = vpop.f32.mrb[0].mxu0
    %v792 = vpop.f32.mrb[0].mxu0
    %793 = vdwg.mxu0
    %794 = vmatprep.subr.bf16.mxu0 %v692
    %795 = vmatpush1.bf16.msra.mxu0 %v691
    %796 = vmatprep.subr.bf16.mxu0 %v696
    %797 = vmatpush1.bf16.msra.mxu0 %v695
    %798 = vmatprep.subr.bf16.mxu0 %v700
    %799 = vmatpush1.bf16.msra.mxu0 %v699
    %800 = vmatprep.subr.bf16.mxu0 %v704
    %801 = vmatpush1.bf16.msra.mxu0 %v703
    %802 = vmatprep.subr.bf16.mxu0 %v708
    %803 = vmatpush1.bf16.msra.mxu0 %v707
    %804 = vmatprep.subr.bf16.mxu0 %v712
    %805 = vmatpush1.bf16.msra.mxu0 %v711
    %806 = vmatprep.subr.bf16.mxu0 %v716
    %807 = vmatpush1.bf16.msra.mxu0 %v715
    %808 = vmatprep.subr.bf16.mxu0 %v720
    %809 = vmatpush1.bf16.msra.mxu0 %v719
    %810 = vmatprep.subr.bf16.mxu0 0
    %811 = vmatpush1.bf16.msra.mxu0 0
    %812 = vmatprep.subr.bf16.mxu0 0
    %813 = vmatpush1.bf16.msra.mxu0 0
    %814 = vmatprep.subr.bf16.mxu0 0
    %815 = vmatpush1.bf16.msra.mxu0 0
    %816 = vmatprep.subr.bf16.mxu0 0
    %817 = vmatpush1.bf16.msra.mxu0 0
    %818 = vmatprep.subr.bf16.mxu0 0
    %819 = vmatpush1.bf16.msra.mxu0 0
    %820 = vmatprep.subr.bf16.mxu0 0
    %821 = vmatpush1.bf16.msra.mxu0 0
    %822 = vmatprep.subr.bf16.mxu0 0
    %823 = vmatpush1.bf16.msra.mxu0 0
    %824 = vmatprep.subr.bf16.mxu0 0
    %825 = vmatpush1.bf16.msra.mxu0 0
    %826 = vmatprep.mubr.bf16.mxu0 0
    %827 = vmatmul.mubr.bf16.gmra.mrb[0].mxu0 %v349
    %v828 = vpop.f32.mrb[0].mxu0
    %v829 = vadd.f32 %v587, %v828
    %v830 = vpop.f32.mrb[0].mxu0
    %v831 = vadd.f32 %v589, %v830
    %v832 = vpop.f32.mrb[0].mxu0
    %v833 = vpop.f32.mrb[0].mxu0
    %834 = vdwg.mxu0
    %v836 = vlaneseq
    %v837 = vshrl.u32 %v836, 7
    %v838 = vsub.s32 0, %v837
    %v839 = vrot.slane %v204, %v838
    %v840 = vlaneseq
    %v841 = vshrl.u32 %v840, 7
    %v842 = vsub.s32 1, %v841
    %v843 = vrot.slane %v204, %v842
    %v844 = vlaneseq
    %v845 = vshrl.u32 %v844, 7
    %v846 = vsub.s32 2, %v845
    %v847 = vrot.slane %v204, %v846
    %v848 = vlaneseq
    %v849 = vshrl.u32 %v848, 7
    %v850 = vsub.s32 3, %v849
    %v851 = vrot.slane %v204, %v850
    %v856 = vadd.f32 %v788, %v839
    %v857 = vadd.f32 %v790, %v843
    %v858 = vadd.f32 %v829, %v847
    %v859 = vadd.f32 %v831, %v851
    %v860 = vtanh.pop %v859
    %v861 = vxor.u32 %v856, 2147483648
    %v862 = vxor.u32 %v857, 2147483648
    %v863 = vxor.u32 %v858, 2147483648
    %v864 = vmul.f32 %v861, 1.442695
    %v865 = vpow.pop %v864
    %v866 = vmul.f32 %v862, 1.442695
    %v867 = vpow.pop %v866
    %v868 = vmul.f32 %v863, 1.442695
    %v869 = vpow.pop %v868
    %v870 = vadd.f32 %v865, 1.0
    %v871 = vadd.f32 %v867, 1.0
    %v872 = vadd.f32 %v869, 1.0
    %v873 = vrcp.pop %v870
    %v874 = vmul.f32 1.0, %v873
    %v875 = vrcp.pop %v871
    %v876 = vmul.f32 1.0, %v875
    %v877 = vrcp.pop %v872
    %v878 = vmul.f32 1.0, %v877
    %v879 = vmul.f32 %v876, %v137
    %v880 = vmul.f32 %v874, %v860
    %v881 = vadd.f32 %v879, %v880
    %v882 = vtanh.pop %v881
    %v883 = vmul.f32 %v878, %v882
    %v884 = vpack.c.bf16 %v348, %v348
    %v917 = vunpack.c.l.b16 %v221
    %v918 = vunpack.c.h.b16 %v221
    %v919 = vunpack.c.l.b16 %v222
    %v920 = vunpack.c.h.b16 %v222
    %v921 = vunpack.c.l.b16 %v223
    %v922 = vunpack.c.h.b16 %v223
    %v923 = vunpack.c.l.b16 %v224
    %v924 = vunpack.c.h.b16 %v224
    %v925 = vunpack.c.l.b16 %v225
    %v926 = vunpack.c.h.b16 %v225
    %v927 = vunpack.c.l.b16 %v226
    %v928 = vunpack.c.h.b16 %v226
    %v929 = vunpack.c.l.b16 %v227
    %v930 = vunpack.c.h.b16 %v227
    %v931 = vunpack.c.l.b16 %v228
    %v932 = vunpack.c.h.b16 %v228
    %v933 = vunpack.c.l.b16 %v229
    %v934 = vunpack.c.h.b16 %v229
    %v935 = vunpack.c.l.b16 %v230
    %v936 = vunpack.c.h.b16 %v230
    %v937 = vunpack.c.l.b16 %v231
    %v938 = vunpack.c.h.b16 %v231
    %v939 = vunpack.c.l.b16 %v232
    %v940 = vunpack.c.h.b16 %v232
    %v941 = vunpack.c.l.b16 %v233
    %v942 = vunpack.c.h.b16 %v233
    %v943 = vunpack.c.l.b16 %v234
    %v944 = vunpack.c.h.b16 %v234
    %v945 = vunpack.c.l.b16 %v235
    %v946 = vunpack.c.h.b16 %v235
    %v947 = vunpack.c.l.b16 %v236
    %v948 = vunpack.c.h.b16 %v236
    %v949 = vunpack.c.l.b16 %v237
    %v950 = vunpack.c.h.b16 %v237
    %v951 = vunpack.c.l.b16 %v238
    %v952 = vunpack.c.h.b16 %v238
    %v953 = vunpack.c.l.b16 %v239
    %v954 = vunpack.c.h.b16 %v239
    %v955 = vunpack.c.l.b16 %v240
    %v956 = vunpack.c.h.b16 %v240
    %v957 = vunpack.c.l.b16 %v241
    %v958 = vunpack.c.h.b16 %v241
    %v959 = vunpack.c.l.b16 %v242
    %v960 = vunpack.c.h.b16 %v242
    %v961 = vunpack.c.l.b16 %v243
    %v962 = vunpack.c.h.b16 %v243
    %v963 = vunpack.c.l.b16 %v244
    %v964 = vunpack.c.h.b16 %v244
    %v965 = vunpack.c.l.b16 %v245
    %v966 = vunpack.c.h.b16 %v245
    %v967 = vunpack.c.l.b16 %v246
    %v968 = vunpack.c.h.b16 %v246
    %v969 = vunpack.c.l.b16 %v247
    %v970 = vunpack.c.h.b16 %v247
    %v971 = vunpack.c.l.b16 %v248
    %v972 = vunpack.c.h.b16 %v248
    %v973 = vunpack.c.l.b16 %v249
    %v974 = vunpack.c.h.b16 %v249
    %v975 = vunpack.c.l.b16 %v250
    %v976 = vunpack.c.h.b16 %v250
    %v977 = vunpack.c.l.b16 %v251
    %v978 = vunpack.c.h.b16 %v251
    %v979 = vunpack.c.l.b16 %v252
    %v980 = vunpack.c.h.b16 %v252
    %v981 = vpack.c.b16 %v921, %v917
    %v982 = vpack.c.b16 %v922, %v918
    %v983 = vpack.c.b16 %v923, %v919
    %v984 = vpack.c.b16 %v924, %v920
    %v985 = vpack.c.b16 %v929, %v925
    %v986 = vpack.c.b16 %v930, %v926
    %v987 = vpack.c.b16 %v931, %v927
    %v988 = vpack.c.b16 %v932, %v928
    %v989 = vpack.c.b16 %v937, %v933
    %v990 = vpack.c.b16 %v938, %v934
    %v991 = vpack.c.b16 %v939, %v935
    %v992 = vpack.c.b16 %v940, %v936
    %v993 = vpack.c.b16 %v945, %v941
    %v994 = vpack.c.b16 %v946, %v942
    %v995 = vpack.c.b16 %v947, %v943
    %v996 = vpack.c.b16 %v948, %v944
    %v997 = vpack.c.b16 %v953, %v949
    %v998 = vpack.c.b16 %v954, %v950
    %v999 = vpack.c.b16 %v955, %v951
    %v1000 = vpack.c.b16 %v956, %v952
    %v1001 = vpack.c.b16 %v961, %v957
    %v1002 = vpack.c.b16 %v962, %v958
    %v1003 = vpack.c.b16 %v963, %v959
    %v1004 = vpack.c.b16 %v964, %v960
    %v1005 = vpack.c.b16 %v969, %v965
    %v1006 = vpack.c.b16 %v970, %v966
    %v1007 = vpack.c.b16 %v971, %v967
    %v1008 = vpack.c.b16 %v972, %v968
    %v1009 = vpack.c.b16 %v977, %v973
    %v1010 = vpack.c.b16 %v978, %v974
    %v1011 = vpack.c.b16 %v979, %v975
    %v1012 = vpack.c.b16 %v980, %v976
    %1045 = vmatprep.subr.bf16.mxu0 %v982
    %1046 = vmatpush1.bf16.msra.mxu0 %v981
    %1047 = vmatprep.subr.bf16.mxu0 %v986
    %1048 = vmatpush1.bf16.msra.mxu0 %v985
    %1049 = vmatprep.subr.bf16.mxu0 %v990
    %1050 = vmatpush1.bf16.msra.mxu0 %v989
    %1051 = vmatprep.subr.bf16.mxu0 %v994
    %1052 = vmatpush1.bf16.msra.mxu0 %v993
    %1053 = vmatprep.subr.bf16.mxu0 %v998
    %1054 = vmatpush1.bf16.msra.mxu0 %v997
    %1055 = vmatprep.subr.bf16.mxu0 %v1002
    %1056 = vmatpush1.bf16.msra.mxu0 %v1001
    %1057 = vmatprep.subr.bf16.mxu0 %v1006
    %1058 = vmatpush1.bf16.msra.mxu0 %v1005
    %1059 = vmatprep.subr.bf16.mxu0 %v1010
    %1060 = vmatpush1.bf16.msra.mxu0 %v1009
    %1061 = vmatprep.subr.bf16.mxu0 0
    %1062 = vmatpush1.bf16.msra.mxu0 0
    %1063 = vmatprep.subr.bf16.mxu0 0
    %1064 = vmatpush1.bf16.msra.mxu0 0
    %1065 = vmatprep.subr.bf16.mxu0 0
    %1066 = vmatpush1.bf16.msra.mxu0 0
    %1067 = vmatprep.subr.bf16.mxu0 0
    %1068 = vmatpush1.bf16.msra.mxu0 0
    %1069 = vmatprep.subr.bf16.mxu0 0
    %1070 = vmatpush1.bf16.msra.mxu0 0
    %1071 = vmatprep.subr.bf16.mxu0 0
    %1072 = vmatpush1.bf16.msra.mxu0 0
    %1073 = vmatprep.subr.bf16.mxu0 0
    %1074 = vmatpush1.bf16.msra.mxu0 0
    %1075 = vmatprep.subr.bf16.mxu0 0
    %1076 = vmatpush1.bf16.msra.mxu0 0
    %1077 = vmatprep.mubr.bf16.mxu0 0
    %1078 = vmatmul.mubr.bf16.gmra.mrb[0].mxu0 %v884
    %v1079 = vpop.f32.mrb[0].mxu0
    %v1080 = vadd.f32 0.0, %v1079
    %v1081 = vpop.f32.mrb[0].mxu0
    %v1082 = vadd.f32 0.0, %v1081
    %v1083 = vpop.f32.mrb[0].mxu0
    %v1084 = vpop.f32.mrb[0].mxu0
    %1085 = vdwg.mxu0
    %1086 = vmatprep.subr.bf16.mxu0 %v984
    %1087 = vmatpush1.bf16.msra.mxu0 %v983
    %1088 = vmatprep.subr.bf16.mxu0 %v988
    %1089 = vmatpush1.bf16.msra.mxu0 %v987
    %1090 = vmatprep.subr.bf16.mxu0 %v992
    %1091 = vmatpush1.bf16.msra.mxu0 %v991
    %1092 = vmatprep.subr.bf16.mxu0 %v996
    %1093 = vmatpush1.bf16.msra.mxu0 %v995
    %1094 = vmatprep.subr.bf16.mxu0 %v1000
    %1095 = vmatpush1.bf16.msra.mxu0 %v999
    %1096 = vmatprep.subr.bf16.mxu0 %v1004
    %1097 = vmatpush1.bf16.msra.mxu0 %v1003
    %1098 = vmatprep.subr.bf16.mxu0 %v1008
    %1099 = vmatpush1.bf16.msra.mxu0 %v1007
    %1100 = vmatprep.subr.bf16.mxu0 %v1012
    %1101 = vmatpush1.bf16.msra.mxu0 %v1011
    %1102 = vmatprep.subr.bf16.mxu0 0
    %1103 = vmatpush1.bf16.msra.mxu0 0
    %1104 = vmatprep.subr.bf16.mxu0 0
    %1105 = vmatpush1.bf16.msra.mxu0 0
    %1106 = vmatprep.subr.bf16.mxu0 0
    %1107 = vmatpush1.bf16.msra.mxu0 0
    %1108 = vmatprep.subr.bf16.mxu0 0
    %1109 = vmatpush1.bf16.msra.mxu0 0
    %1110 = vmatprep.subr.bf16.mxu0 0
    %1111 = vmatpush1.bf16.msra.mxu0 0
    %1112 = vmatprep.subr.bf16.mxu0 0
    %1113 = vmatpush1.bf16.msra.mxu0 0
    %1114 = vmatprep.subr.bf16.mxu0 0
    %1115 = vmatpush1.bf16.msra.mxu0 0
    %1116 = vmatprep.subr.bf16.mxu0 0
    %1117 = vmatpush1.bf16.msra.mxu0 0
    %1118 = vmatprep.mubr.bf16.mxu0 0
    %1119 = vmatmul.mubr.bf16.gmra.mrb[0].mxu0 %v884
    %v1120 = vpop.f32.mrb[0].mxu0
    %v1121 = vadd.f32 0.0, %v1120
    %v1122 = vpop.f32.mrb[0].mxu0
    %v1123 = vadd.f32 0.0, %v1122
    %v1124 = vpop.f32.mrb[0].mxu0
    %v1125 = vpop.f32.mrb[0].mxu0
    %1126 = vdwg.mxu0
    %v1127 = vmax.f32 %v1080, 0.0
    %v1128 = vmax.f32 %v1082, 0.0
    %v1129 = vmax.f32 %v1121, 0.0
    %v1130 = vmax.f32 %v1123, 0.0
    %v1131 = vpack.c.bf16 %v1127, %v1127
    %v1132 = vpack.c.bf16 %v1128, %v1128
    %v1133 = vpack.c.bf16 %v1129, %v1129
    %v1134 = vpack.c.bf16 %v1130, %v1130
    %v1135 = vpack.c.bf16 %v883, %v883
    %v1152 = vunpack.c.l.b16 %v205
    %v1153 = vunpack.c.l.b16 %v206
    %v1154 = vunpack.c.l.b16 %v207
    %v1155 = vunpack.c.l.b16 %v208
    %v1156 = vunpack.c.l.b16 %v209
    %v1157 = vunpack.c.l.b16 %v210
    %v1158 = vunpack.c.l.b16 %v211
    %v1159 = vunpack.c.l.b16 %v212
    %v1160 = vunpack.c.l.b16 %v213
    %v1161 = vunpack.c.l.b16 %v214
    %v1162 = vunpack.c.l.b16 %v215
    %v1163 = vunpack.c.l.b16 %v216
    %v1164 = vunpack.c.l.b16 %v217
    %v1165 = vunpack.c.l.b16 %v218
    %v1166 = vunpack.c.l.b16 %v219
    %v1167 = vunpack.c.l.b16 %v220
    %v1168 = vpack.c.b16 %v1153, %v1152
    %v1169 = vpack.c.b16 %v1155, %v1154
    %v1170 = vpack.c.b16 %v1157, %v1156
    %v1171 = vpack.c.b16 %v1159, %v1158
    %v1172 = vpack.c.b16 %v1161, %v1160
    %v1173 = vpack.c.b16 %v1163, %v1162
    %v1174 = vpack.c.b16 %v1165, %v1164
    %v1175 = vpack.c.b16 %v1167, %v1166
    %1184 = vmatprep.subr.bf16.mxu0 0
    %1185 = vmatpush1.bf16.msra.mxu0 %v1168
    %1186 = vmatprep.subr.bf16.mxu0 0
    %1187 = vmatpush1.bf16.msra.mxu0 %v1169
    %1188 = vmatprep.subr.bf16.mxu0 0
    %1189 = vmatpush1.bf16.msra.mxu0 %v1170
    %1190 = vmatprep.subr.bf16.mxu0 0
    %1191 = vmatpush1.bf16.msra.mxu0 %v1171
    %1192 = vmatprep.subr.bf16.mxu0 0
    %1193 = vmatpush1.bf16.msra.mxu0 %v1172
    %1194 = vmatprep.subr.bf16.mxu0 0
    %1195 = vmatpush1.bf16.msra.mxu0 %v1173
    %1196 = vmatprep.subr.bf16.mxu0 0
    %1197 = vmatpush1.bf16.msra.mxu0 %v1174
    %1198 = vmatprep.subr.bf16.mxu0 0
    %1199 = vmatpush1.bf16.msra.mxu0 %v1175
    %1200 = vmatprep.subr.bf16.mxu0 0
    %1201 = vmatpush1.bf16.msra.mxu0 0
    %1202 = vmatprep.subr.bf16.mxu0 0
    %1203 = vmatpush1.bf16.msra.mxu0 0
    %1204 = vmatprep.subr.bf16.mxu0 0
    %1205 = vmatpush1.bf16.msra.mxu0 0
    %1206 = vmatprep.subr.bf16.mxu0 0
    %1207 = vmatpush1.bf16.msra.mxu0 0
    %1208 = vmatprep.subr.bf16.mxu0 0
    %1209 = vmatpush1.bf16.msra.mxu0 0
    %1210 = vmatprep.subr.bf16.mxu0 0
    %1211 = vmatpush1.bf16.msra.mxu0 0
    %1212 = vmatprep.subr.bf16.mxu0 0
    %1213 = vmatpush1.bf16.msra.mxu0 0
    %1214 = vmatprep.subr.bf16.mxu0 0
    %1215 = vmatpush1.bf16.msra.mxu0 0
    %1216 = vmatprep.mubr.bf16.mxu0 0
    %1217 = vmatmul.mubr.bf16.gmra.mrb[0].mxu0 %v1135
    %v1218 = vpop.f32.mrb[0].mxu0
    %v1219 = vadd.f32 0.0, %v1218
    %v1220 = vpop.f32.mrb[0].mxu0
    %v1221 = vpop.f32.mrb[0].mxu0
    %v1222 = vpop.f32.mrb[0].mxu0
    %1223 = vdwg.mxu0
    %v1288 = vunpack.c.l.b16 %v253
    %v1289 = vunpack.c.l.b16 %v254
    %v1290 = vunpack.c.l.b16 %v255
    %v1291 = vunpack.c.l.b16 %v256
    %v1292 = vunpack.c.l.b16 %v257
    %v1293 = vunpack.c.l.b16 %v258
    %v1294 = vunpack.c.l.b16 %v259
    %v1295 = vunpack.c.l.b16 %v260
    %v1296 = vunpack.c.l.b16 %v261
    %v1297 = vunpack.c.l.b16 %v262
    %v1298 = vunpack.c.l.b16 %v263
    %v1299 = vunpack.c.l.b16 %v264
    %v1300 = vunpack.c.l.b16 %v265
    %v1301 = vunpack.c.l.b16 %v266
    %v1302 = vunpack.c.l.b16 %v267
    %v1303 = vunpack.c.l.b16 %v268
    %v1304 = vunpack.c.l.b16 %v269
    %v1305 = vunpack.c.l.b16 %v270
    %v1306 = vunpack.c.l.b16 %v271
    %v1307 = vunpack.c.l.b16 %v272
    %v1308 = vunpack.c.l.b16 %v273
    %v1309 = vunpack.c.l.b16 %v274
    %v1310 = vunpack.c.l.b16 %v275
    %v1311 = vunpack.c.l.b16 %v276
    %v1312 = vunpack.c.l.b16 %v277
    %v1313 = vunpack.c.l.b16 %v278
    %v1314 = vunpack.c.l.b16 %v279
    %v1315 = vunpack.c.l.b16 %v280
    %v1316 = vunpack.c.l.b16 %v281
    %v1317 = vunpack.c.l.b16 %v282
    %v1318 = vunpack.c.l.b16 %v283
    %v1319 = vunpack.c.l.b16 %v284
    %v1320 = vunpack.c.l.b16 %v285
    %v1321 = vunpack.c.l.b16 %v286
    %v1322 = vunpack.c.l.b16 %v287
    %v1323 = vunpack.c.l.b16 %v288
    %v1324 = vunpack.c.l.b16 %v289
    %v1325 = vunpack.c.l.b16 %v290
    %v1326 = vunpack.c.l.b16 %v291
    %v1327 = vunpack.c.l.b16 %v292
    %v1328 = vunpack.c.l.b16 %v293
    %v1329 = vunpack.c.l.b16 %v294
    %v1330 = vunpack.c.l.b16 %v295
    %v1331 = vunpack.c.l.b16 %v296
    %v1332 = vunpack.c.l.b16 %v297
    %v1333 = vunpack.c.l.b16 %v298
    %v1334 = vunpack.c.l.b16 %v299
    %v1335 = vunpack.c.l.b16 %v300
    %v1336 = vunpack.c.l.b16 %v301
    %v1337 = vunpack.c.l.b16 %v302
    %v1338 = vunpack.c.l.b16 %v303
    %v1339 = vunpack.c.l.b16 %v304
    %v1340 = vunpack.c.l.b16 %v305
    %v1341 = vunpack.c.l.b16 %v306
    %v1342 = vunpack.c.l.b16 %v307
    %v1343 = vunpack.c.l.b16 %v308
    %v1344 = vunpack.c.l.b16 %v309
    %v1345 = vunpack.c.l.b16 %v310
    %v1346 = vunpack.c.l.b16 %v311
    %v1347 = vunpack.c.l.b16 %v312
    %v1348 = vunpack.c.l.b16 %v313
    %v1349 = vunpack.c.l.b16 %v314
    %v1350 = vunpack.c.l.b16 %v315
    %v1351 = vunpack.c.l.b16 %v316
    %v1352 = vpack.c.b16 %v1289, %v1288
    %v1353 = vpack.c.b16 %v1291, %v1290
    %v1354 = vpack.c.b16 %v1293, %v1292
    %v1355 = vpack.c.b16 %v1295, %v1294
    %v1356 = vpack.c.b16 %v1297, %v1296
    %v1357 = vpack.c.b16 %v1299, %v1298
    %v1358 = vpack.c.b16 %v1301, %v1300
    %v1359 = vpack.c.b16 %v1303, %v1302
    %v1360 = vpack.c.b16 %v1305, %v1304
    %v1361 = vpack.c.b16 %v1307, %v1306
    %v1362 = vpack.c.b16 %v1309, %v1308
    %v1363 = vpack.c.b16 %v1311, %v1310
    %v1364 = vpack.c.b16 %v1313, %v1312
    %v1365 = vpack.c.b16 %v1315, %v1314
    %v1366 = vpack.c.b16 %v1317, %v1316
    %v1367 = vpack.c.b16 %v1319, %v1318
    %v1368 = vpack.c.b16 %v1321, %v1320
    %v1369 = vpack.c.b16 %v1323, %v1322
    %v1370 = vpack.c.b16 %v1325, %v1324
    %v1371 = vpack.c.b16 %v1327, %v1326
    %v1372 = vpack.c.b16 %v1329, %v1328
    %v1373 = vpack.c.b16 %v1331, %v1330
    %v1374 = vpack.c.b16 %v1333, %v1332
    %v1375 = vpack.c.b16 %v1335, %v1334
    %v1376 = vpack.c.b16 %v1337, %v1336
    %v1377 = vpack.c.b16 %v1339, %v1338
    %v1378 = vpack.c.b16 %v1341, %v1340
    %v1379 = vpack.c.b16 %v1343, %v1342
    %v1380 = vpack.c.b16 %v1345, %v1344
    %v1381 = vpack.c.b16 %v1347, %v1346
    %v1382 = vpack.c.b16 %v1349, %v1348
    %v1383 = vpack.c.b16 %v1351, %v1350
    %1416 = vmatprep.subr.bf16.mxu0 0
    %1417 = vmatpush1.bf16.msra.mxu0 %v1352
    %1418 = vmatprep.subr.bf16.mxu0 0
    %1419 = vmatpush1.bf16.msra.mxu0 %v1353
    %1420 = vmatprep.subr.bf16.mxu0 0
    %1421 = vmatpush1.bf16.msra.mxu0 %v1354
    %1422 = vmatprep.subr.bf16.mxu0 0
    %1423 = vmatpush1.bf16.msra.mxu0 %v1355
    %1424 = vmatprep.subr.bf16.mxu0 0
    %1425 = vmatpush1.bf16.msra.mxu0 %v1356
    %1426 = vmatprep.subr.bf16.mxu0 0
    %1427 = vmatpush1.bf16.msra.mxu0 %v1357
    %1428 = vmatprep.subr.bf16.mxu0 0
    %1429 = vmatpush1.bf16.msra.mxu0 %v1358
    %1430 = vmatprep.subr.bf16.mxu0 0
    %1431 = vmatpush1.bf16.msra.mxu0 %v1359
    %1432 = vmatprep.subr.bf16.mxu0 0
    %1433 = vmatpush1.bf16.msra.mxu0 %v1360
    %1434 = vmatprep.subr.bf16.mxu0 0
    %1435 = vmatpush1.bf16.msra.mxu0 %v1361
    %1436 = vmatprep.subr.bf16.mxu0 0
    %1437 = vmatpush1.bf16.msra.mxu0 %v1362
    %1438 = vmatprep.subr.bf16.mxu0 0
    %1439 = vmatpush1.bf16.msra.mxu0 %v1363
    %1440 = vmatprep.subr.bf16.mxu0 0
    %1441 = vmatpush1.bf16.msra.mxu0 %v1364
    %1442 = vmatprep.subr.bf16.mxu0 0
    %1443 = vmatpush1.bf16.msra.mxu0 %v1365
    %1444 = vmatprep.subr.bf16.mxu0 0
    %1445 = vmatpush1.bf16.msra.mxu0 %v1366
    %1446 = vmatprep.subr.bf16.mxu0 0
    %1447 = vmatpush1.bf16.msra.mxu0 %v1367
    %1448 = vmatprep.mubr.bf16.mxu0 %v1132
    %1449 = vmatmul.mubr.bf16.gmra.mrb[0].mxu0 %v1131
    %v1450 = vpop.f32.mrb[0].mxu0
    %v1451 = vadd.f32 %v1219, %v1450
    %v1452 = vpop.f32.mrb[0].mxu0
    %v1453 = vpop.f32.mrb[0].mxu0
    %v1454 = vpop.f32.mrb[0].mxu0
    %1455 = vdwg.mxu0
    %1456 = vmatprep.subr.bf16.mxu0 0
    %1457 = vmatpush1.bf16.msra.mxu0 %v1368
    %1458 = vmatprep.subr.bf16.mxu0 0
    %1459 = vmatpush1.bf16.msra.mxu0 %v1369
    %1460 = vmatprep.subr.bf16.mxu0 0
    %1461 = vmatpush1.bf16.msra.mxu0 %v1370
    %1462 = vmatprep.subr.bf16.mxu0 0
    %1463 = vmatpush1.bf16.msra.mxu0 %v1371
    %1464 = vmatprep.subr.bf16.mxu0 0
    %1465 = vmatpush1.bf16.msra.mxu0 %v1372
    %1466 = vmatprep.subr.bf16.mxu0 0
    %1467 = vmatpush1.bf16.msra.mxu0 %v1373
    %1468 = vmatprep.subr.bf16.mxu0 0
    %1469 = vmatpush1.bf16.msra.mxu0 %v1374
    %1470 = vmatprep.subr.bf16.mxu0 0
    %1471 = vmatpush1.bf16.msra.mxu0 %v1375
    %1472 = vmatprep.subr.bf16.mxu0 0
    %1473 = vmatpush1.bf16.msra.mxu0 %v1376
    %1474 = vmatprep.subr.bf16.mxu0 0
    %1475 = vmatpush1.bf16.msra.mxu0 %v1377
    %1476 = vmatprep.subr.bf16.mxu0 0
    %1477 = vmatpush1.bf16.msra.mxu0 %v1378
    %1478 = vmatprep.subr.bf16.mxu0 0
    %1479 = vmatpush1.bf16.msra.mxu0 %v1379
    %1480 = vmatprep.subr.bf16.mxu0 0
    %1481 = vmatpush1.bf16.msra.mxu0 %v1380
    %1482 = vmatprep.subr.bf16.mxu0 0
    %1483 = vmatpush1.bf16.msra.mxu0 %v1381
    %1484 = vmatprep.subr.bf16.mxu0 0
    %1485 = vmatpush1.bf16.msra.mxu0 %v1382
    %1486 = vmatprep.subr.bf16.mxu0 0
    %1487 = vmatpush1.bf16.msra.mxu0 %v1383
    %1488 = vmatprep.mubr.bf16.mxu0 %v1134
    %1489 = vmatmul.mubr.bf16.gmra.mrb[0].mxu0 %v1133
    %v1490 = vpop.f32.mrb[0].mxu0
    %v1491 = vadd.f32 %v1451, %v1490
    %v1492 = vpop.f32.mrb[0].mxu0
    %v1493 = vpop.f32.mrb[0].mxu0
    %v1494 = vpop.f32.mrb[0].mxu0
    %1495 = vdwg.mxu0
    %1496 = vst [vmem:[#allocation14] sm:$0xff] %v881
    %1497 = vst [vmem:[#allocation15] sm:$0xff] %v883
    %s1498 = scalar_lea.vmem [#allocation2], 8
    %v1499 = vld [vmem:[%s1498] sm:$0xff]
    %s1500 = scalar_lea.vmem [#allocation5], 8
    %v1501 = vld [vmem:[%s1500] sm:$0xff]
    %s1502 = scalar_lea.vmem %s9, 4
    %v1503 = vld [vmem:[%s1502] sm:$0xf]
    %s1504 = scalar_lea.vmem [#allocation7], 256
    %v1505 = vld [vmem:[%s1504] sm:$0xff]
    %v1506 = vld [vmem:[%s1504 + $0x8] sm:$0xff]
    %v1507 = vld [vmem:[%s1504 + $0x10] sm:$0xff]
    %v1508 = vld [vmem:[%s1504 + $0x18] sm:$0xff]
    %v1509 = vld [vmem:[%s1504 + $0x20] sm:$0xff]
    %v1510 = vld [vmem:[%s1504 + $0x28] sm:$0xff]
    %v1511 = vld [vmem:[%s1504 + $0x30] sm:$0xff]
    %v1512 = vld [vmem:[%s1504 + $0x38] sm:$0xff]
    %v1513 = vld [vmem:[%s1504 + $0x40] sm:$0xff]
    %v1514 = vld [vmem:[%s1504 + $0x48] sm:$0xff]
    %v1515 = vld [vmem:[%s1504 + $0x50] sm:$0xff]
    %v1516 = vld [vmem:[%s1504 + $0x58] sm:$0xff]
    %v1517 = vld [vmem:[%s1504 + $0x60] sm:$0xff]
    %v1518 = vld [vmem:[%s1504 + $0x68] sm:$0xff]
    %v1519 = vld [vmem:[%s1504 + $0x70] sm:$0xff]
    %v1520 = vld [vmem:[%s1504 + $0x78] sm:$0xff]
    %v1521 = vld [vmem:[%s1504 + $0x80] sm:$0xff]
    %v1522 = vld [vmem:[%s1504 + $0x88] sm:$0xff]
    %v1523 = vld [vmem:[%s1504 + $0x90] sm:$0xff]
    %v1524 = vld [vmem:[%s1504 + $0x98] sm:$0xff]
    %v1525 = vld [vmem:[%s1504 + $0xa0] sm:$0xff]
    %v1526 = vld [vmem:[%s1504 + $0xa8] sm:$0xff]
    %v1527 = vld [vmem:[%s1504 + $0xb0] sm:$0xff]
    %v1528 = vld [vmem:[%s1504 + $0xb8] sm:$0xff]
    %v1529 = vld [vmem:[%s1504 + $0xc0] sm:$0xff]
    %v1530 = vld [vmem:[%s1504 + $0xc8] sm:$0xff]
    %v1531 = vld [vmem:[%s1504 + $0xd0] sm:$0xff]
    %v1532 = vld [vmem:[%s1504 + $0xd8] sm:$0xff]
    %v1533 = vld [vmem:[%s1504 + $0xe0] sm:$0xff]
    %v1534 = vld [vmem:[%s1504 + $0xe8] sm:$0xff]
    %v1535 = vld [vmem:[%s1504 + $0xf0] sm:$0xff]
    %v1536 = vld [vmem:[%s1504 + $0xf8] sm:$0xff]
    %s1537 = scalar_lea.vmem [#allocation8], 256
    %v1538 = vld [vmem:[%s1537] sm:$0xff]
    %v1539 = vld [vmem:[%s1537 + $0x8] sm:$0xff]
    %v1540 = vld [vmem:[%s1537 + $0x10] sm:$0xff]
    %v1541 = vld [vmem:[%s1537 + $0x18] sm:$0xff]
    %v1542 = vld [vmem:[%s1537 + $0x20] sm:$0xff]
    %v1543 = vld [vmem:[%s1537 + $0x28] sm:$0xff]
    %v1544 = vld [vmem:[%s1537 + $0x30] sm:$0xff]
    %v1545 = vld [vmem:[%s1537 + $0x38] sm:$0xff]
    %v1546 = vld [vmem:[%s1537 + $0x40] sm:$0xff]
    %v1547 = vld [vmem:[%s1537 + $0x48] sm:$0xff]
    %v1548 = vld [vmem:[%s1537 + $0x50] sm:$0xff]
    %v1549 = vld [vmem:[%s1537 + $0x58] sm:$0xff]
    %v1550 = vld [vmem:[%s1537 + $0x60] sm:$0xff]
    %v1551 = vld [vmem:[%s1537 + $0x68] sm:$0xff]
    %v1552 = vld [vmem:[%s1537 + $0x70] sm:$0xff]
    %v1553 = vld [vmem:[%s1537 + $0x78] sm:$0xff]
    %v1554 = vld [vmem:[%s1537 + $0x80] sm:$0xff]
    %v1555 = vld [vmem:[%s1537 + $0x88] sm:$0xff]
    %v1556 = vld [vmem:[%s1537 + $0x90] sm:$0xff]
    %v1557 = vld [vmem:[%s1537 + $0x98] sm:$0xff]
    %v1558 = vld [vmem:[%s1537 + $0xa0] sm:$0xff]
    %v1559 = vld [vmem:[%s1537 + $0xa8] sm:$0xff]
    %v1560 = vld [vmem:[%s1537 + $0xb0] sm:$0xff]
    %v1561 = vld [vmem:[%s1537 + $0xb8] sm:$0xff]
    %v1562 = vld [vmem:[%s1537 + $0xc0] sm:$0xff]
    %v1563 = vld [vmem:[%s1537 + $0xc8] sm:$0xff]
    %v1564 = vld [vmem:[%s1537 + $0xd0] sm:$0xff]
    %v1565 = vld [vmem:[%s1537 + $0xd8] sm:$0xff]
    %v1566 = vld [vmem:[%s1537 + $0xe0] sm:$0xff]
    %v1567 = vld [vmem:[%s1537 + $0xe8] sm:$0xff]
    %v1568 = vld [vmem:[%s1537 + $0xf0] sm:$0xff]
    %v1569 = vld [vmem:[%s1537 + $0xf8] sm:$0xff]
    %s1570 = scalar_lea.vmem %s5, 4
    %v1571 = vld [vmem:[%s1570] sm:$0xf]
    %s1572 = scalar_lea.vmem [#allocation10], 64
    %v1573 = vld [vmem:[%s1572] sm:$0xf]
    %v1574 = vld [vmem:[%s1572 + $0x4] sm:$0xf]
    %v1575 = vld [vmem:[%s1572 + $0x8] sm:$0xf]
    %v1576 = vld [vmem:[%s1572 + $0xc] sm:$0xf]
    %v1577 = vld [vmem:[%s1572 + $0x10] sm:$0xf]
    %v1578 = vld [vmem:[%s1572 + $0x14] sm:$0xf]
    %v1579 = vld [vmem:[%s1572 + $0x18] sm:$0xf]
    %v1580 = vld [vmem:[%s1572 + $0x1c] sm:$0xf]
    %v1581 = vld [vmem:[%s1572 + $0x20] sm:$0xf]
    %v1582 = vld [vmem:[%s1572 + $0x24] sm:$0xf]
    %v1583 = vld [vmem:[%s1572 + $0x28] sm:$0xf]
    %v1584 = vld [vmem:[%s1572 + $0x2c] sm:$0xf]
    %v1585 = vld [vmem:[%s1572 + $0x30] sm:$0xf]
    %v1586 = vld [vmem:[%s1572 + $0x34] sm:$0xf]
    %v1587 = vld [vmem:[%s1572 + $0x38] sm:$0xf]
    %v1588 = vld [vmem:[%s1572 + $0x3c] sm:$0xf]
    %s1589 = scalar_lea.vmem [#allocation11], 256
    %v1590 = vld [vmem:[%s1589] sm:$0xff]
    %v1591 = vld [vmem:[%s1589 + $0x8] sm:$0xff]
    %v1592 = vld [vmem:[%s1589 + $0x10] sm:$0xff]
    %v1593 = vld [vmem:[%s1589 + $0x18] sm:$0xff]
    %v1594 = vld [vmem:[%s1589 + $0x20] sm:$0xff]
    %v1595 = vld [vmem:[%s1589 + $0x28] sm:$0xff]
    %v1596 = vld [vmem:[%s1589 + $0x30] sm:$0xff]
    %v1597 = vld [vmem:[%s1589 + $0x38] sm:$0xff]
    %v1598 = vld [vmem:[%s1589 + $0x40] sm:$0xff]
    %v1599 = vld [vmem:[%s1589 + $0x48] sm:$0xff]
    %v1600 = vld [vmem:[%s1589 + $0x50] sm:$0xff]
    %v1601 = vld [vmem:[%s1589 + $0x58] sm:$0xff]
    %v1602 = vld [vmem:[%s1589 + $0x60] sm:$0xff]
    %v1603 = vld [vmem:[%s1589 + $0x68] sm:$0xff]
    %v1604 = vld [vmem:[%s1589 + $0x70] sm:$0xff]
    %v1605 = vld [vmem:[%s1589 + $0x78] sm:$0xff]
    %v1606 = vld [vmem:[%s1589 + $0x80] sm:$0xff]
    %v1607 = vld [vmem:[%s1589 + $0x88] sm:$0xff]
    %v1608 = vld [vmem:[%s1589 + $0x90] sm:$0xff]
    %v1609 = vld [vmem:[%s1589 + $0x98] sm:$0xff]
    %v1610 = vld [vmem:[%s1589 + $0xa0] sm:$0xff]
    %v1611 = vld [vmem:[%s1589 + $0xa8] sm:$0xff]
    %v1612 = vld [vmem:[%s1589 + $0xb0] sm:$0xff]
    %v1613 = vld [vmem:[%s1589 + $0xb8] sm:$0xff]
    %v1614 = vld [vmem:[%s1589 + $0xc0] sm:$0xff]
    %v1615 = vld [vmem:[%s1589 + $0xc8] sm:$0xff]
    %v1616 = vld [vmem:[%s1589 + $0xd0] sm:$0xff]
    %v1617 = vld [vmem:[%s1589 + $0xd8] sm:$0xff]
    %v1618 = vld [vmem:[%s1589 + $0xe0] sm:$0xff]
    %v1619 = vld [vmem:[%s1589 + $0xe8] sm:$0xff]
    %v1620 = vld [vmem:[%s1589 + $0xf0] sm:$0xff]
    %v1621 = vld [vmem:[%s1589 + $0xf8] sm:$0xff]
    %s1622 = scalar_lea.vmem [#allocation13], 256
    %v1623 = vld [vmem:[%s1622] sm:$0xf]
    %v1624 = vld [vmem:[%s1622 + $0x4] sm:$0xf]
    %v1625 = vld [vmem:[%s1622 + $0x8] sm:$0xf]
    %v1626 = vld [vmem:[%s1622 + $0xc] sm:$0xf]
    %v1627 = vld [vmem:[%s1622 + $0x10] sm:$0xf]
    %v1628 = vld [vmem:[%s1622 + $0x14] sm:$0xf]
    %v1629 = vld [vmem:[%s1622 + $0x18] sm:$0xf]
    %v1630 = vld [vmem:[%s1622 + $0x1c] sm:$0xf]
    %v1631 = vld [vmem:[%s1622 + $0x20] sm:$0xf]
    %v1632 = vld [vmem:[%s1622 + $0x24] sm:$0xf]
    %v1633 = vld [vmem:[%s1622 + $0x28] sm:$0xf]
    %v1634 = vld [vmem:[%s1622 + $0x2c] sm:$0xf]
    %v1635 = vld [vmem:[%s1622 + $0x30] sm:$0xf]
    %v1636 = vld [vmem:[%s1622 + $0x34] sm:$0xf]
    %v1637 = vld [vmem:[%s1622 + $0x38] sm:$0xf]
    %v1638 = vld [vmem:[%s1622 + $0x3c] sm:$0xf]
    %v1639 = vld [vmem:[%s1622 + $0x40] sm:$0xf]
    %v1640 = vld [vmem:[%s1622 + $0x44] sm:$0xf]
    %v1641 = vld [vmem:[%s1622 + $0x48] sm:$0xf]
    %v1642 = vld [vmem:[%s1622 + $0x4c] sm:$0xf]
    %v1643 = vld [vmem:[%s1622 + $0x50] sm:$0xf]
    %v1644 = vld [vmem:[%s1622 + $0x54] sm:$0xf]
    %v1645 = vld [vmem:[%s1622 + $0x58] sm:$0xf]
    %v1646 = vld [vmem:[%s1622 + $0x5c] sm:$0xf]
    %v1647 = vld [vmem:[%s1622 + $0x60] sm:$0xf]
    %v1648 = vld [vmem:[%s1622 + $0x64] sm:$0xf]
    %v1649 = vld [vmem:[%s1622 + $0x68] sm:$0xf]
    %v1650 = vld [vmem:[%s1622 + $0x6c] sm:$0xf]
    %v1651 = vld [vmem:[%s1622 + $0x70] sm:$0xf]
    %v1652 = vld [vmem:[%s1622 + $0x74] sm:$0xf]
    %v1653 = vld [vmem:[%s1622 + $0x78] sm:$0xf]
    %v1654 = vld [vmem:[%s1622 + $0x7c] sm:$0xf]
    %v1655 = vld [vmem:[%s1622 + $0x80] sm:$0xf]
    %v1656 = vld [vmem:[%s1622 + $0x84] sm:$0xf]
    %v1657 = vld [vmem:[%s1622 + $0x88] sm:$0xf]
    %v1658 = vld [vmem:[%s1622 + $0x8c] sm:$0xf]
    %v1659 = vld [vmem:[%s1622 + $0x90] sm:$0xf]
    %v1660 = vld [vmem:[%s1622 + $0x94] sm:$0xf]
    %v1661 = vld [vmem:[%s1622 + $0x98] sm:$0xf]
    %v1662 = vld [vmem:[%s1622 + $0x9c] sm:$0xf]
    %v1663 = vld [vmem:[%s1622 + $0xa0] sm:$0xf]
    %v1664 = vld [vmem:[%s1622 + $0xa4] sm:$0xf]
    %v1665 = vld [vmem:[%s1622 + $0xa8] sm:$0xf]
    %v1666 = vld [vmem:[%s1622 + $0xac] sm:$0xf]
    %v1667 = vld [vmem:[%s1622 + $0xb0] sm:$0xf]
    %v1668 = vld [vmem:[%s1622 + $0xb4] sm:$0xf]
    %v1669 = vld [vmem:[%s1622 + $0xb8] sm:$0xf]
    %v1670 = vld [vmem:[%s1622 + $0xbc] sm:$0xf]
    %v1671 = vld [vmem:[%s1622 + $0xc0] sm:$0xf]
    %v1672 = vld [vmem:[%s1622 + $0xc4] sm:$0xf]
    %v1673 = vld [vmem:[%s1622 + $0xc8] sm:$0xf]
    %v1674 = vld [vmem:[%s1622 + $0xcc] sm:$0xf]
    %v1675 = vld [vmem:[%s1622 + $0xd0] sm:$0xf]
    %v1676 = vld [vmem:[%s1622 + $0xd4] sm:$0xf]
    %v1677 = vld [vmem:[%s1622 + $0xd8] sm:$0xf]
    %v1678 = vld [vmem:[%s1622 + $0xdc] sm:$0xf]
    %v1679 = vld [vmem:[%s1622 + $0xe0] sm:$0xf]
    %v1680 = vld [vmem:[%s1622 + $0xe4] sm:$0xf]
    %v1681 = vld [vmem:[%s1622 + $0xe8] sm:$0xf]
    %v1682 = vld [vmem:[%s1622 + $0xec] sm:$0xf]
    %v1683 = vld [vmem:[%s1622 + $0xf0] sm:$0xf]
    %v1684 = vld [vmem:[%s1622 + $0xf4] sm:$0xf]
    %v1685 = vld [vmem:[%s1622 + $0xf8] sm:$0xf]
    %v1686 = vld [vmem:[%s1622 + $0xfc] sm:$0xf]
    %1687 = vadd.xlane.f32.xlu0 %v1491
    %v1688 = vpop.xlane.xlu0 %1687
    %v1689 = vmul.f32 %v1688, %v319
    %v1690 = vsub.f32 %v1491, %v1689
    %v1691 = vmul.f32 %v1690, %v1690
    %1692 = vadd.xlane.f32.xlu0 %v1691
    %v1693 = vpop.xlane.xlu0 %1692
    %v1694 = vmul.f32 %v1693, %v319
    %v1695 = vadd.f32 %v1694, 1e-06
    %v1696 = vrsqrt.pop %v1695
    %v1697 = vmul.f32 %v1690, %v1696
    %v1698 = vlaneseq
    %v1699 = vshrl.u32 %v1698, 7
    %v1700 = vsub.s32 0, %v1699
    %v1701 = vrot.slane %v1503, %v1700
    %v1702 = vmul.f32 %v1697, %v1701
    %v1703 = vlaneseq
    %v1704 = vshrl.u32 %v1703, 7
    %v1705 = vsub.s32 1, %v1704
    %v1706 = vrot.slane %v1503, %v1705
    %v1707 = vadd.f32 %v1702, %v1706
    %v1708 = vlaneseq
    %v1709 = vshrl.u32 %v1708, 7
    %v1710 = vsub.s32 2, %v1709
    %v1711 = vrot.slane %v1503, %v1710
    %v1712 = vmul.f32 %v1697, %v1711
    %v1713 = vlaneseq
    %v1714 = vshrl.u32 %v1713, 7
    %v1715 = vsub.s32 3, %v1714
    %v1716 = vrot.slane %v1503, %v1715
    %v1717 = vadd.f32 %v1712, %v1716
    %v1718 = vpack.c.bf16 %v1707, %v1707
    %v1719 = vpack.c.bf16 %v1501, %v1501
    %v1752 = vunpack.c.l.b16 %v1538
    %v1753 = vunpack.c.h.b16 %v1538
    %v1754 = vunpack.c.l.b16 %v1539
    %v1755 = vunpack.c.h.b16 %v1539
    %v1756 = vunpack.c.l.b16 %v1540
    %v1757 = vunpack.c.h.b16 %v1540
    %v1758 = vunpack.c.l.b16 %v1541
    %v1759 = vunpack.c.h.b16 %v1541
    %v1760 = vunpack.c.l.b16 %v1542
    %v1761 = vunpack.c.h.b16 %v1542
    %v1762 = vunpack.c.l.b16 %v1543
    %v1763 = vunpack.c.h.b16 %v1543
    %v1764 = vunpack.c.l.b16 %v1544
    %v1765 = vunpack.c.h.b16 %v1544
    %v1766 = vunpack.c.l.b16 %v1545
    %v1767 = vunpack.c.h.b16 %v1545
    %v1768 = vunpack.c.l.b16 %v1546
    %v1769 = vunpack.c.h.b16 %v1546
    %v1770 = vunpack.c.l.b16 %v1547
    %v1771 = vunpack.c.h.b16 %v1547
    %v1772 = vunpack.c.l.b16 %v1548
    %v1773 = vunpack.c.h.b16 %v1548
    %v1774 = vunpack.c.l.b16 %v1549
    %v1775 = vunpack.c.h.b16 %v1549
    %v1776 = vunpack.c.l.b16 %v1550
    %v1777 = vunpack.c.h.b16 %v1550
    %v1778 = vunpack.c.l.b16 %v1551
    %v1779 = vunpack.c.h.b16 %v1551
    %v1780 = vunpack.c.l.b16 %v1552
    %v1781 = vunpack.c.h.b16 %v1552
    %v1782 = vunpack.c.l.b16 %v1553
    %v1783 = vunpack.c.h.b16 %v1553
    %v1784 = vunpack.c.l.b16 %v1554
    %v1785 = vunpack.c.h.b16 %v1554
    %v1786 = vunpack.c.l.b16 %v1555
    %v1787 = vunpack.c.h.b16 %v1555
    %v1788 = vunpack.c.l.b16 %v1556
    %v1789 = vunpack.c.h.b16 %v1556
    %v1790 = vunpack.c.l.b16 %v1557
    %v1791 = vunpack.c.h.b16 %v1557
    %v1792 = vunpack.c.l.b16 %v1558
    %v1793 = vunpack.c.h.b16 %v1558
    %v1794 = vunpack.c.l.b16 %v1559
    %v1795 = vunpack.c.h.b16 %v1559
    %v1796 = vunpack.c.l.b16 %v1560
    %v1797 = vunpack.c.h.b16 %v1560
    %v1798 = vunpack.c.l.b16 %v1561
    %v1799 = vunpack.c.h.b16 %v1561
    %v1800 = vunpack.c.l.b16 %v1562
    %v1801 = vunpack.c.h.b16 %v1562
    %v1802 = vunpack.c.l.b16 %v1563
    %v1803 = vunpack.c.h.b16 %v1563
    %v1804 = vunpack.c.l.b16 %v1564
    %v1805 = vunpack.c.h.b16 %v1564
    %v1806 = vunpack.c.l.b16 %v1565
    %v1807 = vunpack.c.h.b16 %v1565
    %v1808 = vunpack.c.l.b16 %v1566
    %v1809 = vunpack.c.h.b16 %v1566
    %v1810 = vunpack.c.l.b16 %v1567
    %v1811 = vunpack.c.h.b16 %v1567
    %v1812 = vunpack.c.l.b16 %v1568
    %v1813 = vunpack.c.h.b16 %v1568
    %v1814 = vunpack.c.l.b16 %v1569
    %v1815 = vunpack.c.h.b16 %v1569
    %v1816 = vpack.c.b16 %v1756, %v1752
    %v1817 = vpack.c.b16 %v1757, %v1753
    %v1818 = vpack.c.b16 %v1758, %v1754
    %v1819 = vpack.c.b16 %v1759, %v1755
    %v1820 = vpack.c.b16 %v1764, %v1760
    %v1821 = vpack.c.b16 %v1765, %v1761
    %v1822 = vpack.c.b16 %v1766, %v1762
    %v1823 = vpack.c.b16 %v1767, %v1763
    %v1824 = vpack.c.b16 %v1772, %v1768
    %v1825 = vpack.c.b16 %v1773, %v1769
    %v1826 = vpack.c.b16 %v1774, %v1770
    %v1827 = vpack.c.b16 %v1775, %v1771
    %v1828 = vpack.c.b16 %v1780, %v1776
    %v1829 = vpack.c.b16 %v1781, %v1777
    %v1830 = vpack.c.b16 %v1782, %v1778
    %v1831 = vpack.c.b16 %v1783, %v1779
    %v1832 = vpack.c.b16 %v1788, %v1784
    %v1833 = vpack.c.b16 %v1789, %v1785
    %v1834 = vpack.c.b16 %v1790, %v1786
    %v1835 = vpack.c.b16 %v1791, %v1787
    %v1836 = vpack.c.b16 %v1796, %v1792
    %v1837 = vpack.c.b16 %v1797, %v1793
    %v1838 = vpack.c.b16 %v1798, %v1794
    %v1839 = vpack.c.b16 %v1799, %v1795
    %v1840 = vpack.c.b16 %v1804, %v1800
    %v1841 = vpack.c.b16 %v1805, %v1801
    %v1842 = vpack.c.b16 %v1806, %v1802
    %v1843 = vpack.c.b16 %v1807, %v1803
    %v1844 = vpack.c.b16 %v1812, %v1808
    %v1845 = vpack.c.b16 %v1813, %v1809
    %v1846 = vpack.c.b16 %v1814, %v1810
    %v1847 = vpack.c.b16 %v1815, %v1811
    %1880 = vmatprep.subr.bf16.mxu0 %v1817
    %1881 = vmatpush1.bf16.msra.mxu0 %v1816
    %1882 = vmatprep.subr.bf16.mxu0 %v1821
    %1883 = vmatpush1.bf16.msra.mxu0 %v1820
    %1884 = vmatprep.subr.bf16.mxu0 %v1825
    %1885 = vmatpush1.bf16.msra.mxu0 %v1824
    %1886 = vmatprep.subr.bf16.mxu0 %v1829
    %1887 = vmatpush1.bf16.msra.mxu0 %v1828
    %1888 = vmatprep.subr.bf16.mxu0 %v1833
    %1889 = vmatpush1.bf16.msra.mxu0 %v1832
    %1890 = vmatprep.subr.bf16.mxu0 %v1837
    %1891 = vmatpush1.bf16.msra.mxu0 %v1836
    %1892 = vmatprep.subr.bf16.mxu0 %v1841
    %1893 = vmatpush1.bf16.msra.mxu0 %v1840
    %1894 = vmatprep.subr.bf16.mxu0 %v1845
    %1895 = vmatpush1.bf16.msra.mxu0 %v1844
    %1896 = vmatprep.subr.bf16.mxu0 0
    %1897 = vmatpush1.bf16.msra.mxu0 0
    %1898 = vmatprep.subr.bf16.mxu0 0
    %1899 = vmatpush1.bf16.msra.mxu0 0
    %1900 = vmatprep.subr.bf16.mxu0 0
    %1901 = vmatpush1.bf16.msra.mxu0 0
    %1902 = vmatprep.subr.bf16.mxu0 0
    %1903 = vmatpush1.bf16.msra.mxu0 0
    %1904 = vmatprep.subr.bf16.mxu0 0
    %1905 = vmatpush1.bf16.msra.mxu0 0
    %1906 = vmatprep.subr.bf16.mxu0 0
    %1907 = vmatpush1.bf16.msra.mxu0 0
    %1908 = vmatprep.subr.bf16.mxu0 0
    %1909 = vmatpush1.bf16.msra.mxu0 0
    %1910 = vmatprep.subr.bf16.mxu0 0
    %1911 = vmatpush1.bf16.msra.mxu0 0
    %1912 = vmatprep.mubr.bf16.mxu0 0
    %1913 = vmatmul.mubr.bf16.gmra.mrb[0].mxu0 %v1719
    %v1914 = vpop.f32.mrb[0].mxu0
    %v1915 = vadd.f32 0.0, %v1914
    %v1916 = vpop.f32.mrb[0].mxu0
    %v1917 = vadd.f32 0.0, %v1916
    %v1918 = vpop.f32.mrb[0].mxu0
    %v1919 = vpop.f32.mrb[0].mxu0
    %1920 = vdwg.mxu0
    %1921 = vmatprep.subr.bf16.mxu0 %v1819
    %1922 = vmatpush1.bf16.msra.mxu0 %v1818
    %1923 = vmatprep.subr.bf16.mxu0 %v1823
    %1924 = vmatpush1.bf16.msra.mxu0 %v1822
    %1925 = vmatprep.subr.bf16.mxu0 %v1827
    %1926 = vmatpush1.bf16.msra.mxu0 %v1826
    %1927 = vmatprep.subr.bf16.mxu0 %v1831
    %1928 = vmatpush1.bf16.msra.mxu0 %v1830
    %1929 = vmatprep.subr.bf16.mxu0 %v1835
    %1930 = vmatpush1.bf16.msra.mxu0 %v1834
    %1931 = vmatprep.subr.bf16.mxu0 %v1839
    %1932 = vmatpush1.bf16.msra.mxu0 %v1838
    %1933 = vmatprep.subr.bf16.mxu0 %v1843
    %1934 = vmatpush1.bf16.msra.mxu0 %v1842
    %1935 = vmatprep.subr.bf16.mxu0 %v1847
    %1936 = vmatpush1.bf16.msra.mxu0 %v1846
    %1937 = vmatprep.subr.bf16.mxu0 0
    %1938 = vmatpush1.bf16.msra.mxu0 0
    %1939 = vmatprep.subr.bf16.mxu0 0
    %1940 = vmatpush1.bf16.msra.mxu0 0
    %1941 = vmatprep.subr.bf16.mxu0 0
    %1942 = vmatpush1.bf16.msra.mxu0 0
    %1943 = vmatprep.subr.bf16.mxu0 0
    %1944 = vmatpush1.bf16.msra.mxu0 0
    %1945 = vmatprep.subr.bf16.mxu0 0
    %1946 = vmatpush1.bf16.msra.mxu0 0
    %1947 = vmatprep.subr.bf16.mxu0 0
    %1948 = vmatpush1.bf16.msra.mxu0 0
    %1949 = vmatprep.subr.bf16.mxu0 0
    %1950 = vmatpush1.bf16.msra.mxu0 0
    %1951 = vmatprep.subr.bf16.mxu0 0
    %1952 = vmatpush1.bf16.msra.mxu0 0
    %1953 = vmatprep.mubr.bf16.mxu0 0
    %1954 = vmatmul.mubr.bf16.gmra.mrb[0].mxu0 %v1719
    %v1955 = vpop.f32.mrb[0].mxu0
    %v1956 = vadd.f32 0.0, %v1955
    %v1957 = vpop.f32.mrb[0].mxu0
    %v1958 = vadd.f32 0.0, %v1957
    %v1959 = vpop.f32.mrb[0].mxu0
    %v1960 = vpop.f32.mrb[0].mxu0
    %1961 = vdwg.mxu0
    %v1994 = vunpack.c.l.b16 %v1505
    %v1995 = vunpack.c.h.b16 %v1505
    %v1996 = vunpack.c.l.b16 %v1506
    %v1997 = vunpack.c.h.b16 %v1506
    %v1998 = vunpack.c.l.b16 %v1507
    %v1999 = vunpack.c.h.b16 %v1507
    %v2000 = vunpack.c.l.b16 %v1508
    %v2001 = vunpack.c.h.b16 %v1508
    %v2002 = vunpack.c.l.b16 %v1509
    %v2003 = vunpack.c.h.b16 %v1509
    %v2004 = vunpack.c.l.b16 %v1510
    %v2005 = vunpack.c.h.b16 %v1510
    %v2006 = vunpack.c.l.b16 %v1511
    %v2007 = vunpack.c.h.b16 %v1511
    %v2008 = vunpack.c.l.b16 %v1512
    %v2009 = vunpack.c.h.b16 %v1512
    %v2010 = vunpack.c.l.b16 %v1513
    %v2011 = vunpack.c.h.b16 %v1513
    %v2012 = vunpack.c.l.b16 %v1514
    %v2013 = vunpack.c.h.b16 %v1514
    %v2014 = vunpack.c.l.b16 %v1515
    %v2015 = vunpack.c.h.b16 %v1515
    %v2016 = vunpack.c.l.b16 %v1516
    %v2017 = vunpack.c.h.b16 %v1516
    %v2018 = vunpack.c.l.b16 %v1517
    %v2019 = vunpack.c.h.b16 %v1517
    %v2020 = vunpack.c.l.b16 %v1518
    %v2021 = vunpack.c.h.b16 %v1518
    %v2022 = vunpack.c.l.b16 %v1519
    %v2023 = vunpack.c.h.b16 %v1519
    %v2024 = vunpack.c.l.b16 %v1520
    %v2025 = vunpack.c.h.b16 %v1520
    %v2026 = vunpack.c.l.b16 %v1521
    %v2027 = vunpack.c.h.b16 %v1521
    %v2028 = vunpack.c.l.b16 %v1522
    %v2029 = vunpack.c.h.b16 %v1522
    %v2030 = vunpack.c.l.b16 %v1523
    %v2031 = vunpack.c.h.b16 %v1523
    %v2032 = vunpack.c.l.b16 %v1524
    %v2033 = vunpack.c.h.b16 %v1524
    %v2034 = vunpack.c.l.b16 %v1525
    %v2035 = vunpack.c.h.b16 %v1525
    %v2036 = vunpack.c.l.b16 %v1526
    %v2037 = vunpack.c.h.b16 %v1526
    %v2038 = vunpack.c.l.b16 %v1527
    %v2039 = vunpack.c.h.b16 %v1527
    %v2040 = vunpack.c.l.b16 %v1528
    %v2041 = vunpack.c.h.b16 %v1528
    %v2042 = vunpack.c.l.b16 %v1529
    %v2043 = vunpack.c.h.b16 %v1529
    %v2044 = vunpack.c.l.b16 %v1530
    %v2045 = vunpack.c.h.b16 %v1530
    %v2046 = vunpack.c.l.b16 %v1531
    %v2047 = vunpack.c.h.b16 %v1531
    %v2048 = vunpack.c.l.b16 %v1532
    %v2049 = vunpack.c.h.b16 %v1532
    %v2050 = vunpack.c.l.b16 %v1533
    %v2051 = vunpack.c.h.b16 %v1533
    %v2052 = vunpack.c.l.b16 %v1534
    %v2053 = vunpack.c.h.b16 %v1534
    %v2054 = vunpack.c.l.b16 %v1535
    %v2055 = vunpack.c.h.b16 %v1535
    %v2056 = vunpack.c.l.b16 %v1536
    %v2057 = vunpack.c.h.b16 %v1536
    %v2058 = vpack.c.b16 %v1998, %v1994
    %v2059 = vpack.c.b16 %v1999, %v1995
    %v2060 = vpack.c.b16 %v2000, %v1996
    %v2061 = vpack.c.b16 %v2001, %v1997
    %v2062 = vpack.c.b16 %v2006, %v2002
    %v2063 = vpack.c.b16 %v2007, %v2003
    %v2064 = vpack.c.b16 %v2008, %v2004
    %v2065 = vpack.c.b16 %v2009, %v2005
    %v2066 = vpack.c.b16 %v2014, %v2010
    %v2067 = vpack.c.b16 %v2015, %v2011
    %v2068 = vpack.c.b16 %v2016, %v2012
    %v2069 = vpack.c.b16 %v2017, %v2013
    %v2070 = vpack.c.b16 %v2022, %v2018
    %v2071 = vpack.c.b16 %v2023, %v2019
    %v2072 = vpack.c.b16 %v2024, %v2020
    %v2073 = vpack.c.b16 %v2025, %v2021
    %v2074 = vpack.c.b16 %v2030, %v2026
    %v2075 = vpack.c.b16 %v2031, %v2027
    %v2076 = vpack.c.b16 %v2032, %v2028
    %v2077 = vpack.c.b16 %v2033, %v2029
    %v2078 = vpack.c.b16 %v2038, %v2034
    %v2079 = vpack.c.b16 %v2039, %v2035
    %v2080 = vpack.c.b16 %v2040, %v2036
    %v2081 = vpack.c.b16 %v2041, %v2037
    %v2082 = vpack.c.b16 %v2046, %v2042
    %v2083 = vpack.c.b16 %v2047, %v2043
    %v2084 = vpack.c.b16 %v2048, %v2044
    %v2085 = vpack.c.b16 %v2049, %v2045
    %v2086 = vpack.c.b16 %v2054, %v2050
    %v2087 = vpack.c.b16 %v2055, %v2051
    %v2088 = vpack.c.b16 %v2056, %v2052
    %v2089 = vpack.c.b16 %v2057, %v2053
    %2122 = vmatprep.subr.bf16.mxu0 %v2059
    %2123 = vmatpush1.bf16.msra.mxu0 %v2058
    %2124 = vmatprep.subr.bf16.mxu0 %v2063
    %2125 = vmatpush1.bf16.msra.mxu0 %v2062
    %2126 = vmatprep.subr.bf16.mxu0 %v2067
    %2127 = vmatpush1.bf16.msra.mxu0 %v2066
    %2128 = vmatprep.subr.bf16.mxu0 %v2071
    %2129 = vmatpush1.bf16.msra.mxu0 %v2070
    %2130 = vmatprep.subr.bf16.mxu0 %v2075
    %2131 = vmatpush1.bf16.msra.mxu0 %v2074
    %2132 = vmatprep.subr.bf16.mxu0 %v2079
    %2133 = vmatpush1.bf16.msra.mxu0 %v2078
    %2134 = vmatprep.subr.bf16.mxu0 %v2083
    %2135 = vmatpush1.bf16.msra.mxu0 %v2082
    %2136 = vmatprep.subr.bf16.mxu0 %v2087
    %2137 = vmatpush1.bf16.msra.mxu0 %v2086
    %2138 = vmatprep.subr.bf16.mxu0 0
    %2139 = vmatpush1.bf16.msra.mxu0 0
    %2140 = vmatprep.subr.bf16.mxu0 0
    %2141 = vmatpush1.bf16.msra.mxu0 0
    %2142 = vmatprep.subr.bf16.mxu0 0
    %2143 = vmatpush1.bf16.msra.mxu0 0
    %2144 = vmatprep.subr.bf16.mxu0 0
    %2145 = vmatpush1.bf16.msra.mxu0 0
    %2146 = vmatprep.subr.bf16.mxu0 0
    %2147 = vmatpush1.bf16.msra.mxu0 0
    %2148 = vmatprep.subr.bf16.mxu0 0
    %2149 = vmatpush1.bf16.msra.mxu0 0
    %2150 = vmatprep.subr.bf16.mxu0 0
    %2151 = vmatpush1.bf16.msra.mxu0 0
    %2152 = vmatprep.subr.bf16.mxu0 0
    %2153 = vmatpush1.bf16.msra.mxu0 0
    %2154 = vmatprep.mubr.bf16.mxu0 0
    %2155 = vmatmul.mubr.bf16.gmra.mrb[0].mxu0 %v1718
    %v2156 = vpop.f32.mrb[0].mxu0
    %v2157 = vadd.f32 %v1915, %v2156
    %v2158 = vpop.f32.mrb[0].mxu0
    %v2159 = vadd.f32 %v1917, %v2158
    %v2160 = vpop.f32.mrb[0].mxu0
    %v2161 = vpop.f32.mrb[0].mxu0
    %2162 = vdwg.mxu0
    %2163 = vmatprep.subr.bf16.mxu0 %v2061
    %2164 = vmatpush1.bf16.msra.mxu0 %v2060
    %2165 = vmatprep.subr.bf16.mxu0 %v2065
    %2166 = vmatpush1.bf16.msra.mxu0 %v2064
    %2167 = vmatprep.subr.bf16.mxu0 %v2069
    %2168 = vmatpush1.bf16.msra.mxu0 %v2068
    %2169 = vmatprep.subr.bf16.mxu0 %v2073
    %2170 = vmatpush1.bf16.msra.mxu0 %v2072
    %2171 = vmatprep.subr.bf16.mxu0 %v2077
    %2172 = vmatpush1.bf16.msra.mxu0 %v2076
    %2173 = vmatprep.subr.bf16.mxu0 %v2081
    %2174 = vmatpush1.bf16.msra.mxu0 %v2080
    %2175 = vmatprep.subr.bf16.mxu0 %v2085
    %2176 = vmatpush1.bf16.msra.mxu0 %v2084
    %2177 = vmatprep.subr.bf16.mxu0 %v2089
    %2178 = vmatpush1.bf16.msra.mxu0 %v2088
    %2179 = vmatprep.subr.bf16.mxu0 0
    %2180 = vmatpush1.bf16.msra.mxu0 0
    %2181 = vmatprep.subr.bf16.mxu0 0
    %2182 = vmatpush1.bf16.msra.mxu0 0
    %2183 = vmatprep.subr.bf16.mxu0 0
    %2184 = vmatpush1.bf16.msra.mxu0 0
    %2185 = vmatprep.subr.bf16.mxu0 0
    %2186 = vmatpush1.bf16.msra.mxu0 0
    %2187 = vmatprep.subr.bf16.mxu0 0
    %2188 = vmatpush1.bf16.msra.mxu0 0
    %2189 = vmatprep.subr.bf16.mxu0 0
    %2190 = vmatpush1.bf16.msra.mxu0 0
    %2191 = vmatprep.subr.bf16.mxu0 0
    %2192 = vmatpush1.bf16.msra.mxu0 0
    %2193 = vmatprep.subr.bf16.mxu0 0
    %2194 = vmatpush1.bf16.msra.mxu0 0
    %2195 = vmatprep.mubr.bf16.mxu0 0
    %2196 = vmatmul.mubr.bf16.gmra.mrb[0].mxu0 %v1718
    %v2197 = vpop.f32.mrb[0].mxu0
    %v2198 = vadd.f32 %v1956, %v2197
    %v2199 = vpop.f32.mrb[0].mxu0
    %v2200 = vadd.f32 %v1958, %v2199
    %v2201 = vpop.f32.mrb[0].mxu0
    %v2202 = vpop.f32.mrb[0].mxu0
    %2203 = vdwg.mxu0
    %v2205 = vlaneseq
    %v2206 = vshrl.u32 %v2205, 7
    %v2207 = vsub.s32 0, %v2206
    %v2208 = vrot.slane %v1571, %v2207
    %v2209 = vlaneseq
    %v2210 = vshrl.u32 %v2209, 7
    %v2211 = vsub.s32 1, %v2210
    %v2212 = vrot.slane %v1571, %v2211
    %v2213 = vlaneseq
    %v2214 = vshrl.u32 %v2213, 7
    %v2215 = vsub.s32 2, %v2214
    %v2216 = vrot.slane %v1571, %v2215
    %v2217 = vlaneseq
    %v2218 = vshrl.u32 %v2217, 7
    %v2219 = vsub.s32 3, %v2218
    %v2220 = vrot.slane %v1571, %v2219
    %v2225 = vadd.f32 %v2157, %v2208
    %v2226 = vadd.f32 %v2159, %v2212
    %v2227 = vadd.f32 %v2198, %v2216
    %v2228 = vadd.f32 %v2200, %v2220
    %v2229 = vtanh.pop %v2228
    %v2230 = vxor.u32 %v2225, 2147483648
    %v2231 = vxor.u32 %v2226, 2147483648
    %v2232 = vxor.u32 %v2227, 2147483648
    %v2233 = vmul.f32 %v2230, 1.442695
    %v2234 = vpow.pop %v2233
    %v2235 = vmul.f32 %v2231, 1.442695
    %v2236 = vpow.pop %v2235
    %v2237 = vmul.f32 %v2232, 1.442695
    %v2238 = vpow.pop %v2237
    %v2239 = vadd.f32 %v2234, 1.0
    %v2240 = vadd.f32 %v2236, 1.0
    %v2241 = vadd.f32 %v2238, 1.0
    %v2242 = vrcp.pop %v2239
    %v2243 = vmul.f32 1.0, %v2242
    %v2244 = vrcp.pop %v2240
    %v2245 = vmul.f32 1.0, %v2244
    %v2246 = vrcp.pop %v2241
    %v2247 = vmul.f32 1.0, %v2246
    %v2248 = vmul.f32 %v2245, %v1499
    %v2249 = vmul.f32 %v2243, %v2229
    %v2250 = vadd.f32 %v2248, %v2249
    %v2251 = vtanh.pop %v2250
    %v2252 = vmul.f32 %v2247, %v2251
    %v2253 = vpack.c.bf16 %v1717, %v1717
    %v2286 = vunpack.c.l.b16 %v1590
    %v2287 = vunpack.c.h.b16 %v1590
    %v2288 = vunpack.c.l.b16 %v1591
    %v2289 = vunpack.c.h.b16 %v1591
    %v2290 = vunpack.c.l.b16 %v1592
    %v2291 = vunpack.c.h.b16 %v1592
    %v2292 = vunpack.c.l.b16 %v1593
    %v2293 = vunpack.c.h.b16 %v1593
    %v2294 = vunpack.c.l.b16 %v1594
    %v2295 = vunpack.c.h.b16 %v1594
    %v2296 = vunpack.c.l.b16 %v1595
    %v2297 = vunpack.c.h.b16 %v1595
    %v2298 = vunpack.c.l.b16 %v1596
    %v2299 = vunpack.c.h.b16 %v1596
    %v2300 = vunpack.c.l.b16 %v1597
    %v2301 = vunpack.c.h.b16 %v1597
    %v2302 = vunpack.c.l.b16 %v1598
    %v2303 = vunpack.c.h.b16 %v1598
    %v2304 = vunpack.c.l.b16 %v1599
    %v2305 = vunpack.c.h.b16 %v1599
    %v2306 = vunpack.c.l.b16 %v1600
    %v2307 = vunpack.c.h.b16 %v1600
    %v2308 = vunpack.c.l.b16 %v1601
    %v2309 = vunpack.c.h.b16 %v1601
    %v2310 = vunpack.c.l.b16 %v1602
    %v2311 = vunpack.c.h.b16 %v1602
    %v2312 = vunpack.c.l.b16 %v1603
    %v2313 = vunpack.c.h.b16 %v1603
    %v2314 = vunpack.c.l.b16 %v1604
    %v2315 = vunpack.c.h.b16 %v1604
    %v2316 = vunpack.c.l.b16 %v1605
    %v2317 = vunpack.c.h.b16 %v1605
    %v2318 = vunpack.c.l.b16 %v1606
    %v2319 = vunpack.c.h.b16 %v1606
    %v2320 = vunpack.c.l.b16 %v1607
    %v2321 = vunpack.c.h.b16 %v1607
    %v2322 = vunpack.c.l.b16 %v1608
    %v2323 = vunpack.c.h.b16 %v1608
    %v2324 = vunpack.c.l.b16 %v1609
    %v2325 = vunpack.c.h.b16 %v1609
    %v2326 = vunpack.c.l.b16 %v1610
    %v2327 = vunpack.c.h.b16 %v1610
    %v2328 = vunpack.c.l.b16 %v1611
    %v2329 = vunpack.c.h.b16 %v1611
    %v2330 = vunpack.c.l.b16 %v1612
    %v2331 = vunpack.c.h.b16 %v1612
    %v2332 = vunpack.c.l.b16 %v1613
    %v2333 = vunpack.c.h.b16 %v1613
    %v2334 = vunpack.c.l.b16 %v1614
    %v2335 = vunpack.c.h.b16 %v1614
    %v2336 = vunpack.c.l.b16 %v1615
    %v2337 = vunpack.c.h.b16 %v1615
    %v2338 = vunpack.c.l.b16 %v1616
    %v2339 = vunpack.c.h.b16 %v1616
    %v2340 = vunpack.c.l.b16 %v1617
    %v2341 = vunpack.c.h.b16 %v1617
    %v2342 = vunpack.c.l.b16 %v1618
    %v2343 = vunpack.c.h.b16 %v1618
    %v2344 = vunpack.c.l.b16 %v1619
    %v2345 = vunpack.c.h.b16 %v1619
    %v2346 = vunpack.c.l.b16 %v1620
    %v2347 = vunpack.c.h.b16 %v1620
    %v2348 = vunpack.c.l.b16 %v1621
    %v2349 = vunpack.c.h.b16 %v1621
    %v2350 = vpack.c.b16 %v2290, %v2286
    %v2351 = vpack.c.b16 %v2291, %v2287
    %v2352 = vpack.c.b16 %v2292, %v2288
    %v2353 = vpack.c.b16 %v2293, %v2289
    %v2354 = vpack.c.b16 %v2298, %v2294
    %v2355 = vpack.c.b16 %v2299, %v2295
    %v2356 = vpack.c.b16 %v2300, %v2296
    %v2357 = vpack.c.b16 %v2301, %v2297
    %v2358 = vpack.c.b16 %v2306, %v2302
    %v2359 = vpack.c.b16 %v2307, %v2303
    %v2360 = vpack.c.b16 %v2308, %v2304
    %v2361 = vpack.c.b16 %v2309, %v2305
    %v2362 = vpack.c.b16 %v2314, %v2310
    %v2363 = vpack.c.b16 %v2315, %v2311
    %v2364 = vpack.c.b16 %v2316, %v2312
    %v2365 = vpack.c.b16 %v2317, %v2313
    %v2366 = vpack.c.b16 %v2322, %v2318
    %v2367 = vpack.c.b16 %v2323, %v2319
    %v2368 = vpack.c.b16 %v2324, %v2320
    %v2369 = vpack.c.b16 %v2325, %v2321
    %v2370 = vpack.c.b16 %v2330, %v2326
    %v2371 = vpack.c.b16 %v2331, %v2327
    %v2372 = vpack.c.b16 %v2332, %v2328
    %v2373 = vpack.c.b16 %v2333, %v2329
    %v2374 = vpack.c.b16 %v2338, %v2334
    %v2375 = vpack.c.b16 %v2339, %v2335
    %v2376 = vpack.c.b16 %v2340, %v2336
    %v2377 = vpack.c.b16 %v2341, %v2337
    %v2378 = vpack.c.b16 %v2346, %v2342
    %v2379 = vpack.c.b16 %v2347, %v2343
    %v2380 = vpack.c.b16 %v2348, %v2344
    %v2381 = vpack.c.b16 %v2349, %v2345
    %2414 = vmatprep.subr.bf16.mxu0 %v2351
    %2415 = vmatpush1.bf16.msra.mxu0 %v2350
    %2416 = vmatprep.subr.bf16.mxu0 %v2355
    %2417 = vmatpush1.bf16.msra.mxu0 %v2354
    %2418 = vmatprep.subr.bf16.mxu0 %v2359
    %2419 = vmatpush1.bf16.msra.mxu0 %v2358
    %2420 = vmatprep.subr.bf16.mxu0 %v2363
    %2421 = vmatpush1.bf16.msra.mxu0 %v2362
    %2422 = vmatprep.subr.bf16.mxu0 %v2367
    %2423 = vmatpush1.bf16.msra.mxu0 %v2366
    %2424 = vmatprep.subr.bf16.mxu0 %v2371
    %2425 = vmatpush1.bf16.msra.mxu0 %v2370
    %2426 = vmatprep.subr.bf16.mxu0 %v2375
    %2427 = vmatpush1.bf16.msra.mxu0 %v2374
    %2428 = vmatprep.subr.bf16.mxu0 %v2379
    %2429 = vmatpush1.bf16.msra.mxu0 %v2378
    %2430 = vmatprep.subr.bf16.mxu0 0
    %2431 = vmatpush1.bf16.msra.mxu0 0
    %2432 = vmatprep.subr.bf16.mxu0 0
    %2433 = vmatpush1.bf16.msra.mxu0 0
    %2434 = vmatprep.subr.bf16.mxu0 0
    %2435 = vmatpush1.bf16.msra.mxu0 0
    %2436 = vmatprep.subr.bf16.mxu0 0
    %2437 = vmatpush1.bf16.msra.mxu0 0
    %2438 = vmatprep.subr.bf16.mxu0 0
    %2439 = vmatpush1.bf16.msra.mxu0 0
    %2440 = vmatprep.subr.bf16.mxu0 0
    %2441 = vmatpush1.bf16.msra.mxu0 0
    %2442 = vmatprep.subr.bf16.mxu0 0
    %2443 = vmatpush1.bf16.msra.mxu0 0
    %2444 = vmatprep.subr.bf16.mxu0 0
    %2445 = vmatpush1.bf16.msra.mxu0 0
    %2446 = vmatprep.mubr.bf16.mxu0 0
    %2447 = vmatmul.mubr.bf16.gmra.mrb[0].mxu0 %v2253
    %v2448 = vpop.f32.mrb[0].mxu0
    %v2449 = vadd.f32 0.0, %v2448
    %v2450 = vpop.f32.mrb[0].mxu0
    %v2451 = vadd.f32 0.0, %v2450
    %v2452 = vpop.f32.mrb[0].mxu0
    %v2453 = vpop.f32.mrb[0].mxu0
    %2454 = vdwg.mxu0
    %2455 = vmatprep.subr.bf16.mxu0 %v2353
    %2456 = vmatpush1.bf16.msra.mxu0 %v2352
    %2457 = vmatprep.subr.bf16.mxu0 %v2357
    %2458 = vmatpush1.bf16.msra.mxu0 %v2356
    %2459 = vmatprep.subr.bf16.mxu0 %v2361
    %2460 = vmatpush1.bf16.msra.mxu0 %v2360
    %2461 = vmatprep.subr.bf16.mxu0 %v2365
    %2462 = vmatpush1.bf16.msra.mxu0 %v2364
    %2463 = vmatprep.subr.bf16.mxu0 %v2369
    %2464 = vmatpush1.bf16.msra.mxu0 %v2368
    %2465 = vmatprep.subr.bf16.mxu0 %v2373
    %2466 = vmatpush1.bf16.msra.mxu0 %v2372
    %2467 = vmatprep.subr.bf16.mxu0 %v2377
    %2468 = vmatpush1.bf16.msra.mxu0 %v2376
    %2469 = vmatprep.subr.bf16.mxu0 %v2381
    %2470 = vmatpush1.bf16.msra.mxu0 %v2380
    %2471 = vmatprep.subr.bf16.mxu0 0
    %2472 = vmatpush1.bf16.msra.mxu0 0
    %2473 = vmatprep.subr.bf16.mxu0 0
    %2474 = vmatpush1.bf16.msra.mxu0 0
    %2475 = vmatprep.subr.bf16.mxu0 0
    %2476 = vmatpush1.bf16.msra.mxu0 0
    %2477 = vmatprep.subr.bf16.mxu0 0
    %2478 = vmatpush1.bf16.msra.mxu0 0
    %2479 = vmatprep.subr.bf16.mxu0 0
    %2480 = vmatpush1.bf16.msra.mxu0 0
    %2481 = vmatprep.subr.bf16.mxu0 0
    %2482 = vmatpush1.bf16.msra.mxu0 0
    %2483 = vmatprep.subr.bf16.mxu0 0
    %2484 = vmatpush1.bf16.msra.mxu0 0
    %2485 = vmatprep.subr.bf16.mxu0 0
    %2486 = vmatpush1.bf16.msra.mxu0 0
    %2487 = vmatprep.mubr.bf16.mxu0 0
    %2488 = vmatmul.mubr.bf16.gmra.mrb[0].mxu0 %v2253
    %v2489 = vpop.f32.mrb[0].mxu0
    %v2490 = vadd.f32 0.0, %v2489
    %v2491 = vpop.f32.mrb[0].mxu0
    %v2492 = vadd.f32 0.0, %v2491
    %v2493 = vpop.f32.mrb[0].mxu0
    %v2494 = vpop.f32.mrb[0].mxu0
    %2495 = vdwg.mxu0
    %v2496 = vmax.f32 %v2449, 0.0
    %v2497 = vmax.f32 %v2451, 0.0
    %v2498 = vmax.f32 %v2490, 0.0
    %v2499 = vmax.f32 %v2492, 0.0
    %v2500 = vpack.c.bf16 %v2496, %v2496
    %v2501 = vpack.c.bf16 %v2497, %v2497
    %v2502 = vpack.c.bf16 %v2498, %v2498
    %v2503 = vpack.c.bf16 %v2499, %v2499
    %v2504 = vpack.c.bf16 %v2252, %v2252
    %v2521 = vunpack.c.l.b16 %v1573
    %v2522 = vunpack.c.l.b16 %v1574
    %v2523 = vunpack.c.l.b16 %v1575
    %v2524 = vunpack.c.l.b16 %v1576
    %v2525 = vunpack.c.l.b16 %v1577
    %v2526 = vunpack.c.l.b16 %v1578
    %v2527 = vunpack.c.l.b16 %v1579
    %v2528 = vunpack.c.l.b16 %v1580
    %v2529 = vunpack.c.l.b16 %v1581
    %v2530 = vunpack.c.l.b16 %v1582
    %v2531 = vunpack.c.l.b16 %v1583
    %v2532 = vunpack.c.l.b16 %v1584
    %v2533 = vunpack.c.l.b16 %v1585
    %v2534 = vunpack.c.l.b16 %v1586
    %v2535 = vunpack.c.l.b16 %v1587
    %v2536 = vunpack.c.l.b16 %v1588
    %v2537 = vpack.c.b16 %v2522, %v2521
    %v2538 = vpack.c.b16 %v2524, %v2523
    %v2539 = vpack.c.b16 %v2526, %v2525
    %v2540 = vpack.c.b16 %v2528, %v2527
    %v2541 = vpack.c.b16 %v2530, %v2529
    %v2542 = vpack.c.b16 %v2532, %v2531
    %v2543 = vpack.c.b16 %v2534, %v2533
    %v2544 = vpack.c.b16 %v2536, %v2535
    %2553 = vmatprep.subr.bf16.mxu0 0
    %2554 = vmatpush1.bf16.msra.mxu0 %v2537
    %2555 = vmatprep.subr.bf16.mxu0 0
    %2556 = vmatpush1.bf16.msra.mxu0 %v2538
    %2557 = vmatprep.subr.bf16.mxu0 0
    %2558 = vmatpush1.bf16.msra.mxu0 %v2539
    %2559 = vmatprep.subr.bf16.mxu0 0
    %2560 = vmatpush1.bf16.msra.mxu0 %v2540
    %2561 = vmatprep.subr.bf16.mxu0 0
    %2562 = vmatpush1.bf16.msra.mxu0 %v2541
    %2563 = vmatprep.subr.bf16.mxu0 0
    %2564 = vmatpush1.bf16.msra.mxu0 %v2542
    %2565 = vmatprep.subr.bf16.mxu0 0
    %2566 = vmatpush1.bf16.msra.mxu0 %v2543
    %2567 = vmatprep.subr.bf16.mxu0 0
    %2568 = vmatpush1.bf16.msra.mxu0 %v2544
    %2569 = vmatprep.subr.bf16.mxu0 0
    %2570 = vmatpush1.bf16.msra.mxu0 0
    %2571 = vmatprep.subr.bf16.mxu0 0
    %2572 = vmatpush1.bf16.msra.mxu0 0
    %2573 = vmatprep.subr.bf16.mxu0 0
    %2574 = vmatpush1.bf16.msra.mxu0 0
    %2575 = vmatprep.subr.bf16.mxu0 0
    %2576 = vmatpush1.bf16.msra.mxu0 0
    %2577 = vmatprep.subr.bf16.mxu0 0
    %2578 = vmatpush1.bf16.msra.mxu0 0
    %2579 = vmatprep.subr.bf16.mxu0 0
    %2580 = vmatpush1.bf16.msra.mxu0 0
    %2581 = vmatprep.subr.bf16.mxu0 0
    %2582 = vmatpush1.bf16.msra.mxu0 0
    %2583 = vmatprep.subr.bf16.mxu0 0
    %2584 = vmatpush1.bf16.msra.mxu0 0
    %2585 = vmatprep.mubr.bf16.mxu0 0
    %2586 = vmatmul.mubr.bf16.gmra.mrb[0].mxu0 %v2504
    %v2587 = vpop.f32.mrb[0].mxu0
    %v2588 = vadd.f32 0.0, %v2587
    %v2589 = vpop.f32.mrb[0].mxu0
    %v2590 = vpop.f32.mrb[0].mxu0
    %v2591 = vpop.f32.mrb[0].mxu0
    %2592 = vdwg.mxu0
    %v2657 = vunpack.c.l.b16 %v1623
    %v2658 = vunpack.c.l.b16 %v1624
    %v2659 = vunpack.c.l.b16 %v1625
    %v2660 = vunpack.c.l.b16 %v1626
    %v2661 = vunpack.c.l.b16 %v1627
    %v2662 = vunpack.c.l.b16 %v1628
    %v2663 = vunpack.c.l.b16 %v1629
    %v2664 = vunpack.c.l.b16 %v1630
    %v2665 = vunpack.c.l.b16 %v1631
    %v2666 = vunpack.c.l.b16 %v1632
    %v2667 = vunpack.c.l.b16 %v1633
    %v2668 = vunpack.c.l.b16 %v1634
    %v2669 = vunpack.c.l.b16 %v1635
    %v2670 = vunpack.c.l.b16 %v1636
    %v2671 = vunpack.c.l.b16 %v1637
    %v2672 = vunpack.c.l.b16 %v1638
    %v2673 = vunpack.c.l.b16 %v1639
    %v2674 = vunpack.c.l.b16 %v1640
    %v2675 = vunpack.c.l.b16 %v1641
    %v2676 = vunpack.c.l.b16 %v1642
    %v2677 = vunpack.c.l.b16 %v1643
    %v2678 = vunpack.c.l.b16 %v1644
    %v2679 = vunpack.c.l.b16 %v1645
    %v2680 = vunpack.c.l.b16 %v1646
    %v2681 = vunpack.c.l.b16 %v1647
    %v2682 = vunpack.c.l.b16 %v1648
    %v2683 = vunpack.c.l.b16 %v1649
    %v2684 = vunpack.c.l.b16 %v1650
    %v2685 = vunpack.c.l.b16 %v1651
    %v2686 = vunpack.c.l.b16 %v1652
    %v2687 = vunpack.c.l.b16 %v1653
    %v2688 = vunpack.c.l.b16 %v1654
    %v2689 = vunpack.c.l.b16 %v1655
    %v2690 = vunpack.c.l.b16 %v1656
    %v2691 = vunpack.c.l.b16 %v1657
    %v2692 = vunpack.c.l.b16 %v1658
    %v2693 = vunpack.c.l.b16 %v1659
    %v2694 = vunpack.c.l.b16 %v1660
    %v2695 = vunpack.c.l.b16 %v1661
    %v2696 = vunpack.c.l.b16 %v1662
    %v2697 = vunpack.c.l.b16 %v1663
    %v2698 = vunpack.c.l.b16 %v1664
    %v2699 = vunpack.c.l.b16 %v1665
    %v2700 = vunpack.c.l.b16 %v1666
    %v2701 = vunpack.c.l.b16 %v1667
    %v2702 = vunpack.c.l.b16 %v1668
    %v2703 = vunpack.c.l.b16 %v1669
    %v2704 = vunpack.c.l.b16 %v1670
    %v2705 = vunpack.c.l.b16 %v1671
    %v2706 = vunpack.c.l.b16 %v1672
    %v2707 = vunpack.c.l.b16 %v1673
    %v2708 = vunpack.c.l.b16 %v1674
    %v2709 = vunpack.c.l.b16 %v1675
    %v2710 = vunpack.c.l.b16 %v1676
    %v2711 = vunpack.c.l.b16 %v1677
    %v2712 = vunpack.c.l.b16 %v1678
    %v2713 = vunpack.c.l.b16 %v1679
    %v2714 = vunpack.c.l.b16 %v1680
    %v2715 = vunpack.c.l.b16 %v1681
    %v2716 = vunpack.c.l.b16 %v1682
    %v2717 = vunpack.c.l.b16 %v1683
    %v2718 = vunpack.c.l.b16 %v1684
    %v2719 = vunpack.c.l.b16 %v1685
    %v2720 = vunpack.c.l.b16 %v1686
    %v2721 = vpack.c.b16 %v2658, %v2657
    %v2722 = vpack.c.b16 %v2660, %v2659
    %v2723 = vpack.c.b16 %v2662, %v2661
    %v2724 = vpack.c.b16 %v2664, %v2663
    %v2725 = vpack.c.b16 %v2666, %v2665
    %v2726 = vpack.c.b16 %v2668, %v2667
    %v2727 = vpack.c.b16 %v2670, %v2669
    %v2728 = vpack.c.b16 %v2672, %v2671
    %v2729 = vpack.c.b16 %v2674, %v2673
    %v2730 = vpack.c.b16 %v2676, %v2675
    %v2731 = vpack.c.b16 %v2678, %v2677
    %v2732 = vpack.c.b16 %v2680, %v2679
    %v2733 = vpack.c.b16 %v2682, %v2681
    %v2734 = vpack.c.b16 %v2684, %v2683
    %v2735 = vpack.c.b16 %v2686, %v2685
    %v2736 = vpack.c.b16 %v2688, %v2687
    %v2737 = vpack.c.b16 %v2690, %v2689
    %v2738 = vpack.c.b16 %v2692, %v2691
    %v2739 = vpack.c.b16 %v2694, %v2693
    %v2740 = vpack.c.b16 %v2696, %v2695
    %v2741 = vpack.c.b16 %v2698, %v2697
    %v2742 = vpack.c.b16 %v2700, %v2699
    %v2743 = vpack.c.b16 %v2702, %v2701
    %v2744 = vpack.c.b16 %v2704, %v2703
    %v2745 = vpack.c.b16 %v2706, %v2705
    %v2746 = vpack.c.b16 %v2708, %v2707
    %v2747 = vpack.c.b16 %v2710, %v2709
    %v2748 = vpack.c.b16 %v2712, %v2711
    %v2749 = vpack.c.b16 %v2714, %v2713
    %v2750 = vpack.c.b16 %v2716, %v2715
    %v2751 = vpack.c.b16 %v2718, %v2717
    %v2752 = vpack.c.b16 %v2720, %v2719
    %2785 = vmatprep.subr.bf16.mxu0 0
    %2786 = vmatpush1.bf16.msra.mxu0 %v2721
    %2787 = vmatprep.subr.bf16.mxu0 0
    %2788 = vmatpush1.bf16.msra.mxu0 %v2722
    %2789 = vmatprep.subr.bf16.mxu0 0
    %2790 = vmatpush1.bf16.msra.mxu0 %v2723
    %2791 = vmatprep.subr.bf16.mxu0 0
    %2792 = vmatpush1.bf16.msra.mxu0 %v2724
    %2793 = vmatprep.subr.bf16.mxu0 0
    %2794 = vmatpush1.bf16.msra.mxu0 %v2725
    %2795 = vmatprep.subr.bf16.mxu0 0
    %2796 = vmatpush1.bf16.msra.mxu0 %v2726
    %2797 = vmatprep.subr.bf16.mxu0 0
    %2798 = vmatpush1.bf16.msra.mxu0 %v2727
    %2799 = vmatprep.subr.bf16.mxu0 0
    %2800 = vmatpush1.bf16.msra.mxu0 %v2728
    %2801 = vmatprep.subr.bf16.mxu0 0
    %2802 = vmatpush1.bf16.msra.mxu0 %v2729
    %2803 = vmatprep.subr.bf16.mxu0 0
    %2804 = vmatpush1.bf16.msra.mxu0 %v2730
    %2805 = vmatprep.subr.bf16.mxu0 0
    %2806 = vmatpush1.bf16.msra.mxu0 %v2731
    %2807 = vmatprep.subr.bf16.mxu0 0
    %2808 = vmatpush1.bf16.msra.mxu0 %v2732
    %2809 = vmatprep.subr.bf16.mxu0 0
    %2810 = vmatpush1.bf16.msra.mxu0 %v2733
    %2811 = vmatprep.subr.bf16.mxu0 0
    %2812 = vmatpush1.bf16.msra.mxu0 %v2734
    %2813 = vmatprep.subr.bf16.mxu0 0
    %2814 = vmatpush1.bf16.msra.mxu0 %v2735
    %2815 = vmatprep.subr.bf16.mxu0 0
    %2816 = vmatpush1.bf16.msra.mxu0 %v2736
    %2817 = vmatprep.mubr.bf16.mxu0 %v2501
    %2818 = vmatmul.mubr.bf16.gmra.mrb[0].mxu0 %v2500
    %v2819 = vpop.f32.mrb[0].mxu0
    %v2820 = vadd.f32 %v2588, %v2819
    %v2821 = vpop.f32.mrb[0].mxu0
    %v2822 = vpop.f32.mrb[0].mxu0
    %v2823 = vpop.f32.mrb[0].mxu0
    %2824 = vdwg.mxu0
    %2825 = vmatprep.subr.bf16.mxu0 0
    %2826 = vmatpush1.bf16.msra.mxu0 %v2737
    %2827 = vmatprep.subr.bf16.mxu0 0
    %2828 = vmatpush1.bf16.msra.mxu0 %v2738
    %2829 = vmatprep.subr.bf16.mxu0 0
    %2830 = vmatpush1.bf16.msra.mxu0 %v2739
    %2831 = vmatprep.subr.bf16.mxu0 0
    %2832 = vmatpush1.bf16.msra.mxu0 %v2740
    %2833 = vmatprep.subr.bf16.mxu0 0
    %2834 = vmatpush1.bf16.msra.mxu0 %v2741
    %2835 = vmatprep.subr.bf16.mxu0 0
    %2836 = vmatpush1.bf16.msra.mxu0 %v2742
    %2837 = vmatprep.subr.bf16.mxu0 0
    %2838 = vmatpush1.bf16.msra.mxu0 %v2743
    %2839 = vmatprep.subr.bf16.mxu0 0
    %2840 = vmatpush1.bf16.msra.mxu0 %v2744
    %2841 = vmatprep.subr.bf16.mxu0 0
    %2842 = vmatpush1.bf16.msra.mxu0 %v2745
    %2843 = vmatprep.subr.bf16.mxu0 0
    %2844 = vmatpush1.bf16.msra.mxu0 %v2746
    %2845 = vmatprep.subr.bf16.mxu0 0
    %2846 = vmatpush1.bf16.msra.mxu0 %v2747
    %2847 = vmatprep.subr.bf16.mxu0 0
    %2848 = vmatpush1.bf16.msra.mxu0 %v2748
    %2849 = vmatprep.subr.bf16.mxu0 0
    %2850 = vmatpush1.bf16.msra.mxu0 %v2749
    %2851 = vmatprep.subr.bf16.mxu0 0
    %2852 = vmatpush1.bf16.msra.mxu0 %v2750
    %2853 = vmatprep.subr.bf16.mxu0 0
    %2854 = vmatpush1.bf16.msra.mxu0 %v2751
    %2855 = vmatprep.subr.bf16.mxu0 0
    %2856 = vmatpush1.bf16.msra.mxu0 %v2752
    %2857 = vmatprep.mubr.bf16.mxu0 %v2503
    %2858 = vmatmul.mubr.bf16.gmra.mrb[0].mxu0 %v2502
    %v2859 = vpop.f32.mrb[0].mxu0
    %v2860 = vadd.f32 %v2820, %v2859
    %v2861 = vpop.f32.mrb[0].mxu0
    %v2862 = vpop.f32.mrb[0].mxu0
    %v2863 = vpop.f32.mrb[0].mxu0
    %2864 = vdwg.mxu0
    %s2865 = scalar_lea.vmem [#allocation14], 8
    %2866 = vst [vmem:[%s2865] sm:$0xff] %v2250
    %s2867 = scalar_lea.vmem [#allocation15], 8
    %2868 = vst [vmem:[%s2867] sm:$0xff] %v2252
    %s2869 = scalar_lea.vmem [#allocation2], 16
    %v2870 = vld [vmem:[%s2869] sm:$0xff]
    %s2871 = scalar_lea.vmem [#allocation5], 16
    %v2872 = vld [vmem:[%s2871] sm:$0xff]
    %s2873 = scalar_lea.vmem %s9, 8
    %v2874 = vld [vmem:[%s2873] sm:$0xf]
    %s2875 = scalar_lea.vmem [#allocation7], 512
    %v2876 = vld [vmem:[%s2875] sm:$0xff]
    %v2877 = vld [vmem:[%s2875 + $0x8] sm:$0xff]
    %v2878 = vld [vmem:[%s2875 + $0x10] sm:$0xff]
    %v2879 = vld [vmem:[%s2875 + $0x18] sm:$0xff]
    %v2880 = vld [vmem:[%s2875 + $0x20] sm:$0xff]
    %v2881 = vld [vmem:[%s2875 + $0x28] sm:$0xff]
    %v2882 = vld [vmem:[%s2875 + $0x30] sm:$0xff]
    %v2883 = vld [vmem:[%s2875 + $0x38] sm:$0xff]
    %v2884 = vld [vmem:[%s2875 + $0x40] sm:$0xff]
    %v2885 = vld [vmem:[%s2875 + $0x48] sm:$0xff]
    %v2886 = vld [vmem:[%s2875 + $0x50] sm:$0xff]
    %v2887 = vld [vmem:[%s2875 + $0x58] sm:$0xff]
    %v2888 = vld [vmem:[%s2875 + $0x60] sm:$0xff]
    %v2889 = vld [vmem:[%s2875 + $0x68] sm:$0xff]
    %v2890 = vld [vmem:[%s2875 + $0x70] sm:$0xff]
    %v2891 = vld [vmem:[%s2875 + $0x78] sm:$0xff]
    %v2892 = vld [vmem:[%s2875 + $0x80] sm:$0xff]
    %v2893 = vld [vmem:[%s2875 + $0x88] sm:$0xff]
    %v2894 = vld [vmem:[%s2875 + $0x90] sm:$0xff]
    %v2895 = vld [vmem:[%s2875 + $0x98] sm:$0xff]
    %v2896 = vld [vmem:[%s2875 + $0xa0] sm:$0xff]
    %v2897 = vld [vmem:[%s2875 + $0xa8] sm:$0xff]
    %v2898 = vld [vmem:[%s2875 + $0xb0] sm:$0xff]
    %v2899 = vld [vmem:[%s2875 + $0xb8] sm:$0xff]
    %v2900 = vld [vmem:[%s2875 + $0xc0] sm:$0xff]
    %v2901 = vld [vmem:[%s2875 + $0xc8] sm:$0xff]
    %v2902 = vld [vmem:[%s2875 + $0xd0] sm:$0xff]
    %v2903 = vld [vmem:[%s2875 + $0xd8] sm:$0xff]
    %v2904 = vld [vmem:[%s2875 + $0xe0] sm:$0xff]
    %v2905 = vld [vmem:[%s2875 + $0xe8] sm:$0xff]
    %v2906 = vld [vmem:[%s2875 + $0xf0] sm:$0xff]
    %v2907 = vld [vmem:[%s2875 + $0xf8] sm:$0xff]
    %s2908 = scalar_lea.vmem [#allocation8], 512
    %v2909 = vld [vmem:[%s2908] sm:$0xff]
    %v2910 = vld [vmem:[%s2908 + $0x8] sm:$0xff]
    %v2911 = vld [vmem:[%s2908 + $0x10] sm:$0xff]
    %v2912 = vld [vmem:[%s2908 + $0x18] sm:$0xff]
    %v2913 = vld [vmem:[%s2908 + $0x20] sm:$0xff]
    %v2914 = vld [vmem:[%s2908 + $0x28] sm:$0xff]
    %v2915 = vld [vmem:[%s2908 + $0x30] sm:$0xff]
    %v2916 = vld [vmem:[%s2908 + $0x38] sm:$0xff]
    %v2917 = vld [vmem:[%s2908 + $0x40] sm:$0xff]
    %v2918 = vld [vmem:[%s2908 + $0x48] sm:$0xff]
    %v2919 = vld [vmem:[%s2908 + $0x50] sm:$0xff]
    %v2920 = vld [vmem:[%s2908 + $0x58] sm:$0xff]
    %v2921 = vld [vmem:[%s2908 + $0x60] sm:$0xff]
    %v2922 = vld [vmem:[%s2908 + $0x68] sm:$0xff]
    %v2923 = vld [vmem:[%s2908 + $0x70] sm:$0xff]
    %v2924 = vld [vmem:[%s2908 + $0x78] sm:$0xff]
    %v2925 = vld [vmem:[%s2908 + $0x80] sm:$0xff]
    %v2926 = vld [vmem:[%s2908 + $0x88] sm:$0xff]
    %v2927 = vld [vmem:[%s2908 + $0x90] sm:$0xff]
    %v2928 = vld [vmem:[%s2908 + $0x98] sm:$0xff]
    %v2929 = vld [vmem:[%s2908 + $0xa0] sm:$0xff]
    %v2930 = vld [vmem:[%s2908 + $0xa8] sm:$0xff]
    %v2931 = vld [vmem:[%s2908 + $0xb0] sm:$0xff]
    %v2932 = vld [vmem:[%s2908 + $0xb8] sm:$0xff]
    %v2933 = vld [vmem:[%s2908 + $0xc0] sm:$0xff]
    %v2934 = vld [vmem:[%s2908 + $0xc8] sm:$0xff]
    %v2935 = vld [vmem:[%s2908 + $0xd0] sm:$0xff]
    %v2936 = vld [vmem:[%s2908 + $0xd8] sm:$0xff]
    %v2937 = vld [vmem:[%s2908 + $0xe0] sm:$0xff]
    %v2938 = vld [vmem:[%s2908 + $0xe8] sm:$0xff]
    %v2939 = vld [vmem:[%s2908 + $0xf0] sm:$0xff]
    %v2940 = vld [vmem:[%s2908 + $0xf8] sm:$0xff]
    %s2941 = scalar_lea.vmem %s5, 8
    %v2942 = vld [vmem:[%s2941] sm:$0xf]
    %s2943 = scalar_lea.vmem [#allocation10], 128
    %v2944 = vld [vmem:[%s2943] sm:$0xf]
    %v2945 = vld [vmem:[%s2943 + $0x4] sm:$0xf]
    %v2946 = vld [vmem:[%s2943 + $0x8] sm:$0xf]
    %v2947 = vld [vmem:[%s2943 + $0xc] sm:$0xf]
    %v2948 = vld [vmem:[%s2943 + $0x10] sm:$0xf]
    %v2949 = vld [vmem:[%s2943 + $0x14] sm:$0xf]
    %v2950 = vld [vmem:[%s2943 + $0x18] sm:$0xf]
    %v2951 = vld [vmem:[%s2943 + $0x1c] sm:$0xf]
    %v2952 = vld [vmem:[%s2943 + $0x20] sm:$0xf]
    %v2953 = vld [vmem:[%s2943 + $0x24] sm:$0xf]
    %v2954 = vld [vmem:[%s2943 + $0x28] sm:$0xf]
    %v2955 = vld [vmem:[%s2943 + $0x2c] sm:$0xf]
    %v2956 = vld [vmem:[%s2943 + $0x30] sm:$0xf]
    %v2957 = vld [vmem:[%s2943 + $0x34] sm:$0xf]
    %v2958 = vld [vmem:[%s2943 + $0x38] sm:$0xf]
    %v2959 = vld [vmem:[%s2943 + $0x3c] sm:$0xf]
    %s2960 = scalar_lea.vmem [#allocation11], 512
    %v2961 = vld [vmem:[%s2960] sm:$0xff]
    %v2962 = vld [vmem:[%s2960 + $0x8] sm:$0xff]
    %v2963 = vld [vmem:[%s2960 + $0x10] sm:$0xff]
    %v2964 = vld [vmem:[%s2960 + $0x18] sm:$0xff]
    %v2965 = vld [vmem:[%s2960 + $0x20] sm:$0xff]
    %v2966 = vld [vmem:[%s2960 + $0x28] sm:$0xff]
    %v2967 = vld [vmem:[%s2960 + $0x30] sm:$0xff]
    %v2968 = vld [vmem:[%s2960 + $0x38] sm:$0xff]
    %v2969 = vld [vmem:[%s2960 + $0x40] sm:$0xff]
    %v2970 = vld [vmem:[%s2960 + $0x48] sm:$0xff]
    %v2971 = vld [vmem:[%s2960 + $0x50] sm:$0xff]
    %v2972 = vld [vmem:[%s2960 + $0x58] sm:$0xff]
    %v2973 = vld [vmem:[%s2960 + $0x60] sm:$0xff]
    %v2974 = vld [vmem:[%s2960 + $0x68] sm:$0xff]
    %v2975 = vld [vmem:[%s2960 + $0x70] sm:$0xff]
    %v2976 = vld [vmem:[%s2960 + $0x78] sm:$0xff]
    %v2977 = vld [vmem:[%s2960 + $0x80] sm:$0xff]
    %v2978 = vld [vmem:[%s2960 + $0x88] sm:$0xff]
    %v2979 = vld [vmem:[%s2960 + $0x90] sm:$0xff]
    %v2980 = vld [vmem:[%s2960 + $0x98] sm:$0xff]
    %v2981 = vld [vmem:[%s2960 + $0xa0] sm:$0xff]
    %v2982 = vld [vmem:[%s2960 + $0xa8] sm:$0xff]
    %v2983 = vld [vmem:[%s2960 + $0xb0] sm:$0xff]
    %v2984 = vld [vmem:[%s2960 + $0xb8] sm:$0xff]
    %v2985 = vld [vmem:[%s2960 + $0xc0] sm:$0xff]
    %v2986 = vld [vmem:[%s2960 + $0xc8] sm:$0xff]
    %v2987 = vld [vmem:[%s2960 + $0xd0] sm:$0xff]
    %v2988 = vld [vmem:[%s2960 + $0xd8] sm:$0xff]
    %v2989 = vld [vmem:[%s2960 + $0xe0] sm:$0xff]
    %v2990 = vld [vmem:[%s2960 + $0xe8] sm:$0xff]
    %v2991 = vld [vmem:[%s2960 + $0xf0] sm:$0xff]
    %v2992 = vld [vmem:[%s2960 + $0xf8] sm:$0xff]
    %s2993 = scalar_lea.vmem [#allocation13], 512
    %v2994 = vld [vmem:[%s2993] sm:$0xf]
    %v2995 = vld [vmem:[%s2993 + $0x4] sm:$0xf]
    %v2996 = vld [vmem:[%s2993 + $0x8] sm:$0xf]
    %v2997 = vld [vmem:[%s2993 + $0xc] sm:$0xf]
    %v2998 = vld [vmem:[%s2993 + $0x10] sm:$0xf]
    %v2999 = vld [vmem:[%s2993 + $0x14] sm:$0xf]
    %v3000 = vld [vmem:[%s2993 + $0x18] sm:$0xf]
    %v3001 = vld [vmem:[%s2993 + $0x1c] sm:$0xf]
    %v3002 = vld [vmem:[%s2993 + $0x20] sm:$0xf]
    %v3003 = vld [vmem:[%s2993 + $0x24] sm:$0xf]
    %v3004 = vld [vmem:[%s2993 + $0x28] sm:$0xf]
    %v3005 = vld [vmem:[%s2993 + $0x2c] sm:$0xf]
    %v3006 = vld [vmem:[%s2993 + $0x30] sm:$0xf]
    %v3007 = vld [vmem:[%s2993 + $0x34] sm:$0xf]
    %v3008 = vld [vmem:[%s2993 + $0x38] sm:$0xf]
    %v3009 = vld [vmem:[%s2993 + $0x3c] sm:$0xf]
    %v3010 = vld [vmem:[%s2993 + $0x40] sm:$0xf]
    %v3011 = vld [vmem:[%s2993 + $0x44] sm:$0xf]
    %v3012 = vld [vmem:[%s2993 + $0x48] sm:$0xf]
    %v3013 = vld [vmem:[%s2993 + $0x4c] sm:$0xf]
    %v3014 = vld [vmem:[%s2993 + $0x50] sm:$0xf]
    %v3015 = vld [vmem:[%s2993 + $0x54] sm:$0xf]
    %v3016 = vld [vmem:[%s2993 + $0x58] sm:$0xf]
    %v3017 = vld [vmem:[%s2993 + $0x5c] sm:$0xf]
    %v3018 = vld [vmem:[%s2993 + $0x60] sm:$0xf]
    %v3019 = vld [vmem:[%s2993 + $0x64] sm:$0xf]
    %v3020 = vld [vmem:[%s2993 + $0x68] sm:$0xf]
    %v3021 = vld [vmem:[%s2993 + $0x6c] sm:$0xf]
    %v3022 = vld [vmem:[%s2993 + $0x70] sm:$0xf]
    %v3023 = vld [vmem:[%s2993 + $0x74] sm:$0xf]
    %v3024 = vld [vmem:[%s2993 + $0x78] sm:$0xf]
    %v3025 = vld [vmem:[%s2993 + $0x7c] sm:$0xf]
    %v3026 = vld [vmem:[%s2993 + $0x80] sm:$0xf]
    %v3027 = vld [vmem:[%s2993 + $0x84] sm:$0xf]
    %v3028 = vld [vmem:[%s2993 + $0x88] sm:$0xf]
    %v3029 = vld [vmem:[%s2993 + $0x8c] sm:$0xf]
    %v3030 = vld [vmem:[%s2993 + $0x90] sm:$0xf]
    %v3031 = vld [vmem:[%s2993 + $0x94] sm:$0xf]
    %v3032 = vld [vmem:[%s2993 + $0x98] sm:$0xf]
    %v3033 = vld [vmem:[%s2993 + $0x9c] sm:$0xf]
    %v3034 = vld [vmem:[%s2993 + $0xa0] sm:$0xf]
    %v3035 = vld [vmem:[%s2993 + $0xa4] sm:$0xf]
    %v3036 = vld [vmem:[%s2993 + $0xa8] sm:$0xf]
    %v3037 = vld [vmem:[%s2993 + $0xac] sm:$0xf]
    %v3038 = vld [vmem:[%s2993 + $0xb0] sm:$0xf]
    %v3039 = vld [vmem:[%s2993 + $0xb4] sm:$0xf]
    %v3040 = vld [vmem:[%s2993 + $0xb8] sm:$0xf]
    %v3041 = vld [vmem:[%s2993 + $0xbc] sm:$0xf]
    %v3042 = vld [vmem:[%s2993 + $0xc0] sm:$0xf]
    %v3043 = vld [vmem:[%s2993 + $0xc4] sm:$0xf]
    %v3044 = vld [vmem:[%s2993 + $0xc8] sm:$0xf]
    %v3045 = vld [vmem:[%s2993 + $0xcc] sm:$0xf]
    %v3046 = vld [vmem:[%s2993 + $0xd0] sm:$0xf]
    %v3047 = vld [vmem:[%s2993 + $0xd4] sm:$0xf]
    %v3048 = vld [vmem:[%s2993 + $0xd8] sm:$0xf]
    %v3049 = vld [vmem:[%s2993 + $0xdc] sm:$0xf]
    %v3050 = vld [vmem:[%s2993 + $0xe0] sm:$0xf]
    %v3051 = vld [vmem:[%s2993 + $0xe4] sm:$0xf]
    %v3052 = vld [vmem:[%s2993 + $0xe8] sm:$0xf]
    %v3053 = vld [vmem:[%s2993 + $0xec] sm:$0xf]
    %v3054 = vld [vmem:[%s2993 + $0xf0] sm:$0xf]
    %v3055 = vld [vmem:[%s2993 + $0xf4] sm:$0xf]
    %v3056 = vld [vmem:[%s2993 + $0xf8] sm:$0xf]
    %v3057 = vld [vmem:[%s2993 + $0xfc] sm:$0xf]
    %3058 = vadd.xlane.f32.xlu0 %v2860
    %v3059 = vpop.xlane.xlu0 %3058
    %v3060 = vmul.f32 %v3059, %v319
    %v3061 = vsub.f32 %v2860, %v3060
    %v3062 = vmul.f32 %v3061, %v3061
    %3063 = vadd.xlane.f32.xlu0 %v3062
    %v3064 = vpop.xlane.xlu0 %3063
    %v3065 = vmul.f32 %v3064, %v319
    %v3066 = vadd.f32 %v3065, 1e-06
    %v3067 = vrsqrt.pop %v3066
    %v3068 = vmul.f32 %v3061, %v3067
    %v3069 = vlaneseq
    %v3070 = vshrl.u32 %v3069, 7
    %v3071 = vsub.s32 0, %v3070
    %v3072 = vrot.slane %v2874, %v3071
    %v3073 = vmul.f32 %v3068, %v3072
    %v3074 = vlaneseq
    %v3075 = vshrl.u32 %v3074, 7
    %v3076 = vsub.s32 1, %v3075
    %v3077 = vrot.slane %v2874, %v3076
    %v3078 = vadd.f32 %v3073, %v3077
    %v3079 = vlaneseq
    %v3080 = vshrl.u32 %v3079, 7
    %v3081 = vsub.s32 2, %v3080
    %v3082 = vrot.slane %v2874, %v3081
    %v3083 = vmul.f32 %v3068, %v3082
    %v3084 = vlaneseq
    %v3085 = vshrl.u32 %v3084, 7
    %v3086 = vsub.s32 3, %v3085
    %v3087 = vrot.slane %v2874, %v3086
    %v3088 = vadd.f32 %v3083, %v3087
    %v3089 = vpack.c.bf16 %v3078, %v3078
    %v3090 = vpack.c.bf16 %v2872, %v2872
    %v3123 = vunpack.c.l.b16 %v2909
    %v3124 = vunpack.c.h.b16 %v2909
    %v3125 = vunpack.c.l.b16 %v2910
    %v3126 = vunpack.c.h.b16 %v2910
    %v3127 = vunpack.c.l.b16 %v2911
    %v3128 = vunpack.c.h.b16 %v2911
    %v3129 = vunpack.c.l.b16 %v2912
    %v3130 = vunpack.c.h.b16 %v2912
    %v3131 = vunpack.c.l.b16 %v2913
    %v3132 = vunpack.c.h.b16 %v2913
    %v3133 = vunpack.c.l.b16 %v2914
    %v3134 = vunpack.c.h.b16 %v2914
    %v3135 = vunpack.c.l.b16 %v2915
    %v3136 = vunpack.c.h.b16 %v2915
    %v3137 = vunpack.c.l.b16 %v2916
    %v3138 = vunpack.c.h.b16 %v2916
    %v3139 = vunpack.c.l.b16 %v2917
    %v3140 = vunpack.c.h.b16 %v2917
    %v3141 = vunpack.c.l.b16 %v2918
    %v3142 = vunpack.c.h.b16 %v2918
    %v3143 = vunpack.c.l.b16 %v2919
    %v3144 = vunpack.c.h.b16 %v2919
    %v3145 = vunpack.c.l.b16 %v2920
    %v3146 = vunpack.c.h.b16 %v2920
    %v3147 = vunpack.c.l.b16 %v2921
    %v3148 = vunpack.c.h.b16 %v2921
    %v3149 = vunpack.c.l.b16 %v2922
    %v3150 = vunpack.c.h.b16 %v2922
    %v3151 = vunpack.c.l.b16 %v2923
    %v3152 = vunpack.c.h.b16 %v2923
    %v3153 = vunpack.c.l.b16 %v2924
    %v3154 = vunpack.c.h.b16 %v2924
    %v3155 = vunpack.c.l.b16 %v2925
    %v3156 = vunpack.c.h.b16 %v2925
    %v3157 = vunpack.c.l.b16 %v2926
    %v3158 = vunpack.c.h.b16 %v2926
    %v3159 = vunpack.c.l.b16 %v2927
    %v3160 = vunpack.c.h.b16 %v2927
    %v3161 = vunpack.c.l.b16 %v2928
    %v3162 = vunpack.c.h.b16 %v2928
    %v3163 = vunpack.c.l.b16 %v2929
    %v3164 = vunpack.c.h.b16 %v2929
    %v3165 = vunpack.c.l.b16 %v2930
    %v3166 = vunpack.c.h.b16 %v2930
    %v3167 = vunpack.c.l.b16 %v2931
    %v3168 = vunpack.c.h.b16 %v2931
    %v3169 = vunpack.c.l.b16 %v2932
    %v3170 = vunpack.c.h.b16 %v2932
    %v3171 = vunpack.c.l.b16 %v2933
    %v3172 = vunpack.c.h.b16 %v2933
    %v3173 = vunpack.c.l.b16 %v2934
    %v3174 = vunpack.c.h.b16 %v2934
    %v3175 = vunpack.c.l.b16 %v2935
    %v3176 = vunpack.c.h.b16 %v2935
    %v3177 = vunpack.c.l.b16 %v2936
    %v3178 = vunpack.c.h.b16 %v2936
    %v3179 = vunpack.c.l.b16 %v2937
    %v3180 = vunpack.c.h.b16 %v2937
    %v3181 = vunpack.c.l.b16 %v2938
    %v3182 = vunpack.c.h.b16 %v2938
    %v3183 = vunpack.c.l.b16 %v2939
    %v3184 = vunpack.c.h.b16 %v2939
    %v3185 = vunpack.c.l.b16 %v2940
    %v3186 = vunpack.c.h.b16 %v2940
    %v3187 = vpack.c.b16 %v3127, %v3123
    %v3188 = vpack.c.b16 %v3128, %v3124
    %v3189 = vpack.c.b16 %v3129, %v3125
    %v3190 = vpack.c.b16 %v3130, %v3126
    %v3191 = vpack.c.b16 %v3135, %v3131
    %v3192 = vpack.c.b16 %v3136, %v3132
    %v3193 = vpack.c.b16 %v3137, %v3133
    %v3194 = vpack.c.b16 %v3138, %v3134
    %v3195 = vpack.c.b16 %v3143, %v3139
    %v3196 = vpack.c.b16 %v3144, %v3140
    %v3197 = vpack.c.b16 %v3145, %v3141
    %v3198 = vpack.c.b16 %v3146, %v3142
    %v3199 = vpack.c.b16 %v3151, %v3147
    %v3200 = vpack.c.b16 %v3152, %v3148
    %v3201 = vpack.c.b16 %v3153, %v3149
    %v3202 = vpack.c.b16 %v3154, %v3150
    %v3203 = vpack.c.b16 %v3159, %v3155
    %v3204 = vpack.c.b16 %v3160, %v3156
    %v3205 = vpack.c.b16 %v3161, %v3157
    %v3206 = vpack.c.b16 %v3162, %v3158
    %v3207 = vpack.c.b16 %v3167, %v3163
    %v3208 = vpack.c.b16 %v3168, %v3164
    %v3209 = vpack.c.b16 %v3169, %v3165
    %v3210 = vpack.c.b16 %v3170, %v3166
    %v3211 = vpack.c.b16 %v3175, %v3171
    %v3212 = vpack.c.b16 %v3176, %v3172
    %v3213 = vpack.c.b16 %v3177, %v3173
    %v3214 = vpack.c.b16 %v3178, %v3174
    %v3215 = vpack.c.b16 %v3183, %v3179
    %v3216 = vpack.c.b16 %v3184, %v3180
    %v3217 = vpack.c.b16 %v3185, %v3181
    %v3218 = vpack.c.b16 %v3186, %v3182
    %3251 = vmatprep.subr.bf16.mxu0 %v3188
    %3252 = vmatpush1.bf16.msra.mxu0 %v3187
    %3253 = vmatprep.subr.bf16.mxu0 %v3192
    %3254 = vmatpush1.bf16.msra.mxu0 %v3191
    %3255 = vmatprep.subr.bf16.mxu0 %v3196
    %3256 = vmatpush1.bf16.msra.mxu0 %v3195
    %3257 = vmatprep.subr.bf16.mxu0 %v3200
    %3258 = vmatpush1.bf16.msra.mxu0 %v3199
    %3259 = vmatprep.subr.bf16.mxu0 %v3204
    %3260 = vmatpush1.bf16.msra.mxu0 %v3203
    %3261 = vmatprep.subr.bf16.mxu0 %v3208
    %3262 = vmatpush1.bf16.msra.mxu0 %v3207
    %3263 = vmatprep.subr.bf16.mxu0 %v3212
    %3264 = vmatpush1.bf16.msra.mxu0 %v3211
    %3265 = vmatprep.subr.bf16.mxu0 %v3216
    %3266 = vmatpush1.bf16.msra.mxu0 %v3215
    %3267 = vmatprep.subr.bf16.mxu0 0
    %3268 = vmatpush1.bf16.msra.mxu0 0
    %3269 = vmatprep.subr.bf16.mxu0 0
    %3270 = vmatpush1.bf16.msra.mxu0 0
    %3271 = vmatprep.subr.bf16.mxu0 0
    %3272 = vmatpush1.bf16.msra.mxu0 0
    %3273 = vmatprep.subr.bf16.mxu0 0
    %3274 = vmatpush1.bf16.msra.mxu0 0
    %3275 = vmatprep.subr.bf16.mxu0 0
    %3276 = vmatpush1.bf16.msra.mxu0 0
    %3277 = vmatprep.subr.bf16.mxu0 0
    %3278 = vmatpush1.bf16.msra.mxu0 0
    %3279 = vmatprep.subr.bf16.mxu0 0
    %3280 = vmatpush1.bf16.msra.mxu0 0
    %3281 = vmatprep.subr.bf16.mxu0 0
    %3282 = vmatpush1.bf16.msra.mxu0 0
    %3283 = vmatprep.mubr.bf16.mxu0 0
    %3284 = vmatmul.mubr.bf16.gmra.mrb[0].mxu0 %v3090
    %v3285 = vpop.f32.mrb[0].mxu0
    %v3286 = vadd.f32 0.0, %v3285
    %v3287 = vpop.f32.mrb[0].mxu0
    %v3288 = vadd.f32 0.0, %v3287
    %v3289 = vpop.f32.mrb[0].mxu0
    %v3290 = vpop.f32.mrb[0].mxu0
    %3291 = vdwg.mxu0
    %3292 = vmatprep.subr.bf16.mxu0 %v3190
    %3293 = vmatpush1.bf16.msra.mxu0 %v3189
    %3294 = vmatprep.subr.bf16.mxu0 %v3194
    %3295 = vmatpush1.bf16.msra.mxu0 %v3193
    %3296 = vmatprep.subr.bf16.mxu0 %v3198
    %3297 = vmatpush1.bf16.msra.mxu0 %v3197
    %3298 = vmatprep.subr.bf16.mxu0 %v3202
    %3299 = vmatpush1.bf16.msra.mxu0 %v3201
    %3300 = vmatprep.subr.bf16.mxu0 %v3206
    %3301 = vmatpush1.bf16.msra.mxu0 %v3205
    %3302 = vmatprep.subr.bf16.mxu0 %v3210
    %3303 = vmatpush1.bf16.msra.mxu0 %v3209
    %3304 = vmatprep.subr.bf16.mxu0 %v3214
    %3305 = vmatpush1.bf16.msra.mxu0 %v3213
    %3306 = vmatprep.subr.bf16.mxu0 %v3218
    %3307 = vmatpush1.bf16.msra.mxu0 %v3217
    %3308 = vmatprep.subr.bf16.mxu0 0
    %3309 = vmatpush1.bf16.msra.mxu0 0
    %3310 = vmatprep.subr.bf16.mxu0 0
    %3311 = vmatpush1.bf16.msra.mxu0 0
    %3312 = vmatprep.subr.bf16.mxu0 0
    %3313 = vmatpush1.bf16.msra.mxu0 0
    %3314 = vmatprep.subr.bf16.mxu0 0
    %3315 = vmatpush1.bf16.msra.mxu0 0
    %3316 = vmatprep.subr.bf16.mxu0 0
    %3317 = vmatpush1.bf16.msra.mxu0 0
    %3318 = vmatprep.subr.bf16.mxu0 0
    %3319 = vmatpush1.bf16.msra.mxu0 0
    %3320 = vmatprep.subr.bf16.mxu0 0
    %3321 = vmatpush1.bf16.msra.mxu0 0
    %3322 = vmatprep.subr.bf16.mxu0 0
    %3323 = vmatpush1.bf16.msra.mxu0 0
    %3324 = vmatprep.mubr.bf16.mxu0 0
    %3325 = vmatmul.mubr.bf16.gmra.mrb[0].mxu0 %v3090
    %v3326 = vpop.f32.mrb[0].mxu0
    %v3327 = vadd.f32 0.0, %v3326
    %v3328 = vpop.f32.mrb[0].mxu0
    %v3329 = vadd.f32 0.0, %v3328
    %v3330 = vpop.f32.mrb[0].mxu0
    %v3331 = vpop.f32.mrb[0].mxu0
    %3332 = vdwg.mxu0
    %v3365 = vunpack.c.l.b16 %v2876
    %v3366 = vunpack.c.h.b16 %v2876
    %v3367 = vunpack.c.l.b16 %v2877
    %v3368 = vunpack.c.h.b16 %v2877
    %v3369 = vunpack.c.l.b16 %v2878
    %v3370 = vunpack.c.h.b16 %v2878
    %v3371 = vunpack.c.l.b16 %v2879
    %v3372 = vunpack.c.h.b16 %v2879
    %v3373 = vunpack.c.l.b16 %v2880
    %v3374 = vunpack.c.h.b16 %v2880
    %v3375 = vunpack.c.l.b16 %v2881
    %v3376 = vunpack.c.h.b16 %v2881
    %v3377 = vunpack.c.l.b16 %v2882
    %v3378 = vunpack.c.h.b16 %v2882
    %v3379 = vunpack.c.l.b16 %v2883
    %v3380 = vunpack.c.h.b16 %v2883
    %v3381 = vunpack.c.l.b16 %v2884
    %v3382 = vunpack.c.h.b16 %v2884
    %v3383 = vunpack.c.l.b16 %v2885
    %v3384 = vunpack.c.h.b16 %v2885
    %v3385 = vunpack.c.l.b16 %v2886
    %v3386 = vunpack.c.h.b16 %v2886
    %v3387 = vunpack.c.l.b16 %v2887
    %v3388 = vunpack.c.h.b16 %v2887
    %v3389 = vunpack.c.l.b16 %v2888
    %v3390 = vunpack.c.h.b16 %v2888
    %v3391 = vunpack.c.l.b16 %v2889
    %v3392 = vunpack.c.h.b16 %v2889
    %v3393 = vunpack.c.l.b16 %v2890
    %v3394 = vunpack.c.h.b16 %v2890
    %v3395 = vunpack.c.l.b16 %v2891
    %v3396 = vunpack.c.h.b16 %v2891
    %v3397 = vunpack.c.l.b16 %v2892
    %v3398 = vunpack.c.h.b16 %v2892
    %v3399 = vunpack.c.l.b16 %v2893
    %v3400 = vunpack.c.h.b16 %v2893
    %v3401 = vunpack.c.l.b16 %v2894
    %v3402 = vunpack.c.h.b16 %v2894
    %v3403 = vunpack.c.l.b16 %v2895
    %v3404 = vunpack.c.h.b16 %v2895
    %v3405 = vunpack.c.l.b16 %v2896
    %v3406 = vunpack.c.h.b16 %v2896
    %v3407 = vunpack.c.l.b16 %v2897
    %v3408 = vunpack.c.h.b16 %v2897
    %v3409 = vunpack.c.l.b16 %v2898
    %v3410 = vunpack.c.h.b16 %v2898
    %v3411 = vunpack.c.l.b16 %v2899
    %v3412 = vunpack.c.h.b16 %v2899
    %v3413 = vunpack.c.l.b16 %v2900
    %v3414 = vunpack.c.h.b16 %v2900
    %v3415 = vunpack.c.l.b16 %v2901
    %v3416 = vunpack.c.h.b16 %v2901
    %v3417 = vunpack.c.l.b16 %v2902
    %v3418 = vunpack.c.h.b16 %v2902
    %v3419 = vunpack.c.l.b16 %v2903
    %v3420 = vunpack.c.h.b16 %v2903
    %v3421 = vunpack.c.l.b16 %v2904
    %v3422 = vunpack.c.h.b16 %v2904
    %v3423 = vunpack.c.l.b16 %v2905
    %v3424 = vunpack.c.h.b16 %v2905
    %v3425 = vunpack.c.l.b16 %v2906
    %v3426 = vunpack.c.h.b16 %v2906
    %v3427 = vunpack.c.l.b16 %v2907
    %v3428 = vunpack.c.h.b16 %v2907
    %v3429 = vpack.c.b16 %v3369, %v3365
    %v3430 = vpack.c.b16 %v3370, %v3366
    %v3431 = vpack.c.b16 %v3371, %v3367
    %v3432 = vpack.c.b16 %v3372, %v3368
    %v3433 = vpack.c.b16 %v3377, %v3373
    %v3434 = vpack.c.b16 %v3378, %v3374
    %v3435 = vpack.c.b16 %v3379, %v3375
    %v3436 = vpack.c.b16 %v3380, %v3376
    %v3437 = vpack.c.b16 %v3385, %v3381
    %v3438 = vpack.c.b16 %v3386, %v3382
    %v3439 = vpack.c.b16 %v3387, %v3383
    %v3440 = vpack.c.b16 %v3388, %v3384
    %v3441 = vpack.c.b16 %v3393, %v3389
    %v3442 = vpack.c.b16 %v3394, %v3390
    %v3443 = vpack.c.b16 %v3395, %v3391
    %v3444 = vpack.c.b16 %v3396, %v3392
    %v3445 = vpack.c.b16 %v3401, %v3397
    %v3446 = vpack.c.b16 %v3402, %v3398
    %v3447 = vpack.c.b16 %v3403, %v3399
    %v3448 = vpack.c.b16 %v3404, %v3400
    %v3449 = vpack.c.b16 %v3409, %v3405
    %v3450 = vpack.c.b16 %v3410, %v3406
    %v3451 = vpack.c.b16 %v3411, %v3407
    %v3452 = vpack.c.b16 %v3412, %v3408
    %v3453 = vpack.c.b16 %v3417, %v3413
    %v3454 = vpack.c.b16 %v3418, %v3414
    %v3455 = vpack.c.b16 %v3419, %v3415
    %v3456 = vpack.c.b16 %v3420, %v3416
    %v3457 = vpack.c.b16 %v3425, %v3421
    %v3458 = vpack.c.b16 %v3426, %v3422
    %v3459 = vpack.c.b16 %v3427, %v3423
    %v3460 = vpack.c.b16 %v3428, %v3424
    %3493 = vmatprep.subr.bf16.mxu0 %v3430
    %3494 = vmatpush1.bf16.msra.mxu0 %v3429
    %3495 = vmatprep.subr.bf16.mxu0 %v3434
    %3496 = vmatpush1.bf16.msra.mxu0 %v3433
    %3497 = vmatprep.subr.bf16.mxu0 %v3438
    %3498 = vmatpush1.bf16.msra.mxu0 %v3437
    %3499 = vmatprep.subr.bf16.mxu0 %v3442
    %3500 = vmatpush1.bf16.msra.mxu0 %v3441
    %3501 = vmatprep.subr.bf16.mxu0 %v3446
    %3502 = vmatpush1.bf16.msra.mxu0 %v3445
    %3503 = vmatprep.subr.bf16.mxu0 %v3450
    %3504 = vmatpush1.bf16.msra.mxu0 %v3449
    %3505 = vmatprep.subr.bf16.mxu0 %v3454
    %3506 = vmatpush1.bf16.msra.mxu0 %v3453
    %3507 = vmatprep.subr.bf16.mxu0 %v3458
    %3508 = vmatpush1.bf16.msra.mxu0 %v3457
    %3509 = vmatprep.subr.bf16.mxu0 0
    %3510 = vmatpush1.bf16.msra.mxu0 0
    %3511 = vmatprep.subr.bf16.mxu0 0
    %3512 = vmatpush1.bf16.msra.mxu0 0
    %3513 = vmatprep.subr.bf16.mxu0 0
    %3514 = vmatpush1.bf16.msra.mxu0 0
    %3515 = vmatprep.subr.bf16.mxu0 0
    %3516 = vmatpush1.bf16.msra.mxu0 0
    %3517 = vmatprep.subr.bf16.mxu0 0
    %3518 = vmatpush1.bf16.msra.mxu0 0
    %3519 = vmatprep.subr.bf16.mxu0 0
    %3520 = vmatpush1.bf16.msra.mxu0 0
    %3521 = vmatprep.subr.bf16.mxu0 0
    %3522 = vmatpush1.bf16.msra.mxu0 0
    %3523 = vmatprep.subr.bf16.mxu0 0
    %3524 = vmatpush1.bf16.msra.mxu0 0
    %3525 = vmatprep.mubr.bf16.mxu0 0
    %3526 = vmatmul.mubr.bf16.gmra.mrb[0].mxu0 %v3089
    %v3527 = vpop.f32.mrb[0].mxu0
    %v3528 = vadd.f32 %v3286, %v3527
    %v3529 = vpop.f32.mrb[0].mxu0
    %v3530 = vadd.f32 %v3288, %v3529
    %v3531 = vpop.f32.mrb[0].mxu0
    %v3532 = vpop.f32.mrb[0].mxu0
    %3533 = vdwg.mxu0
    %3534 = vmatprep.subr.bf16.mxu0 %v3432
    %3535 = vmatpush1.bf16.msra.mxu0 %v3431
    %3536 = vmatprep.subr.bf16.mxu0 %v3436
    %3537 = vmatpush1.bf16.msra.mxu0 %v3435
    %3538 = vmatprep.subr.bf16.mxu0 %v3440
    %3539 = vmatpush1.bf16.msra.mxu0 %v3439
    %3540 = vmatprep.subr.bf16.mxu0 %v3444
    %3541 = vmatpush1.bf16.msra.mxu0 %v3443
    %3542 = vmatprep.subr.bf16.mxu0 %v3448
    %3543 = vmatpush1.bf16.msra.mxu0 %v3447
    %3544 = vmatprep.subr.bf16.mxu0 %v3452
    %3545 = vmatpush1.bf16.msra.mxu0 %v3451
    %3546 = vmatprep.subr.bf16.mxu0 %v3456
    %3547 = vmatpush1.bf16.msra.mxu0 %v3455
    %3548 = vmatprep.subr.bf16.mxu0 %v3460
    %3549 = vmatpush1.bf16.msra.mxu0 %v3459
    %3550 = vmatprep.subr.bf16.mxu0 0
    %3551 = vmatpush1.bf16.msra.mxu0 0
    %3552 = vmatprep.subr.bf16.mxu0 0
    %3553 = vmatpush1.bf16.msra.mxu0 0
    %3554 = vmatprep.subr.bf16.mxu0 0
    %3555 = vmatpush1.bf16.msra.mxu0 0
    %3556 = vmatprep.subr.bf16.mxu0 0
    %3557 = vmatpush1.bf16.msra.mxu0 0
    %3558 = vmatprep.subr.bf16.mxu0 0
    %3559 = vmatpush1.bf16.msra.mxu0 0
    %3560 = vmatprep.subr.bf16.mxu0 0
    %3561 = vmatpush1.bf16.msra.mxu0 0
    %3562 = vmatprep.subr.bf16.mxu0 0
    %3563 = vmatpush1.bf16.msra.mxu0 0
    %3564 = vmatprep.subr.bf16.mxu0 0
    %3565 = vmatpush1.bf16.msra.mxu0 0
    %3566 = vmatprep.mubr.bf16.mxu0 0
    %3567 = vmatmul.mubr.bf16.gmra.mrb[0].mxu0 %v3089
    %v3568 = vpop.f32.mrb[0].mxu0
    %v3569 = vadd.f32 %v3327, %v3568
    %v3570 = vpop.f32.mrb[0].mxu0
    %v3571 = vadd.f32 %v3329, %v3570
    %v3572 = vpop.f32.mrb[0].mxu0
    %v3573 = vpop.f32.mrb[0].mxu0
    %3574 = vdwg.mxu0
    %v3576 = vlaneseq
    %v3577 = vshrl.u32 %v3576, 7
    %v3578 = vsub.s32 0, %v3577
    %v3579 = vrot.slane %v2942, %v3578
    %v3580 = vlaneseq
    %v3581 = vshrl.u32 %v3580, 7
    %v3582 = vsub.s32 1, %v3581
    %v3583 = vrot.slane %v2942, %v3582
    %v3584 = vlaneseq
    %v3585 = vshrl.u32 %v3584, 7
    %v3586 = vsub.s32 2, %v3585
    %v3587 = vrot.slane %v2942, %v3586
    %v3588 = vlaneseq
    %v3589 = vshrl.u32 %v3588, 7
    %v3590 = vsub.s32 3, %v3589
    %v3591 = vrot.slane %v2942, %v3590
    %v3596 = vadd.f32 %v3528, %v3579
    %v3597 = vadd.f32 %v3530, %v3583
    %v3598 = vadd.f32 %v3569, %v3587
    %v3599 = vadd.f32 %v3571, %v3591
    %v3600 = vtanh.pop %v3599
    %v3601 = vxor.u32 %v3596, 2147483648
    %v3602 = vxor.u32 %v3597, 2147483648
    %v3603 = vxor.u32 %v3598, 2147483648
    %v3604 = vmul.f32 %v3601, 1.442695
    %v3605 = vpow.pop %v3604
    %v3606 = vmul.f32 %v3602, 1.442695
    %v3607 = vpow.pop %v3606
    %v3608 = vmul.f32 %v3603, 1.442695
    %v3609 = vpow.pop %v3608
    %v3610 = vadd.f32 %v3605, 1.0
    %v3611 = vadd.f32 %v3607, 1.0
    %v3612 = vadd.f32 %v3609, 1.0
    %v3613 = vrcp.pop %v3610
    %v3614 = vmul.f32 1.0, %v3613
    %v3615 = vrcp.pop %v3611
    %v3616 = vmul.f32 1.0, %v3615
    %v3617 = vrcp.pop %v3612
    %v3618 = vmul.f32 1.0, %v3617
    %v3619 = vmul.f32 %v3616, %v2870
    %v3620 = vmul.f32 %v3614, %v3600
    %v3621 = vadd.f32 %v3619, %v3620
    %v3622 = vtanh.pop %v3621
    %v3623 = vmul.f32 %v3618, %v3622
    %v3624 = vpack.c.bf16 %v3088, %v3088
    %v3657 = vunpack.c.l.b16 %v2961
    %v3658 = vunpack.c.h.b16 %v2961
    %v3659 = vunpack.c.l.b16 %v2962
    %v3660 = vunpack.c.h.b16 %v2962
    %v3661 = vunpack.c.l.b16 %v2963
    %v3662 = vunpack.c.h.b16 %v2963
    %v3663 = vunpack.c.l.b16 %v2964
    %v3664 = vunpack.c.h.b16 %v2964
    %v3665 = vunpack.c.l.b16 %v2965
    %v3666 = vunpack.c.h.b16 %v2965
    %v3667 = vunpack.c.l.b16 %v2966
    %v3668 = vunpack.c.h.b16 %v2966
    %v3669 = vunpack.c.l.b16 %v2967
    %v3670 = vunpack.c.h.b16 %v2967
    %v3671 = vunpack.c.l.b16 %v2968
    %v3672 = vunpack.c.h.b16 %v2968
    %v3673 = vunpack.c.l.b16 %v2969
    %v3674 = vunpack.c.h.b16 %v2969
    %v3675 = vunpack.c.l.b16 %v2970
    %v3676 = vunpack.c.h.b16 %v2970
    %v3677 = vunpack.c.l.b16 %v2971
    %v3678 = vunpack.c.h.b16 %v2971
    %v3679 = vunpack.c.l.b16 %v2972
    %v3680 = vunpack.c.h.b16 %v2972
    %v3681 = vunpack.c.l.b16 %v2973
    %v3682 = vunpack.c.h.b16 %v2973
    %v3683 = vunpack.c.l.b16 %v2974
    %v3684 = vunpack.c.h.b16 %v2974
    %v3685 = vunpack.c.l.b16 %v2975
    %v3686 = vunpack.c.h.b16 %v2975
    %v3687 = vunpack.c.l.b16 %v2976
    %v3688 = vunpack.c.h.b16 %v2976
    %v3689 = vunpack.c.l.b16 %v2977
    %v3690 = vunpack.c.h.b16 %v2977
    %v3691 = vunpack.c.l.b16 %v2978
    %v3692 = vunpack.c.h.b16 %v2978
    %v3693 = vunpack.c.l.b16 %v2979
    %v3694 = vunpack.c.h.b16 %v2979
    %v3695 = vunpack.c.l.b16 %v2980
    %v3696 = vunpack.c.h.b16 %v2980
    %v3697 = vunpack.c.l.b16 %v2981
    %v3698 = vunpack.c.h.b16 %v2981
    %v3699 = vunpack.c.l.b16 %v2982
    %v3700 = vunpack.c.h.b16 %v2982
    %v3701 = vunpack.c.l.b16 %v2983
    %v3702 = vunpack.c.h.b16 %v2983
    %v3703 = vunpack.c.l.b16 %v2984
    %v3704 = vunpack.c.h.b16 %v2984
    %v3705 = vunpack.c.l.b16 %v2985
    %v3706 = vunpack.c.h.b16 %v2985
    %v3707 = vunpack.c.l.b16 %v2986
    %v3708 = vunpack.c.h.b16 %v2986
    %v3709 = vunpack.c.l.b16 %v2987
    %v3710 = vunpack.c.h.b16 %v2987
    %v3711 = vunpack.c.l.b16 %v2988
    %v3712 = vunpack.c.h.b16 %v2988
    %v3713 = vunpack.c.l.b16 %v2989
    %v3714 = vunpack.c.h.b16 %v2989
    %v3715 = vunpack.c.l.b16 %v2990
    %v3716 = vunpack.c.h.b16 %v2990
    %v3717 = vunpack.c.l.b16 %v2991
    %v3718 = vunpack.c.h.b16 %v2991
    %v3719 = vunpack.c.l.b16 %v2992
    %v3720 = vunpack.c.h.b16 %v2992
    %v3721 = vpack.c.b16 %v3661, %v3657
    %v3722 = vpack.c.b16 %v3662, %v3658
    %v3723 = vpack.c.b16 %v3663, %v3659
    %v3724 = vpack.c.b16 %v3664, %v3660
    %v3725 = vpack.c.b16 %v3669, %v3665
    %v3726 = vpack.c.b16 %v3670, %v3666
    %v3727 = vpack.c.b16 %v3671, %v3667
    %v3728 = vpack.c.b16 %v3672, %v3668
    %v3729 = vpack.c.b16 %v3677, %v3673
    %v3730 = vpack.c.b16 %v3678, %v3674
    %v3731 = vpack.c.b16 %v3679, %v3675
    %v3732 = vpack.c.b16 %v3680, %v3676
    %v3733 = vpack.c.b16 %v3685, %v3681
    %v3734 = vpack.c.b16 %v3686, %v3682
    %v3735 = vpack.c.b16 %v3687, %v3683
    %v3736 = vpack.c.b16 %v3688, %v3684
    %v3737 = vpack.c.b16 %v3693, %v3689
    %v3738 = vpack.c.b16 %v3694, %v3690
    %v3739 = vpack.c.b16 %v3695, %v3691
    %v3740 = vpack.c.b16 %v3696, %v3692
    %v3741 = vpack.c.b16 %v3701, %v3697
    %v3742 = vpack.c.b16 %v3702, %v3698
    %v3743 = vpack.c.b16 %v3703, %v3699
    %v3744 = vpack.c.b16 %v3704, %v3700
    %v3745 = vpack.c.b16 %v3709, %v3705
    %v3746 = vpack.c.b16 %v3710, %v3706
    %v3747 = vpack.c.b16 %v3711, %v3707
    %v3748 = vpack.c.b16 %v3712, %v3708
    %v3749 = vpack.c.b16 %v3717, %v3713
    %v3750 = vpack.c.b16 %v3718, %v3714
    %v3751 = vpack.c.b16 %v3719, %v3715
    %v3752 = vpack.c.b16 %v3720, %v3716
    %3785 = vmatprep.subr.bf16.mxu0 %v3722
    %3786 = vmatpush1.bf16.msra.mxu0 %v3721
    %3787 = vmatprep.subr.bf16.mxu0 %v3726
    %3788 = vmatpush1.bf16.msra.mxu0 %v3725
    %3789 = vmatprep.subr.bf16.mxu0 %v3730
    %3790 = vmatpush1.bf16.msra.mxu0 %v3729
    %3791 = vmatprep.subr.bf16.mxu0 %v3734
    %3792 = vmatpush1.bf16.msra.mxu0 %v3733
    %3793 = vmatprep.subr.bf16.mxu0 %v3738
    %3794 = vmatpush1.bf16.msra.mxu0 %v3737
    %3795 = vmatprep.subr.bf16.mxu0 %v3742
    %3796 = vmatpush1.bf16.msra.mxu0 %v3741
    %3797 = vmatprep.subr.bf16.mxu0 %v3746
    %3798 = vmatpush1.bf16.msra.mxu0 %v3745
    %3799 = vmatprep.subr.bf16.mxu0 %v3750
    %3800 = vmatpush1.bf16.msra.mxu0 %v3749
    %3801 = vmatprep.subr.bf16.mxu0 0
    %3802 = vmatpush1.bf16.msra.mxu0 0
    %3803 = vmatprep.subr.bf16.mxu0 0
    %3804 = vmatpush1.bf16.msra.mxu0 0
    %3805 = vmatprep.subr.bf16.mxu0 0
    %3806 = vmatpush1.bf16.msra.mxu0 0
    %3807 = vmatprep.subr.bf16.mxu0 0
    %3808 = vmatpush1.bf16.msra.mxu0 0
    %3809 = vmatprep.subr.bf16.mxu0 0
    %3810 = vmatpush1.bf16.msra.mxu0 0
    %3811 = vmatprep.subr.bf16.mxu0 0
    %3812 = vmatpush1.bf16.msra.mxu0 0
    %3813 = vmatprep.subr.bf16.mxu0 0
    %3814 = vmatpush1.bf16.msra.mxu0 0
    %3815 = vmatprep.subr.bf16.mxu0 0
    %3816 = vmatpush1.bf16.msra.mxu0 0
    %3817 = vmatprep.mubr.bf16.mxu0 0
    %3818 = vmatmul.mubr.bf16.gmra.mrb[0].mxu0 %v3624
    %v3819 = vpop.f32.mrb[0].mxu0
    %v3820 = vadd.f32 0.0, %v3819
    %v3821 = vpop.f32.mrb[0].mxu0
    %v3822 = vadd.f32 0.0, %v3821
    %v3823 = vpop.f32.mrb[0].mxu0
    %v3824 = vpop.f32.mrb[0].mxu0
    %3825 = vdwg.mxu0
    %3826 = vmatprep.subr.bf16.mxu0 %v3724
    %3827 = vmatpush1.bf16.msra.mxu0 %v3723
    %3828 = vmatprep.subr.bf16.mxu0 %v3728
    %3829 = vmatpush1.bf16.msra.mxu0 %v3727
    %3830 = vmatprep.subr.bf16.mxu0 %v3732
    %3831 = vmatpush1.bf16.msra.mxu0 %v3731
    %3832 = vmatprep.subr.bf16.mxu0 %v3736
    %3833 = vmatpush1.bf16.msra.mxu0 %v3735
    %3834 = vmatprep.subr.bf16.mxu0 %v3740
    %3835 = vmatpush1.bf16.msra.mxu0 %v3739
    %3836 = vmatprep.subr.bf16.mxu0 %v3744
    %3837 = vmatpush1.bf16.msra.mxu0 %v3743
    %3838 = vmatprep.subr.bf16.mxu0 %v3748
    %3839 = vmatpush1.bf16.msra.mxu0 %v3747
    %3840 = vmatprep.subr.bf16.mxu0 %v3752
    %3841 = vmatpush1.bf16.msra.mxu0 %v3751
    %3842 = vmatprep.subr.bf16.mxu0 0
    %3843 = vmatpush1.bf16.msra.mxu0 0
    %3844 = vmatprep.subr.bf16.mxu0 0
    %3845 = vmatpush1.bf16.msra.mxu0 0
    %3846 = vmatprep.subr.bf16.mxu0 0
    %3847 = vmatpush1.bf16.msra.mxu0 0
    %3848 = vmatprep.subr.bf16.mxu0 0
    %3849 = vmatpush1.bf16.msra.mxu0 0
    %3850 = vmatprep.subr.bf16.mxu0 0
    %3851 = vmatpush1.bf16.msra.mxu0 0
    %3852 = vmatprep.subr.bf16.mxu0 0
    %3853 = vmatpush1.bf16.msra.mxu0 0
    %3854 = vmatprep.subr.bf16.mxu0 0
    %3855 = vmatpush1.bf16.msra.mxu0 0
    %3856 = vmatprep.subr.bf16.mxu0 0
    %3857 = vmatpush1.bf16.msra.mxu0 0
    %3858 = vmatprep.mubr.bf16.mxu0 0
    %3859 = vmatmul.mubr.bf16.gmra.mrb[0].mxu0 %v3624
    %v3860 = vpop.f32.mrb[0].mxu0
    %v3861 = vadd.f32 0.0, %v3860
    %v3862 = vpop.f32.mrb[0].mxu0
    %v3863 = vadd.f32 0.0, %v3862
    %v3864 = vpop.f32.mrb[0].mxu0
    %v3865 = vpop.f32.mrb[0].mxu0
    %3866 = vdwg.mxu0
    %v3867 = vmax.f32 %v3820, 0.0
    %v3868 = vmax.f32 %v3822, 0.0
    %v3869 = vmax.f32 %v3861, 0.0
    %v3870 = vmax.f32 %v3863, 0.0
    %v3871 = vpack.c.bf16 %v3867, %v3867
    %v3872 = vpack.c.bf16 %v3868, %v3868
    %v3873 = vpack.c.bf16 %v3869, %v3869
    %v3874 = vpack.c.bf16 %v3870, %v3870
    %v3875 = vpack.c.bf16 %v3623, %v3623
    %v3892 = vunpack.c.l.b16 %v2944
    %v3893 = vunpack.c.l.b16 %v2945
    %v3894 = vunpack.c.l.b16 %v2946
    %v3895 = vunpack.c.l.b16 %v2947
    %v3896 = vunpack.c.l.b16 %v2948
    %v3897 = vunpack.c.l.b16 %v2949
    %v3898 = vunpack.c.l.b16 %v2950
    %v3899 = vunpack.c.l.b16 %v2951
    %v3900 = vunpack.c.l.b16 %v2952
    %v3901 = vunpack.c.l.b16 %v2953
    %v3902 = vunpack.c.l.b16 %v2954
    %v3903 = vunpack.c.l.b16 %v2955
    %v3904 = vunpack.c.l.b16 %v2956
    %v3905 = vunpack.c.l.b16 %v2957
    %v3906 = vunpack.c.l.b16 %v2958
    %v3907 = vunpack.c.l.b16 %v2959
    %v3908 = vpack.c.b16 %v3893, %v3892
    %v3909 = vpack.c.b16 %v3895, %v3894
    %v3910 = vpack.c.b16 %v3897, %v3896
    %v3911 = vpack.c.b16 %v3899, %v3898
    %v3912 = vpack.c.b16 %v3901, %v3900
    %v3913 = vpack.c.b16 %v3903, %v3902
    %v3914 = vpack.c.b16 %v3905, %v3904
    %v3915 = vpack.c.b16 %v3907, %v3906
    %3924 = vmatprep.subr.bf16.mxu0 0
    %3925 = vmatpush1.bf16.msra.mxu0 %v3908
    %3926 = vmatprep.subr.bf16.mxu0 0
    %3927 = vmatpush1.bf16.msra.mxu0 %v3909
    %3928 = vmatprep.subr.bf16.mxu0 0
    %3929 = vmatpush1.bf16.msra.mxu0 %v3910
    %3930 = vmatprep.subr.bf16.mxu0 0
    %3931 = vmatpush1.bf16.msra.mxu0 %v3911
    %3932 = vmatprep.subr.bf16.mxu0 0
    %3933 = vmatpush1.bf16.msra.mxu0 %v3912
    %3934 = vmatprep.subr.bf16.mxu0 0
    %3935 = vmatpush1.bf16.msra.mxu0 %v3913
    %3936 = vmatprep.subr.bf16.mxu0 0
    %3937 = vmatpush1.bf16.msra.mxu0 %v3914
    %3938 = vmatprep.subr.bf16.mxu0 0
    %3939 = vmatpush1.bf16.msra.mxu0 %v3915
    %3940 = vmatprep.subr.bf16.mxu0 0
    %3941 = vmatpush1.bf16.msra.mxu0 0
    %3942 = vmatprep.subr.bf16.mxu0 0
    %3943 = vmatpush1.bf16.msra.mxu0 0
    %3944 = vmatprep.subr.bf16.mxu0 0
    %3945 = vmatpush1.bf16.msra.mxu0 0
    %3946 = vmatprep.subr.bf16.mxu0 0
    %3947 = vmatpush1.bf16.msra.mxu0 0
    %3948 = vmatprep.subr.bf16.mxu0 0
    %3949 = vmatpush1.bf16.msra.mxu0 0
    %3950 = vmatprep.subr.bf16.mxu0 0
    %3951 = vmatpush1.bf16.msra.mxu0 0
    %3952 = vmatprep.subr.bf16.mxu0 0
    %3953 = vmatpush1.bf16.msra.mxu0 0
    %3954 = vmatprep.subr.bf16.mxu0 0
    %3955 = vmatpush1.bf16.msra.mxu0 0
    %3956 = vmatprep.mubr.bf16.mxu0 0
    %3957 = vmatmul.mubr.bf16.gmra.mrb[0].mxu0 %v3875
    %v3958 = vpop.f32.mrb[0].mxu0
    %v3959 = vadd.f32 0.0, %v3958
    %v3960 = vpop.f32.mrb[0].mxu0
    %v3961 = vpop.f32.mrb[0].mxu0
    %v3962 = vpop.f32.mrb[0].mxu0
    %3963 = vdwg.mxu0
    %v4028 = vunpack.c.l.b16 %v2994
    %v4029 = vunpack.c.l.b16 %v2995
    %v4030 = vunpack.c.l.b16 %v2996
    %v4031 = vunpack.c.l.b16 %v2997
    %v4032 = vunpack.c.l.b16 %v2998
    %v4033 = vunpack.c.l.b16 %v2999
    %v4034 = vunpack.c.l.b16 %v3000
    %v4035 = vunpack.c.l.b16 %v3001
    %v4036 = vunpack.c.l.b16 %v3002
    %v4037 = vunpack.c.l.b16 %v3003
    %v4038 = vunpack.c.l.b16 %v3004
    %v4039 = vunpack.c.l.b16 %v3005
    %v4040 = vunpack.c.l.b16 %v3006
    %v4041 = vunpack.c.l.b16 %v3007
    %v4042 = vunpack.c.l.b16 %v3008
    %v4043 = vunpack.c.l.b16 %v3009
    %v4044 = vunpack.c.l.b16 %v3010
    %v4045 = vunpack.c.l.b16 %v3011
    %v4046 = vunpack.c.l.b16 %v3012
    %v4047 = vunpack.c.l.b16 %v3013
    %v4048 = vunpack.c.l.b16 %v3014
    %v4049 = vunpack.c.l.b16 %v3015
    %v4050 = vunpack.c.l.b16 %v3016
    %v4051 = vunpack.c.l.b16 %v3017
    %v4052 = vunpack.c.l.b16 %v3018
    %v4053 = vunpack.c.l.b16 %v3019
    %v4054 = vunpack.c.l.b16 %v3020
    %v4055 = vunpack.c.l.b16 %v3021
    %v4056 = vunpack.c.l.b16 %v3022
    %v4057 = vunpack.c.l.b16 %v3023
    %v4058 = vunpack.c.l.b16 %v3024
    %v4059 = vunpack.c.l.b16 %v3025
    %v4060 = vunpack.c.l.b16 %v3026
    %v4061 = vunpack.c.l.b16 %v3027
    %v4062 = vunpack.c.l.b16 %v3028
    %v4063 = vunpack.c.l.b16 %v3029
    %v4064 = vunpack.c.l.b16 %v3030
    %v4065 = vunpack.c.l.b16 %v3031
    %v4066 = vunpack.c.l.b16 %v3032
    %v4067 = vunpack.c.l.b16 %v3033
    %v4068 = vunpack.c.l.b16 %v3034
    %v4069 = vunpack.c.l.b16 %v3035
    %v4070 = vunpack.c.l.b16 %v3036
    %v4071 = vunpack.c.l.b16 %v3037
    %v4072 = vunpack.c.l.b16 %v3038
    %v4073 = vunpack.c.l.b16 %v3039
    %v4074 = vunpack.c.l.b16 %v3040
    %v4075 = vunpack.c.l.b16 %v3041
    %v4076 = vunpack.c.l.b16 %v3042
    %v4077 = vunpack.c.l.b16 %v3043
    %v4078 = vunpack.c.l.b16 %v3044
    %v4079 = vunpack.c.l.b16 %v3045
    %v4080 = vunpack.c.l.b16 %v3046
    %v4081 = vunpack.c.l.b16 %v3047
    %v4082 = vunpack.c.l.b16 %v3048
    %v4083 = vunpack.c.l.b16 %v3049
    %v4084 = vunpack.c.l.b16 %v3050
    %v4085 = vunpack.c.l.b16 %v3051
    %v4086 = vunpack.c.l.b16 %v3052
    %v4087 = vunpack.c.l.b16 %v3053
    %v4088 = vunpack.c.l.b16 %v3054
    %v4089 = vunpack.c.l.b16 %v3055
    %v4090 = vunpack.c.l.b16 %v3056
    %v4091 = vunpack.c.l.b16 %v3057
    %v4092 = vpack.c.b16 %v4029, %v4028
    %v4093 = vpack.c.b16 %v4031, %v4030
    %v4094 = vpack.c.b16 %v4033, %v4032
    %v4095 = vpack.c.b16 %v4035, %v4034
    %v4096 = vpack.c.b16 %v4037, %v4036
    %v4097 = vpack.c.b16 %v4039, %v4038
    %v4098 = vpack.c.b16 %v4041, %v4040
    %v4099 = vpack.c.b16 %v4043, %v4042
    %v4100 = vpack.c.b16 %v4045, %v4044
    %v4101 = vpack.c.b16 %v4047, %v4046
    %v4102 = vpack.c.b16 %v4049, %v4048
    %v4103 = vpack.c.b16 %v4051, %v4050
    %v4104 = vpack.c.b16 %v4053, %v4052
    %v4105 = vpack.c.b16 %v4055, %v4054
    %v4106 = vpack.c.b16 %v4057, %v4056
    %v4107 = vpack.c.b16 %v4059, %v4058
    %v4108 = vpack.c.b16 %v4061, %v4060
    %v4109 = vpack.c.b16 %v4063, %v4062
    %v4110 = vpack.c.b16 %v4065, %v4064
    %v4111 = vpack.c.b16 %v4067, %v4066
    %v4112 = vpack.c.b16 %v4069, %v4068
    %v4113 = vpack.c.b16 %v4071, %v4070
    %v4114 = vpack.c.b16 %v4073, %v4072
    %v4115 = vpack.c.b16 %v4075, %v4074
    %v4116 = vpack.c.b16 %v4077, %v4076
    %v4117 = vpack.c.b16 %v4079, %v4078
    %v4118 = vpack.c.b16 %v4081, %v4080
    %v4119 = vpack.c.b16 %v4083, %v4082
    %v4120 = vpack.c.b16 %v4085, %v4084
    %v4121 = vpack.c.b16 %v4087, %v4086
    %v4122 = vpack.c.b16 %v4089, %v4088
    %v4123 = vpack.c.b16 %v4091, %v4090
    %4156 = vmatprep.subr.bf16.mxu0 0
    %4157 = vmatpush1.bf16.msra.mxu0 %v4092
    %4158 = vmatprep.subr.bf16.mxu0 0
    %4159 = vmatpush1.bf16.msra.mxu0 %v4093
    %4160 = vmatprep.subr.bf16.mxu0 0
    %4161 = vmatpush1.bf16.msra.mxu0 %v4094
    %4162 = vmatprep.subr.bf16.mxu0 0
    %4163 = vmatpush1.bf16.msra.mxu0 %v4095
    %4164 = vmatprep.subr.bf16.mxu0 0
    %4165 = vmatpush1.bf16.msra.mxu0 %v4096
    %4166 = vmatprep.subr.bf16.mxu0 0
    %4167 = vmatpush1.bf16.msra.mxu0 %v4097
    %4168 = vmatprep.subr.bf16.mxu0 0
    %4169 = vmatpush1.bf16.msra.mxu0 %v4098
    %4170 = vmatprep.subr.bf16.mxu0 0
    %4171 = vmatpush1.bf16.msra.mxu0 %v4099
    %4172 = vmatprep.subr.bf16.mxu0 0
    %4173 = vmatpush1.bf16.msra.mxu0 %v4100
    %4174 = vmatprep.subr.bf16.mxu0 0
    %4175 = vmatpush1.bf16.msra.mxu0 %v4101
    %4176 = vmatprep.subr.bf16.mxu0 0
    %4177 = vmatpush1.bf16.msra.mxu0 %v4102
    %4178 = vmatprep.subr.bf16.mxu0 0
    %4179 = vmatpush1.bf16.msra.mxu0 %v4103
    %4180 = vmatprep.subr.bf16.mxu0 0
    %4181 = vmatpush1.bf16.msra.mxu0 %v4104
    %4182 = vmatprep.subr.bf16.mxu0 0
    %4183 = vmatpush1.bf16.msra.mxu0 %v4105
    %4184 = vmatprep.subr.bf16.mxu0 0
    %4185 = vmatpush1.bf16.msra.mxu0 %v4106
    %4186 = vmatprep.subr.bf16.mxu0 0
    %4187 = vmatpush1.bf16.msra.mxu0 %v4107
    %4188 = vmatprep.mubr.bf16.mxu0 %v3872
    %4189 = vmatmul.mubr.bf16.gmra.mrb[0].mxu0 %v3871
    %v4190 = vpop.f32.mrb[0].mxu0
    %v4191 = vadd.f32 %v3959, %v4190
    %v4192 = vpop.f32.mrb[0].mxu0
    %v4193 = vpop.f32.mrb[0].mxu0
    %v4194 = vpop.f32.mrb[0].mxu0
    %4195 = vdwg.mxu0
    %4196 = vmatprep.subr.bf16.mxu0 0
    %4197 = vmatpush1.bf16.msra.mxu0 %v4108
    %4198 = vmatprep.subr.bf16.mxu0 0
    %4199 = vmatpush1.bf16.msra.mxu0 %v4109
    %4200 = vmatprep.subr.bf16.mxu0 0
    %4201 = vmatpush1.bf16.msra.mxu0 %v4110
    %4202 = vmatprep.subr.bf16.mxu0 0
    %4203 = vmatpush1.bf16.msra.mxu0 %v4111
    %4204 = vmatprep.subr.bf16.mxu0 0
    %4205 = vmatpush1.bf16.msra.mxu0 %v4112
    %4206 = vmatprep.subr.bf16.mxu0 0
    %4207 = vmatpush1.bf16.msra.mxu0 %v4113
    %4208 = vmatprep.subr.bf16.mxu0 0
    %4209 = vmatpush1.bf16.msra.mxu0 %v4114
    %4210 = vmatprep.subr.bf16.mxu0 0
    %4211 = vmatpush1.bf16.msra.mxu0 %v4115
    %4212 = vmatprep.subr.bf16.mxu0 0
    %4213 = vmatpush1.bf16.msra.mxu0 %v4116
    %4214 = vmatprep.subr.bf16.mxu0 0
    %4215 = vmatpush1.bf16.msra.mxu0 %v4117
    %4216 = vmatprep.subr.bf16.mxu0 0
    %4217 = vmatpush1.bf16.msra.mxu0 %v4118
    %4218 = vmatprep.subr.bf16.mxu0 0
    %4219 = vmatpush1.bf16.msra.mxu0 %v4119
    %4220 = vmatprep.subr.bf16.mxu0 0
    %4221 = vmatpush1.bf16.msra.mxu0 %v4120
    %4222 = vmatprep.subr.bf16.mxu0 0
    %4223 = vmatpush1.bf16.msra.mxu0 %v4121
    %4224 = vmatprep.subr.bf16.mxu0 0
    %4225 = vmatpush1.bf16.msra.mxu0 %v4122
    %4226 = vmatprep.subr.bf16.mxu0 0
    %4227 = vmatpush1.bf16.msra.mxu0 %v4123
    %4228 = vmatprep.mubr.bf16.mxu0 %v3874
    %4229 = vmatmul.mubr.bf16.gmra.mrb[0].mxu0 %v3873
    %v4230 = vpop.f32.mrb[0].mxu0
    %v4231 = vadd.f32 %v4191, %v4230
    %v4232 = vpop.f32.mrb[0].mxu0
    %v4233 = vpop.f32.mrb[0].mxu0
    %v4234 = vpop.f32.mrb[0].mxu0
    %4235 = vdwg.mxu0
    %s4236 = scalar_lea.vmem [#allocation14], 16
    %4237 = vst [vmem:[%s4236] sm:$0xff] %v3621
    %s4238 = scalar_lea.vmem [#allocation15], 16
    %4239 = vst [vmem:[%s4238] sm:$0xff] %v3623
    %4240 = vst [vmem:[#allocation17] sm:$0xff] %v4231
    // Predicated region
    $region70: #{tpu_custom_call.1} parent=1 // pred_check
      _
    $region71: #{tpu_custom_call.1} parent=1 // pred_check_branch
      %4242 = sbr.rel (0) target = $region73
    $region72: #{tpu_custom_call.1} parent=1 // pred_region
      %s4244 = ssub.s32 384, 384
      %4245 = vsyncadd [#allocation4], %s4244
      %s4246 = sshll.u32 [#allocation14], 4
      %s4247 = int_to_ptr.vmem [resolvable:$true] %s4246
      %4252 = dma.vmem_to_hbm [thread:$0]  %s4247, 384, %s10, [#allocation4], 128, 128, 8
    $region73: #{tpu_custom_call.1} parent=1 // pred_fallthru
      _
    // Predicated region
    $region74: #{tpu_custom_call.1} parent=1 // pred_check
      _
    $region75: #{tpu_custom_call.1} parent=1 // pred_check_branch
      %4254 = sbr.rel (0) target = $region77
    $region76: #{tpu_custom_call.1} parent=1 // pred_region
      %s4256 = ssub.s32 384, 384
      %4257 = vsyncadd [#allocation16], %s4256
      %s4258 = sshll.u32 [#allocation15], 4
      %s4259 = int_to_ptr.vmem [resolvable:$true] %s4258
      %4264 = dma.vmem_to_hbm [thread:$0]  %s4259, 384, %s11, [#allocation16], 128, 128, 8
    $region77: #{tpu_custom_call.1} parent=1 // pred_fallthru
      _
    // Predicated region
    $region78: #{tpu_custom_call.1} parent=1 // pred_check
      _
    $region79: #{tpu_custom_call.1} parent=1 // pred_check_branch
      %4266 = sbr.rel (0) target = $region81
    $region80: #{tpu_custom_call.1} parent=1 // pred_region
      %s4268 = ssub.s32 128, 128
      %4269 = vsyncadd [#allocation16], %s4268
      %s4271 = sshll.u32 [#allocation17], 4
      %s4272 = int_to_ptr.vmem [resolvable:$true] %s4271
      %4274 = dma.vmem_to_hbm [thread:$0]  %s4272, 128, %s12, [#allocation16]
    $region81: #{tpu_custom_call.1} parent=1 // pred_fallthru
      _
    // Predicated region
    $region82: #{tpu_custom_call.1} parent=1 // pred_check
      _
    $region83: #{tpu_custom_call.1} parent=1 // pred_check_branch
      %4276 = sbr.rel (0) target = $region85
    $region84: #{tpu_custom_call.1} parent=1 // pred_region
      %4277 = dma.done [#allocation4], 384
    $region85: #{tpu_custom_call.1} parent=1 // pred_fallthru
      _
    // Predicated region
    $region86: #{tpu_custom_call.1} parent=1 // pred_check
      _
    $region87: #{tpu_custom_call.1} parent=1 // pred_check_branch
      %4279 = sbr.rel (0) target = $region89
    $region88: #{tpu_custom_call.1} parent=1 // pred_region
      %4280 = dma.done [#allocation16], 384
    $region89: #{tpu_custom_call.1} parent=1 // pred_fallthru
      _
    // Predicated region
    $region90: #{tpu_custom_call.1} parent=1 // pred_check
      _
    $region91: #{tpu_custom_call.1} parent=1 // pred_check_branch
      %4282 = sbr.rel (0) target = $region93
    $region92: #{tpu_custom_call.1} parent=1 // pred_region
      %4283 = dma.done [#allocation16], 128
    $region93: #{tpu_custom_call.1} parent=1 // pred_fallthru
      _
    %4284 = vsyncpa [#allocation3], 1
    %4285 = vsyncpa [#allocation6], 1
    %4286 = vsyncpa [#allocation9], 1
    %4287 = vsyncpa [#allocation12], 1
    %4288 = vsyncpa [#allocation4], 1
    %4289 = vsyncpa [#allocation16], 1

</llo_original>
